<compile_context>
chip_gen: v5e
topology: v5e:2x2
jax: 0.10.0
libtpu: 0.0.40
codegen_flags: <defaults>
</compile_context>

<pallas_src>
import math

import jax
import jax.numpy as jnp
from jax.experimental import pallas as pl
from jax.experimental.pallas import tpu as pltpu

D_MODEL = 32
N_HEADS = 4
D_K = D_MODEL // N_HEADS
D_FF = 64
EPS = 1e-6
NEG_INF = -1.0e9


# ----------------------------- kernel ---------------------------------------


def _layernorm_in_kernel(x):
    # torch custom LayerNormalization: mean / unbiased std over last dim, alpha=1, bias=0.
    n = x.shape[-1]
    mean = jnp.mean(x, axis=-1, keepdims=True)
    var = jnp.sum((x - mean) ** 2, axis=-1, keepdims=True) * (1.0 / (n - 1))
    inv = pl.reciprocal(jnp.sqrt(var) + EPS, approx=False)   # exact; runs on EUP
    return (x - mean) * inv


def encoder_block_kernel(x_ref, bias_ref, wqkv_ref, wo_ref,
                         w1_ref, b1_ref, w2_ref, b2_ref, o_ref):
    # x_ref:    (TB*S, D)   TB sequences flattened into one 2-D slab
    # bias_ref: (TB, 1, S)  additive key-padding bias (0 = keep, -1e9 = masked)
    TB, _, S = bias_ref.shape
    rows = x_ref.shape[0]            # = TB * S
    HB = N_HEADS * TB                # head-batched einsum batch size

    x = x_ref[...]                   # (rows, D)

    # ---------- residual connection 1: multi-head self-attention ----------
    xn = _layernorm_in_kernel(x)
    # Fused Q|K|V projection; 1/sqrt(d_k) already folded into the Q weight.
    qkv = jnp.dot(xn, wqkv_ref[...], preferred_element_type=jnp.float32)   # (rows, 3D)
    qkv3 = qkv.reshape(TB, S, 3 * D_MODEL)   # free: splits rows into (TB, S) with S=8

    def head_slice(base, h):
        return qkv3[:, :, base + h * D_K: base + (h + 1) * D_K]            # (TB, S, Dk)

    # Move heads into the batch axis ONCE (stack along a new leading dim, then a free
    # leading-dim merge) so attention runs as a single pair of batched einsums.
    q_b = jnp.stack([head_slice(0, h) for h in range(N_HEADS)],
                    axis=0).reshape(HB, S, D_K)
    k_b = jnp.stack([head_slice(D_MODEL, h) for h in range(N_HEADS)],
                    axis=0).reshape(HB, S, D_K)
    v_b = jnp.stack([head_slice(2 * D_MODEL, h) for h in range(N_HEADS)],
                    axis=0).reshape(HB, S, D_K)

    # Additive key-padding bias, broadcast over heads exactly once (hoisted).
    bias_hb = jnp.broadcast_to(bias_ref[...].reshape(1, TB, 1, S),
                               (N_HEADS, TB, 1, S)).reshape(HB, 1, S)

    s = jnp.einsum('bqd,bkd->bqk', q_b, k_b,
                   preferred_element_type=jnp.float32)                     # (HB, S, S)
    s = s + bias_hb                         # broadcast over queries, single add site
    s = s - jnp.max(s, axis=-1, keepdims=True)
    p = jnp.exp(s)
    p = p * pl.reciprocal(jnp.sum(p, axis=-1, keepdims=True), approx=False)
    ctx = jnp.einsum('bqk,bkd->bqd', p, v_b,
                     preferred_element_type=jnp.float32)                   # (HB, S, Dk)

    # Heads back onto the feature (lane) axis, then ONE W_o matmul with K = D.
    ctx4 = ctx.reshape(N_HEADS, TB, S, D_K)                                # free split
    ctx_cat = jnp.concatenate([ctx4[h] for h in range(N_HEADS)], axis=-1)  # (TB, S, D)
    attn = jnp.dot(ctx_cat.reshape(rows, D_MODEL), wo_ref[...],
                   preferred_element_type=jnp.float32)                     # (rows, D)
    x = x + attn             # dropout p = 0 -> identity

    # ---------- residual connection 2: feed-forward ----------
    xn = _layernorm_in_kernel(x)
    h1 = jnp.dot(xn, w1_ref[...], preferred_element_type=jnp.float32) + b1_ref[...]
    h1 = jnp.maximum(h1, 0.0)
    h2 = jnp.dot(h1, w2_ref[...], preferred_element_type=jnp.float32) + b2_ref[...]
    o_ref[...] = x + h2


# ----------------------------- wrapper ---------------------------------------


def _pick_batch_tile(B, S, max_rows=4096):
    """Largest TB dividing B with TB*S <= max_rows.

    No forced multi-step split: when the whole problem fits in one tile we run
    grid=(1,) (the grid is a serial loop on v5e/v6e, so extra steps only add the
    ~0.35us/step pipeline overhead).  Multi-step grids only appear when a single
    step would exceed max_rows rows; in that regime each step carries >= ~2048
    rows of work, enough to hide per-step overhead and feed both v7x TensorCores
    via the 'parallel' dimension semantics.
    """
    best = 1
    for tb in range(1, B + 1):
        if B % tb == 0 and tb * S <= max_rows:
            best = tb
    return best


def encoder_block(x, mask, params, block_b=None):
    """x: (B, S, D) f32, mask: (B, 1, S) f32 (0 = masked key), params: dict of weights.

    Weights are stored pre-transposed as (in, out): wq/wk/wv/wo (D, D),
    w1 (D, D_FF), b1 (1, D_FF), w2 (D_FF, D), b2 (1, D).
    """
    B, S, D = x.shape
    assert D == D_MODEL
    TB = block_b if block_b is not None else _pick_batch_tile(B, S)
    assert B % TB == 0
    grid = (B // TB,)
    rows_per_step = TB * S

    # One-time weight transforms (XLA wrapper, not per grid step):
    #   * fold 1/sqrt(d_k) into the Q weight,
    #   * fuse Q|K|V into a single (D, 3D) projection weight.
    scale = 1.0 / math.sqrt(D_K)
    wqkv = jnp.concatenate(
        [params["wq"] * scale, params["wk"], params["wv"]], axis=1)   # (D, 3D)
    wo, w1, b1, w2, b2 = (params["wo"], params["w1"], params["b1"],
                          params["w2"], params["b2"])

    # Additive key-padding bias: 0 keeps, -1e9 masks (matches masked_fill + softmax
    # exactly whenever each query has at least one unmasked key; a fully-masked key
    # row would differ from torch's uniform-softmax result — documented edge case).
    mask_bias = jnp.where(mask == 0.0, NEG_INF, 0.0).astype(jnp.float32)  # (B,1,S)

    # Lane-dense-as-possible 2-D activation slab for the kernel.
    # TODO(synk): for very store-bound v5e cases, a (B*S*D/128, 128) output slab would
    # avoid 32-lane masked stores, but the in-kernel relayout is a lowering risk at
    # this size — left as-is.
    x2 = x.reshape(B * S, D)

    const = lambda shape: pl.BlockSpec(shape, lambda b: tuple(0 for _ in shape))
    # NOTE: constant-index weight blocks are DMA'd once per call; pl.Buffered(1)
    # single-buffering would shave a few KiB of VMEM but is negligible at D=32 —
    # revisit if D/D_FF grow (v7x has only 64 MiB physical VMEM).

    # Advisory cost estimate so XLA schedules surrounding ops sensibly.
    rows_total = B * S
    flops = int(2 * rows_total * D * (3 * D)            # QKV projection
                + 2 * B * N_HEADS * S * S * D_K         # attention scores
                + 2 * B * N_HEADS * S * S * D_K         # attention context
                + 2 * rows_total * D * D                # W_o
                + 2 * rows_total * D * D_FF             # FF linear 1
                + 2 * rows_total * D_FF * D)            # FF linear 2
    transcendentals = int(B * N_HEADS * S * S           # softmax exp
                          + 4 * rows_total)             # LN sqrt/recip, softmax recip
    bytes_accessed = int(4 * (2 * rows_total * D + B * S
                              + D * 3 * D + D * D + D * D_FF + D_FF + D_FF * D + D))

    out2 = pl.pallas_call(
        encoder_block_kernel,
        out_shape=jax.ShapeDtypeStruct((B * S, D), x.dtype),
        grid_spec=pltpu.PrefetchScalarGridSpec(
            num_scalar_prefetch=0,
            grid=grid,
            in_specs=[
                pl.BlockSpec((rows_per_step, D), lambda b: (b, 0)),   # x (flattened)
                pl.BlockSpec((TB, 1, S), lambda b: (b, 0, 0)),        # additive mask
                const((D, 3 * D)),                                    # wqkv (fused)
                const((D, D)),                                        # wo
                const((D, D_FF)),                                     # w1
                const((1, D_FF)),                                     # b1
                const((D_FF, D)),                                     # w2
                const((1, D)),                                        # b2
            ],
            out_specs=pl.BlockSpec((rows_per_step, D), lambda b: (b, 0)),
        ),
        compiler_params=pltpu.CompilerParams(
            dimension_semantics=("parallel",),
            # Above the 32 MiB scoped default, below v7x's 64 MiB physical; the kernel
            # itself needs only a few MiB even at max_rows=4096 row tiles.
            vmem_limit_bytes=48 * 1024 * 1024),
        cost_estimate=pl.CostEstimate(flops=flops,
                                      transcendentals=transcendentals,
                                      bytes_accessed=bytes_accessed),
    )(x2, mask_bias, wqkv, wo, w1, b1, w2, b2)

    return out2.reshape(B, S, D)


# ----------------------------- pure-JAX reference -----------------------------


def _layernorm_ref(x):
    n = x.shape[-1]
    mean = jnp.mean(x, axis=-1, keepdims=True)
    var = jnp.sum((x - mean) ** 2, axis=-1, keepdims=True) / (n - 1)
    std = jnp.sqrt(var)
    return (x - mean) / (std + EPS)


def encoder_block_reference(x, mask, params):
    """Pure-JAX reference mirroring the PyTorch forward (dropout = 0)."""
    wq, wk, wv, wo = params["wq"], params["wk"], params["wv"], params["wo"]
    w1, b1, w2, b2 = params["w1"], params["b1"], params["w2"], params["b2"]
    B, S, D = x.shape

    xn = _layernorm_ref(x)
    q = xn @ wq
    k = xn @ wk
    v = xn @ wv
    qh = q.reshape(B, S, N_HEADS, D_K).transpose(0, 2, 1, 3)
    kh = k.reshape(B, S, N_HEADS, D_K).transpose(0, 2, 1, 3)
    vh = v.reshape(B, S, N_HEADS, D_K).transpose(0, 2, 1, 3)
    scores = jnp.einsum("bhqd,bhkd->bhqk", qh, kh) / math.sqrt(D_K)
    scores = jnp.where(mask[:, :, None, :] == 0.0, NEG_INF, scores)
    p = jax.nn.softmax(scores, axis=-1)
    attn = jnp.einsum("bhqk,bhkd->bhqd", p, vh)
    attn = attn.transpose(0, 2, 1, 3).reshape(B, S, D) @ wo
    x = x + attn

    xn = _layernorm_ref(x)
    h = jnp.maximum(xn @ w1 + b1, 0.0)
    x = x + (h @ w2 + b2)
    return x


# ----------------------------- test ------------------------------------------


if __name__ == "__main__":
    B, S = 8, 8
    key = jax.random.PRNGKey(0)
    ks = jax.random.split(key, 10)

    x = jax.random.normal(ks[0], (B, S, D_MODEL), jnp.float32)
    # padding mask (0 = masked key); no query row is fully masked
    mask = jnp.ones((B, 1, S), jnp.float32)
    mask = mask.at[1, 0, -2:].set(0.0)
    mask = mask.at[4, 0, -3:].set(0.0)
    mask = mask.at[6, 0, 0].set(0.0)

    # Deterministic synthetic parameters (torch Linear y = x W^T + b;
    # here weights are stored pre-transposed as (in, out)).
    params = {
        "wq": jax.random.normal(ks[1], (D_MODEL, D_MODEL), jnp.float32) * 0.1,
        "wk": jax.random.normal(ks[2], (D_MODEL, D_MODEL), jnp.float32) * 0.1,
        "wv": jax.random.normal(ks[3], (D_MODEL, D_MODEL), jnp.float32) * 0.1,
        "wo": jax.random.normal(ks[4], (D_MODEL, D_MODEL), jnp.float32) * 0.1,
        "w1": jax.random.normal(ks[5], (D_MODEL, D_FF), jnp.float32) * 0.1,
        "b1": jax.random.normal(ks[6], (1, D_FF), jnp.float32) * 0.1,
        "w2": jax.random.normal(ks[7], (D_FF, D_MODEL), jnp.float32) * 0.1,
        "b2": jax.random.normal(ks[8], (1, D_MODEL), jnp.float32) * 0.1,
    }

    out = encoder_block(x, mask, params)   # TB=B=8 -> single grid step
    out = jax.block_until_ready(out)

    ref = encoder_block_reference(x, mask, params)
    assert out.shape == (B, S, D_MODEL)
    assert jnp.allclose(out, ref, atol=1e-4, rtol=1e-4), "mismatch vs reference"

    print("KERNEL_OK")
</pallas_src>

<mosaic_0001>
module attributes {stable_mosaic.version = 11 : i64} {
  func.func @encoder_block_kernel(%arg0: i32, %arg1: memref<64x32xf32, #tpu.memory_space<vmem>>, %arg2: memref<8x1x8xf32, #tpu.memory_space<vmem>>, %arg3: memref<32x96xf32, #tpu.memory_space<vmem>>, %arg4: memref<32x32xf32, #tpu.memory_space<vmem>>, %arg5: memref<32x64xf32, #tpu.memory_space<vmem>>, %arg6: memref<1x64xf32, #tpu.memory_space<vmem>>, %arg7: memref<64x32xf32, #tpu.memory_space<vmem>>, %arg8: memref<1x32xf32, #tpu.memory_space<vmem>>, %arg9: memref<64x32xf32, #tpu.memory_space<vmem>>) attributes {dimension_semantics = [#tpu.dimension_semantics<parallel>], iteration_bounds = array<i64: 1>, scalar_prefetch = 0 : i64, scratch_operands = 0 : i64, tpu.core_type = #tpu.core_type<tc>, window_params = [{transform_indices = @transform_0, window_bounds = array<i64: 64, 32>}, {transform_indices = @transform_1, window_bounds = array<i64: 8, 1, 8>}, {pipeline_mode = #tpu.pipeline_mode<synchronous>, transform_indices = @transform_2, window_bounds = array<i64: 32, 96>}, {pipeline_mode = #tpu.pipeline_mode<synchronous>, transform_indices = @transform_3, window_bounds = array<i64: 32, 32>}, {pipeline_mode = #tpu.pipeline_mode<synchronous>, transform_indices = @transform_4, window_bounds = array<i64: 32, 64>}, {pipeline_mode = #tpu.pipeline_mode<synchronous>, transform_indices = @transform_5, window_bounds = array<i64: 1, 64>}, {pipeline_mode = #tpu.pipeline_mode<synchronous>, transform_indices = @transform_6, window_bounds = array<i64: 64, 32>}, {pipeline_mode = #tpu.pipeline_mode<synchronous>, transform_indices = @transform_7, window_bounds = array<i64: 1, 32>}, {transform_indices = @transform_8, window_bounds = array<i64: 64, 32>}]} {
    %c0 = arith.constant 0 : index
    %c0_0 = arith.constant 0 : index
    %0 = vector.load %arg1[%c0, %c0_0] : memref<64x32xf32, #tpu.memory_space<vmem>>, vector<64x32xf32>
    %cst = arith.constant dense<0.000000e+00> : vector<64xf32>
    %1 = vector.multi_reduction <add>, %0, %cst [1] : vector<64x32xf32> to vector<64xf32>
    %2 = vector.shape_cast %1 : vector<64xf32> to vector<64x1xf32>
    %cst_1 = arith.constant 3.200000e+01 : f32
    %3 = vector.broadcast %cst_1 : f32 to vector<64x1xf32>
    %4 = arith.divf %2, %3 : vector<64x1xf32>
    %5 = vector.broadcast %4 : vector<64x1xf32> to vector<64x32xf32>
    %6 = arith.subf %0, %5 : vector<64x32xf32>
    %7 = arith.mulf %6, %6 : vector<64x32xf32>
    %cst_2 = arith.constant dense<0.000000e+00> : vector<64xf32>
    %8 = vector.multi_reduction <add>, %7, %cst_2 [1] : vector<64x32xf32> to vector<64xf32>
    %9 = vector.shape_cast %8 : vector<64xf32> to vector<64x1xf32>
    %cst_3 = arith.constant 0.0322580636 : f32
    %10 = vector.broadcast %cst_3 : f32 to vector<64x1xf32>
    %11 = arith.mulf %9, %10 : vector<64x1xf32>
    %12 = math.sqrt %11 : vector<64x1xf32>
    %cst_4 = arith.constant 9.99999997E-7 : f32
    %13 = vector.broadcast %cst_4 : f32 to vector<64x1xf32>
    %14 = arith.addf %12, %13 : vector<64x1xf32>
    %15 = tpu.reciprocal %14 : vector<64x1xf32> -> vector<64x1xf32>
    %16 = vector.broadcast %4 : vector<64x1xf32> to vector<64x32xf32>
    %17 = arith.subf %0, %16 : vector<64x32xf32>
    %18 = vector.broadcast %15 : vector<64x1xf32> to vector<64x32xf32>
    %19 = arith.mulf %17, %18 : vector<64x32xf32>
    %c0_5 = arith.constant 0 : index
    %c0_6 = arith.constant 0 : index
    %20 = vector.load %arg3[%c0_5, %c0_6] : memref<32x96xf32, #tpu.memory_space<vmem>>, vector<32x96xf32>
    %cst_7 = arith.constant dense<0.000000e+00> : vector<64x96xf32>
    %21 = tpu.matmul %19, %20, %cst_7 {dimension_numbers = #tpu.dot_dimension_numbers<[1], [0], [0], [1], [0, 0, 1, 1], [], []>} : vector<64x32xf32>, vector<32x96xf32>, vector<64x96xf32> -> vector<64x96xf32>
    %22 = vector.shape_cast %21 : vector<64x96xf32> to vector<8x8x96xf32>
    %23 = vector.extract_strided_slice %22 {offsets = [0, 0, 0], sizes = [8, 8, 8], strides = [1, 1, 1]} : vector<8x8x96xf32> to vector<8x8x8xf32>
    %24 = vector.extract_strided_slice %22 {offsets = [0, 0, 8], sizes = [8, 8, 8], strides = [1, 1, 1]} : vector<8x8x96xf32> to vector<8x8x8xf32>
    %25 = vector.extract_strided_slice %22 {offsets = [0, 0, 16], sizes = [8, 8, 8], strides = [1, 1, 1]} : vector<8x8x96xf32> to vector<8x8x8xf32>
    %26 = vector.extract_strided_slice %22 {offsets = [0, 0, 24], sizes = [8, 8, 8], strides = [1, 1, 1]} : vector<8x8x96xf32> to vector<8x8x8xf32>
    %27 = vector.shape_cast %23 : vector<8x8x8xf32> to vector<1x8x8x8xf32>
    %28 = vector.shape_cast %24 : vector<8x8x8xf32> to vector<1x8x8x8xf32>
    %29 = vector.shape_cast %25 : vector<8x8x8xf32> to vector<1x8x8x8xf32>
    %30 = vector.shape_cast %26 : vector<8x8x8xf32> to vector<1x8x8x8xf32>
    %31 = tpu.concatenate %27, %28, %29, %30 in 0 : vector<1x8x8x8xf32>, vector<1x8x8x8xf32>, vector<1x8x8x8xf32>, vector<1x8x8x8xf32> -> vector<4x8x8x8xf32>
    %32 = vector.shape_cast %31 : vector<4x8x8x8xf32> to vector<32x8x8xf32>
    %33 = vector.extract_strided_slice %22 {offsets = [0, 0, 32], sizes = [8, 8, 8], strides = [1, 1, 1]} : vector<8x8x96xf32> to vector<8x8x8xf32>
    %34 = vector.extract_strided_slice %22 {offsets = [0, 0, 40], sizes = [8, 8, 8], strides = [1, 1, 1]} : vector<8x8x96xf32> to vector<8x8x8xf32>
    %35 = vector.extract_strided_slice %22 {offsets = [0, 0, 48], sizes = [8, 8, 8], strides = [1, 1, 1]} : vector<8x8x96xf32> to vector<8x8x8xf32>
    %36 = vector.extract_strided_slice %22 {offsets = [0, 0, 56], sizes = [8, 8, 8], strides = [1, 1, 1]} : vector<8x8x96xf32> to vector<8x8x8xf32>
    %37 = vector.shape_cast %33 : vector<8x8x8xf32> to vector<1x8x8x8xf32>
    %38 = vector.shape_cast %34 : vector<8x8x8xf32> to vector<1x8x8x8xf32>
    %39 = vector.shape_cast %35 : vector<8x8x8xf32> to vector<1x8x8x8xf32>
    %40 = vector.shape_cast %36 : vector<8x8x8xf32> to vector<1x8x8x8xf32>
    %41 = tpu.concatenate %37, %38, %39, %40 in 0 : vector<1x8x8x8xf32>, vector<1x8x8x8xf32>, vector<1x8x8x8xf32>, vector<1x8x8x8xf32> -> vector<4x8x8x8xf32>
    %42 = vector.shape_cast %41 : vector<4x8x8x8xf32> to vector<32x8x8xf32>
    %43 = vector.extract_strided_slice %22 {offsets = [0, 0, 64], sizes = [8, 8, 8], strides = [1, 1, 1]} : vector<8x8x96xf32> to vector<8x8x8xf32>
    %44 = vector.extract_strided_slice %22 {offsets = [0, 0, 72], sizes = [8, 8, 8], strides = [1, 1, 1]} : vector<8x8x96xf32> to vector<8x8x8xf32>
    %45 = vector.extract_strided_slice %22 {offsets = [0, 0, 80], sizes = [8, 8, 8], strides = [1, 1, 1]} : vector<8x8x96xf32> to vector<8x8x8xf32>
    %46 = vector.extract_strided_slice %22 {offsets = [0, 0, 88], sizes = [8, 8, 8], strides = [1, 1, 1]} : vector<8x8x96xf32> to vector<8x8x8xf32>
    %47 = vector.shape_cast %43 : vector<8x8x8xf32> to vector<1x8x8x8xf32>
    %48 = vector.shape_cast %44 : vector<8x8x8xf32> to vector<1x8x8x8xf32>
    %49 = vector.shape_cast %45 : vector<8x8x8xf32> to vector<1x8x8x8xf32>
    %50 = vector.shape_cast %46 : vector<8x8x8xf32> to vector<1x8x8x8xf32>
    %51 = tpu.concatenate %47, %48, %49, %50 in 0 : vector<1x8x8x8xf32>, vector<1x8x8x8xf32>, vector<1x8x8x8xf32>, vector<1x8x8x8xf32> -> vector<4x8x8x8xf32>
    %52 = vector.shape_cast %51 : vector<4x8x8x8xf32> to vector<32x8x8xf32>
    %c0_8 = arith.constant 0 : index
    %c0_9 = arith.constant 0 : index
    %c0_10 = arith.constant 0 : index
    %53 = vector.load %arg2[%c0_8, %c0_9, %c0_10] : memref<8x1x8xf32, #tpu.memory_space<vmem>>, vector<8x1x8xf32>
    %54 = vector.shape_cast %53 : vector<8x1x8xf32> to vector<1x8x1x8xf32>
    %55 = vector.shape_cast %54 : vector<1x8x1x8xf32> to vector<1x8x1x8xf32>
    %56 = vector.broadcast %55 : vector<1x8x1x8xf32> to vector<4x8x1x8xf32>
    %57 = vector.shape_cast %56 : vector<4x8x1x8xf32> to vector<32x1x8xf32>
    "tpu.trace_start"() <{level = 10 : i32, message = "bqd,bkd->bqk"}> : () -> ()
    %cst_11 = arith.constant dense<0.000000e+00> : vector<32x8x8xf32>
    %58 = tpu.matmul %32, %42, %cst_11 {dimension_numbers = #tpu.dot_dimension_numbers<[2], [2], [1], [1], [0, 0, 0, 1, 1, 1], [0], [0]>} : vector<32x8x8xf32>, vector<32x8x8xf32>, vector<32x8x8xf32> -> vector<32x8x8xf32>
    "tpu.trace_stop"() : () -> ()
    %59 = vector.broadcast %57 : vector<32x1x8xf32> to vector<32x8x8xf32>
    %60 = arith.addf %58, %59 : vector<32x8x8xf32>
    %cst_12 = arith.constant dense<0xFF800000> : vector<32x8xf32>
    %61 = vector.multi_reduction <maximumf>, %60, %cst_12 [2] : vector<32x8x8xf32> to vector<32x8xf32>
    %62 = vector.shape_cast %61 : vector<32x8xf32> to vector<32x8x1xf32>
    %63 = vector.broadcast %62 : vector<32x8x1xf32> to vector<32x8x8xf32>
    %64 = arith.subf %60, %63 : vector<32x8x8xf32>
    %65 = math.exp %64 : vector<32x8x8xf32>
    %cst_13 = arith.constant dense<0.000000e+00> : vector<32x8xf32>
    %66 = vector.multi_reduction <add>, %65, %cst_13 [2] : vector<32x8x8xf32> to vector<32x8xf32>
    %67 = vector.shape_cast %66 : vector<32x8xf32> to vector<32x8x1xf32>
    %68 = tpu.reciprocal %67 : vector<32x8x1xf32> -> vector<32x8x1xf32>
    %69 = vector.broadcast %68 : vector<32x8x1xf32> to vector<32x8x8xf32>
    %70 = arith.mulf %65, %69 : vector<32x8x8xf32>
    "tpu.trace_start"() <{level = 10 : i32, message = "bqk,bkd->bqd"}> : () -> ()
    %cst_14 = arith.constant dense<0.000000e+00> : vector<32x8x8xf32>
    %71 = tpu.matmul %70, %52, %cst_14 {dimension_numbers = #tpu.dot_dimension_numbers<[2], [1], [1], [2], [0, 0, 0, 1, 1, 2], [0], [0]>} : vector<32x8x8xf32>, vector<32x8x8xf32>, vector<32x8x8xf32> -> vector<32x8x8xf32>
    "tpu.trace_stop"() : () -> ()
    %72 = vector.shape_cast %71 : vector<32x8x8xf32> to vector<4x8x8x8xf32>
    %73 = vector.extract_strided_slice %72 {offsets = [0, 0, 0, 0], sizes = [1, 8, 8, 8], strides = [1, 1, 1, 1]} : vector<4x8x8x8xf32> to vector<1x8x8x8xf32>
    %74 = vector.shape_cast %73 : vector<1x8x8x8xf32> to vector<8x8x8xf32>
    %75 = vector.extract_strided_slice %72 {offsets = [1, 0, 0, 0], sizes = [1, 8, 8, 8], strides = [1, 1, 1, 1]} : vector<4x8x8x8xf32> to vector<1x8x8x8xf32>
    %76 = vector.shape_cast %75 : vector<1x8x8x8xf32> to vector<8x8x8xf32>
    %77 = vector.extract_strided_slice %72 {offsets = [2, 0, 0, 0], sizes = [1, 8, 8, 8], strides = [1, 1, 1, 1]} : vector<4x8x8x8xf32> to vector<1x8x8x8xf32>
    %78 = vector.shape_cast %77 : vector<1x8x8x8xf32> to vector<8x8x8xf32>
    %79 = vector.extract_strided_slice %72 {offsets = [3, 0, 0, 0], sizes = [1, 8, 8, 8], strides = [1, 1, 1, 1]} : vector<4x8x8x8xf32> to vector<1x8x8x8xf32>
    %80 = vector.shape_cast %79 : vector<1x8x8x8xf32> to vector<8x8x8xf32>
    %81 = tpu.concatenate %74, %76, %78, %80 in 2 : vector<8x8x8xf32>, vector<8x8x8xf32>, vector<8x8x8xf32>, vector<8x8x8xf32> -> vector<8x8x32xf32>
    %82 = vector.shape_cast %81 : vector<8x8x32xf32> to vector<64x32xf32>
    %c0_15 = arith.constant 0 : index
    %c0_16 = arith.constant 0 : index
    %83 = vector.load %arg4[%c0_15, %c0_16] : memref<32x32xf32, #tpu.memory_space<vmem>>, vector<32x32xf32>
    %cst_17 = arith.constant dense<0.000000e+00> : vector<64x32xf32>
    %84 = tpu.matmul %82, %83, %cst_17 {dimension_numbers = #tpu.dot_dimension_numbers<[1], [0], [0], [1], [0, 0, 1, 1], [], []>} : vector<64x32xf32>, vector<32x32xf32>, vector<64x32xf32> -> vector<64x32xf32>
    %85 = arith.addf %0, %84 : vector<64x32xf32>
    %cst_18 = arith.constant dense<0.000000e+00> : vector<64xf32>
    %86 = vector.multi_reduction <add>, %85, %cst_18 [1] : vector<64x32xf32> to vector<64xf32>
    %87 = vector.shape_cast %86 : vector<64xf32> to vector<64x1xf32>
    %cst_19 = arith.constant 3.200000e+01 : f32
    %88 = vector.broadcast %cst_19 : f32 to vector<64x1xf32>
    %89 = arith.divf %87, %88 : vector<64x1xf32>
    %90 = vector.broadcast %89 : vector<64x1xf32> to vector<64x32xf32>
    %91 = arith.subf %85, %90 : vector<64x32xf32>
    %92 = arith.mulf %91, %91 : vector<64x32xf32>
    %cst_20 = arith.constant dense<0.000000e+00> : vector<64xf32>
    %93 = vector.multi_reduction <add>, %92, %cst_20 [1] : vector<64x32xf32> to vector<64xf32>
    %94 = vector.shape_cast %93 : vector<64xf32> to vector<64x1xf32>
    %cst_21 = arith.constant 0.0322580636 : f32
    %95 = vector.broadcast %cst_21 : f32 to vector<64x1xf32>
    %96 = arith.mulf %94, %95 : vector<64x1xf32>
    %97 = math.sqrt %96 : vector<64x1xf32>
    %cst_22 = arith.constant 9.99999997E-7 : f32
    %98 = vector.broadcast %cst_22 : f32 to vector<64x1xf32>
    %99 = arith.addf %97, %98 : vector<64x1xf32>
    %100 = tpu.reciprocal %99 : vector<64x1xf32> -> vector<64x1xf32>
    %101 = vector.broadcast %89 : vector<64x1xf32> to vector<64x32xf32>
    %102 = arith.subf %85, %101 : vector<64x32xf32>
    %103 = vector.broadcast %100 : vector<64x1xf32> to vector<64x32xf32>
    %104 = arith.mulf %102, %103 : vector<64x32xf32>
    %c0_23 = arith.constant 0 : index
    %c0_24 = arith.constant 0 : index
    %105 = vector.load %arg5[%c0_23, %c0_24] : memref<32x64xf32, #tpu.memory_space<vmem>>, vector<32x64xf32>
    %cst_25 = arith.constant dense<0.000000e+00> : vector<64x64xf32>
    %106 = tpu.matmul %104, %105, %cst_25 {dimension_numbers = #tpu.dot_dimension_numbers<[1], [0], [0], [1], [0, 0, 1, 1], [], []>} : vector<64x32xf32>, vector<32x64xf32>, vector<64x64xf32> -> vector<64x64xf32>
    %c0_26 = arith.constant 0 : index
    %c0_27 = arith.constant 0 : index
    %107 = vector.load %arg6[%c0_26, %c0_27] : memref<1x64xf32, #tpu.memory_space<vmem>>, vector<1x64xf32>
    %108 = vector.broadcast %107 : vector<1x64xf32> to vector<64x64xf32>
    %109 = arith.addf %106, %108 : vector<64x64xf32>
    %cst_28 = arith.constant 0.000000e+00 : f32
    %110 = vector.broadcast %cst_28 : f32 to vector<64x64xf32>
    %111 = arith.maximumf %109, %110 : vector<64x64xf32>
    %c0_29 = arith.constant 0 : index
    %c0_30 = arith.constant 0 : index
    %112 = vector.load %arg7[%c0_29, %c0_30] : memref<64x32xf32, #tpu.memory_space<vmem>>, vector<64x32xf32>
    %cst_31 = arith.constant dense<0.000000e+00> : vector<64x32xf32>
    %113 = tpu.matmul %111, %112, %cst_31 {dimension_numbers = #tpu.dot_dimension_numbers<[1], [0], [0], [1], [0, 0, 1, 1], [], []>} : vector<64x64xf32>, vector<64x32xf32>, vector<64x32xf32> -> vector<64x32xf32>
    %c0_32 = arith.constant 0 : index
    %c0_33 = arith.constant 0 : index
    %114 = vector.load %arg8[%c0_32, %c0_33] : memref<1x32xf32, #tpu.memory_space<vmem>>, vector<1x32xf32>
    %115 = vector.broadcast %114 : vector<1x32xf32> to vector<64x32xf32>
    %116 = arith.addf %113, %115 : vector<64x32xf32>
    %117 = arith.addf %85, %116 : vector<64x32xf32>
    %c0_34 = arith.constant 0 : index
    %c0_35 = arith.constant 0 : index
    %118 = vector.load %arg9[%c0_34, %c0_35] : memref<64x32xf32, #tpu.memory_space<vmem>>, vector<64x32xf32>
    tpu.vector_store %arg9[%c0_34, %c0_35], %117 {strides = array<i32>} : memref<64x32xf32, #tpu.memory_space<vmem>>, vector<64x32xf32>,
    return
  }
  func.func @transform_0(%arg0: i32) -> (i32, i32) {
    %c0_i32 = arith.constant 0 : i32
    %c0_i32_0 = arith.constant 0 : i32
    return %arg0, %c0_i32 : i32, i32
  }
  func.func @transform_1(%arg0: i32) -> (i32, i32, i32) {
    %c0_i32 = arith.constant 0 : i32
    %c0_i32_0 = arith.constant 0 : i32
    %c0_i32_1 = arith.constant 0 : i32
    return %arg0, %c0_i32, %c0_i32_0 : i32, i32, i32
  }
  func.func @transform_2(%arg0: i32) -> (i32, i32) {
    %c0_i32 = arith.constant 0 : i32
    %c0_i32_0 = arith.constant 0 : i32
    %c0_i32_1 = arith.constant 0 : i32
    return %c0_i32, %c0_i32_0 : i32, i32
  }
  func.func @transform_3(%arg0: i32) -> (i32, i32) {
    %c0_i32 = arith.constant 0 : i32
    %c0_i32_0 = arith.constant 0 : i32
    %c0_i32_1 = arith.constant 0 : i32
    return %c0_i32, %c0_i32_0 : i32, i32
  }
  func.func @transform_4(%arg0: i32) -> (i32, i32) {
    %c0_i32 = arith.constant 0 : i32
    %c0_i32_0 = arith.constant 0 : i32
    %c0_i32_1 = arith.constant 0 : i32
    return %c0_i32, %c0_i32_0 : i32, i32
  }
  func.func @transform_5(%arg0: i32) -> (i32, i32) {
    %c0_i32 = arith.constant 0 : i32
    %c0_i32_0 = arith.constant 0 : i32
    %c0_i32_1 = arith.constant 0 : i32
    return %c0_i32, %c0_i32_0 : i32, i32
  }
  func.func @transform_6(%arg0: i32) -> (i32, i32) {
    %c0_i32 = arith.constant 0 : i32
    %c0_i32_0 = arith.constant 0 : i32
    %c0_i32_1 = arith.constant 0 : i32
    return %c0_i32, %c0_i32_0 : i32, i32
  }
  func.func @transform_7(%arg0: i32) -> (i32, i32) {
    %c0_i32 = arith.constant 0 : i32
    %c0_i32_0 = arith.constant 0 : i32
    %c0_i32_1 = arith.constant 0 : i32
    return %c0_i32, %c0_i32_0 : i32, i32
  }
  func.func @transform_8(%arg0: i32) -> (i32, i32) {
    %c0_i32 = arith.constant 0 : i32
    %c0_i32_0 = arith.constant 0 : i32
    return %arg0, %c0_i32 : i32, i32
  }
}

</mosaic_0001>

<llo_original>
// kernel: tpu_custom_call.1
$region0: #{tpu_custom_call.1}
  #allocation0 [shape = 'u32[]', space=smem, size = 0x4, offset = 0x4, fixed_abs, tag = 'smem constant byte address 0x4 - core index']
  #allocation1 [shape = 'u32[72,128]{1,0:T(1,128)}', space=vmem, size = 0x9000, scoped, tag = 'internal scratch']
  %s0 = inlined_call_operand.vmem [shape: f32[64,32], index: 0, kind: input, shape index: {}]
  %s1 = inlined_call_operand.vmem [shape: f32[8,1,8], index: 1, kind: input, shape index: {}]
  %s2 = inlined_call_operand.vmem [shape: f32[32,96], index: 2, kind: input, shape index: {}]
  %s3 = inlined_call_operand.vmem [shape: f32[32,32], index: 3, kind: input, shape index: {}]
  %s4 = inlined_call_operand.vmem [shape: f32[32,64], index: 4, kind: input, shape index: {}]
  %s5 = inlined_call_operand.vmem [shape: f32[1,64], index: 5, kind: input, shape index: {}]
  %s6 = inlined_call_operand.vmem [shape: f32[64,32], index: 6, kind: input, shape index: {}]
  %s7 = inlined_call_operand.vmem [shape: f32[1,32], index: 7, kind: input, shape index: {}]
  %s8 = inlined_call_operand.vmem [shape: f32[64,32], index: 8, kind: output, shape index: {}]
  %s9 = sld [smem:[#allocation0]]
  $region42: #{tpu_custom_call.1} parent=0
    _
  %s11 = ssub.s32 1, %s9
  %s12 = scalar_select 0, %s11, %s9
  // Predicated region
  $region2: #{tpu_custom_call.1} parent=0 // pred_check
    _
  $region3: #{tpu_custom_call.1} parent=0 // pred_check_branch
    %14 = sbr.rel (0) target = $region5
  $region4: #{tpu_custom_call.1} parent=0 // pred_region
    _
  $region5: #{tpu_custom_call.1} parent=0 // pred_fallthru
    _
  // Predicated region
  $region6: #{tpu_custom_call.1} parent=0 // pred_check
    _
  $region7: #{tpu_custom_call.1} parent=0 // pred_check_branch
    %16 = sbr.rel (0) target = $region9
  $region8: #{tpu_custom_call.1} parent=0 // pred_region
    _
  $region9: #{tpu_custom_call.1} parent=0 // pred_fallthru
    _
  // Predicated region
  $region10: #{tpu_custom_call.1} parent=0 // pred_check
    _
  $region11: #{tpu_custom_call.1} parent=0 // pred_check_branch
    %18 = sbr.rel (0) target = $region13
  $region12: #{tpu_custom_call.1} parent=0 // pred_region
    _
  $region13: #{tpu_custom_call.1} parent=0 // pred_fallthru
    _
  // Predicated region
  $region14: #{tpu_custom_call.1} parent=0 // pred_check
    _
  $region15: #{tpu_custom_call.1} parent=0 // pred_check_branch
    %20 = sbr.rel (0) target = $region17
  $region16: #{tpu_custom_call.1} parent=0 // pred_region
    _
  $region17: #{tpu_custom_call.1} parent=0 // pred_fallthru
    _
  // Predicated region
  $region18: #{tpu_custom_call.1} parent=0 // pred_check
    _
  $region19: #{tpu_custom_call.1} parent=0 // pred_check_branch
    %22 = sbr.rel (0) target = $region21
  $region20: #{tpu_custom_call.1} parent=0 // pred_region
    _
  $region21: #{tpu_custom_call.1} parent=0 // pred_fallthru
    _
  // Predicated region
  $region22: #{tpu_custom_call.1} parent=0 // pred_check
    _
  $region23: #{tpu_custom_call.1} parent=0 // pred_check_branch
    %24 = sbr.rel (0) target = $region25
  $region24: #{tpu_custom_call.1} parent=0 // pred_region
    _
  $region25: #{tpu_custom_call.1} parent=0 // pred_fallthru
    _
  // Predicated region
  $region26: #{tpu_custom_call.1} parent=0 // pred_check
    _
  $region27: #{tpu_custom_call.1} parent=0 // pred_check_branch
    %26 = sbr.rel (0) target = $region29
  $region28: #{tpu_custom_call.1} parent=0 // pred_region
    _
  $region29: #{tpu_custom_call.1} parent=0 // pred_fallthru
    _
  // Predicated region
  $region30: #{tpu_custom_call.1} parent=0 // pred_check
    _
  $region31: #{tpu_custom_call.1} parent=0 // pred_check_branch
    %28 = sbr.rel (0) target = $region33
  $region32: #{tpu_custom_call.1} parent=0 // pred_region
    _
  $region33: #{tpu_custom_call.1} parent=0 // pred_fallthru
    _
  %v29 = vld [vmem:[%s0] sm:$0xff]
  %v30 = vld [vmem:[%s0 + $0x8] sm:$0xff]
  %v31 = vld [vmem:[%s0 + $0x10] sm:$0xff]
  %v32 = vld [vmem:[%s0 + $0x18] sm:$0xff]
  %v33 = vld [vmem:[%s0 + $0x20] sm:$0xff]
  %v34 = vld [vmem:[%s0 + $0x28] sm:$0xff]
  %v35 = vld [vmem:[%s0 + $0x30] sm:$0xff]
  %v36 = vld [vmem:[%s0 + $0x38] sm:$0xff]
  %vm37 = vcmask 261120
  %v38 = vsel %vm37, %v29, 0.0
  %39 = vadd.xlane.f32.xlu0 %v38
  %v40 = vpop.xlane.xlu0 %39
  %v41 = vsel %vm37, %v30, 0.0
  %42 = vadd.xlane.f32.xlu0 %v41
  %v43 = vpop.xlane.xlu0 %42
  %v44 = vsel %vm37, %v31, 0.0
  %45 = vadd.xlane.f32.xlu0 %v44
  %v46 = vpop.xlane.xlu0 %45
  %v47 = vsel %vm37, %v32, 0.0
  %48 = vadd.xlane.f32.xlu0 %v47
  %v49 = vpop.xlane.xlu0 %48
  %v50 = vsel %vm37, %v33, 0.0
  %51 = vadd.xlane.f32.xlu0 %v50
  %v52 = vpop.xlane.xlu0 %51
  %v53 = vsel %vm37, %v34, 0.0
  %54 = vadd.xlane.f32.xlu0 %v53
  %v55 = vpop.xlane.xlu0 %54
  %v56 = vsel %vm37, %v35, 0.0
  %57 = vadd.xlane.f32.xlu0 %v56
  %v58 = vpop.xlane.xlu0 %57
  %v59 = vsel %vm37, %v36, 0.0
  %60 = vadd.xlane.f32.xlu0 %v59
  %v61 = vpop.xlane.xlu0 %60
  %v62 = vrcp.pop 32.0
  %v63 = vmul.f32 32.0, %v62
  %v64 = vsub.f32 1.0, %v63
  %v65 = vmul.f32 %v62, %v64
  %v66 = vadd.f32 %v62, %v65
  %vm67 = vweird.f32 %v62
  %v68 = vsel %vm67, %v62, %v66
  %v69 = vmul.f32 %v40, %v68
  %v70 = vmul.f32 %v43, %v68
  %v71 = vmul.f32 %v46, %v68
  %v72 = vmul.f32 %v49, %v68
  %v73 = vmul.f32 %v52, %v68
  %v74 = vmul.f32 %v55, %v68
  %v75 = vmul.f32 %v58, %v68
  %v76 = vmul.f32 %v61, %v68
  %v77 = vsub.f32 %v29, %v69
  %v78 = vsub.f32 %v30, %v70
  %v79 = vsub.f32 %v31, %v71
  %v80 = vsub.f32 %v32, %v72
  %v81 = vsub.f32 %v33, %v73
  %v82 = vsub.f32 %v34, %v74
  %v83 = vsub.f32 %v35, %v75
  %v84 = vsub.f32 %v36, %v76
  %v85 = vmul.f32 %v77, %v77
  %v86 = vmul.f32 %v78, %v78
  %v87 = vmul.f32 %v79, %v79
  %v88 = vmul.f32 %v80, %v80
  %v89 = vmul.f32 %v81, %v81
  %v90 = vmul.f32 %v82, %v82
  %v91 = vmul.f32 %v83, %v83
  %v92 = vmul.f32 %v84, %v84
  %v93 = vsel %vm37, %v85, 0.0
  %94 = vadd.xlane.f32.xlu0 %v93
  %v95 = vpop.xlane.xlu0 %94
  %v96 = vsel %vm37, %v86, 0.0
  %97 = vadd.xlane.f32.xlu0 %v96
  %v98 = vpop.xlane.xlu0 %97
  %v99 = vsel %vm37, %v87, 0.0
  %100 = vadd.xlane.f32.xlu0 %v99
  %v101 = vpop.xlane.xlu0 %100
  %v102 = vsel %vm37, %v88, 0.0
  %103 = vadd.xlane.f32.xlu0 %v102
  %v104 = vpop.xlane.xlu0 %103
  %v105 = vsel %vm37, %v89, 0.0
  %106 = vadd.xlane.f32.xlu0 %v105
  %v107 = vpop.xlane.xlu0 %106
  %v108 = vsel %vm37, %v90, 0.0
  %109 = vadd.xlane.f32.xlu0 %v108
  %v110 = vpop.xlane.xlu0 %109
  %v111 = vsel %vm37, %v91, 0.0
  %112 = vadd.xlane.f32.xlu0 %v111
  %v113 = vpop.xlane.xlu0 %112
  %v114 = vsel %vm37, %v92, 0.0
  %115 = vadd.xlane.f32.xlu0 %v114
  %v116 = vpop.xlane.xlu0 %115
  %v117 = vmul.f32 %v95, 0.032258064
  %v118 = vmul.f32 %v98, 0.032258064
  %v119 = vmul.f32 %v101, 0.032258064
  %v120 = vmul.f32 %v104, 0.032258064
  %v121 = vmul.f32 %v107, 0.032258064
  %v122 = vmul.f32 %v110, 0.032258064
  %v123 = vmul.f32 %v113, 0.032258064
  %v124 = vmul.f32 %v116, 0.032258064
  %v125 = vrsqrt.pop %v117
  %v126 = vmul.f32 %v125, %v117
  %v127 = vmul.f32 %v126, %v125
  %v128 = vmul.f32 0.5, %v127
  %v129 = vsub.f32 1.5, %v128
  %v130 = vmul.f32 %v125, %v129
  %v131 = vmul.f32 %v117, %v130
  %vm132 = vcmp.eq.f32.partialorder %v117, inf
  %v133 = vsel %vm132, %v117, %v131
  %vm134 = vcmp.eq.f32.partialorder %v117, 0.0
  %v135 = vand.u32 %v117, 2147483648
  %v136 = vsel %vm134, %v135, %v133
  %v137 = vrsqrt.pop %v118
  %v138 = vmul.f32 %v137, %v118
  %v139 = vmul.f32 %v138, %v137
  %v140 = vmul.f32 0.5, %v139
  %v141 = vsub.f32 1.5, %v140
  %v142 = vmul.f32 %v137, %v141
  %v143 = vmul.f32 %v118, %v142
  %vm144 = vcmp.eq.f32.partialorder %v118, inf
  %v145 = vsel %vm144, %v118, %v143
  %vm146 = vcmp.eq.f32.partialorder %v118, 0.0
  %v147 = vand.u32 %v118, 2147483648
  %v148 = vsel %vm146, %v147, %v145
  %v149 = vrsqrt.pop %v119
  %v150 = vmul.f32 %v149, %v119
  %v151 = vmul.f32 %v150, %v149
  %v152 = vmul.f32 0.5, %v151
  %v153 = vsub.f32 1.5, %v152
  %v154 = vmul.f32 %v149, %v153
  %v155 = vmul.f32 %v119, %v154
  %vm156 = vcmp.eq.f32.partialorder %v119, inf
  %v157 = vsel %vm156, %v119, %v155
  %vm158 = vcmp.eq.f32.partialorder %v119, 0.0
  %v159 = vand.u32 %v119, 2147483648
  %v160 = vsel %vm158, %v159, %v157
  %v161 = vrsqrt.pop %v120
  %v162 = vmul.f32 %v161, %v120
  %v163 = vmul.f32 %v162, %v161
  %v164 = vmul.f32 0.5, %v163
  %v165 = vsub.f32 1.5, %v164
  %v166 = vmul.f32 %v161, %v165
  %v167 = vmul.f32 %v120, %v166
  %vm168 = vcmp.eq.f32.partialorder %v120, inf
  %v169 = vsel %vm168, %v120, %v167
  %vm170 = vcmp.eq.f32.partialorder %v120, 0.0
  %v171 = vand.u32 %v120, 2147483648
  %v172 = vsel %vm170, %v171, %v169
  %v173 = vrsqrt.pop %v121
  %v174 = vmul.f32 %v173, %v121
  %v175 = vmul.f32 %v174, %v173
  %v176 = vmul.f32 0.5, %v175
  %v177 = vsub.f32 1.5, %v176
  %v178 = vmul.f32 %v173, %v177
  %v179 = vmul.f32 %v121, %v178
  %vm180 = vcmp.eq.f32.partialorder %v121, inf
  %v181 = vsel %vm180, %v121, %v179
  %vm182 = vcmp.eq.f32.partialorder %v121, 0.0
  %v183 = vand.u32 %v121, 2147483648
  %v184 = vsel %vm182, %v183, %v181
  %v185 = vrsqrt.pop %v122
  %v186 = vmul.f32 %v185, %v122
  %v187 = vmul.f32 %v186, %v185
  %v188 = vmul.f32 0.5, %v187
  %v189 = vsub.f32 1.5, %v188
  %v190 = vmul.f32 %v185, %v189
  %v191 = vmul.f32 %v122, %v190
  %vm192 = vcmp.eq.f32.partialorder %v122, inf
  %v193 = vsel %vm192, %v122, %v191
  %vm194 = vcmp.eq.f32.partialorder %v122, 0.0
  %v195 = vand.u32 %v122, 2147483648
  %v196 = vsel %vm194, %v195, %v193
  %v197 = vrsqrt.pop %v123
  %v198 = vmul.f32 %v197, %v123
  %v199 = vmul.f32 %v198, %v197
  %v200 = vmul.f32 0.5, %v199
  %v201 = vsub.f32 1.5, %v200
  %v202 = vmul.f32 %v197, %v201
  %v203 = vmul.f32 %v123, %v202
  %vm204 = vcmp.eq.f32.partialorder %v123, inf
  %v205 = vsel %vm204, %v123, %v203
  %vm206 = vcmp.eq.f32.partialorder %v123, 0.0
  %v207 = vand.u32 %v123, 2147483648
  %v208 = vsel %vm206, %v207, %v205
  %v209 = vrsqrt.pop %v124
  %v210 = vmul.f32 %v209, %v124
  %v211 = vmul.f32 %v210, %v209
  %v212 = vmul.f32 0.5, %v211
  %v213 = vsub.f32 1.5, %v212
  %v214 = vmul.f32 %v209, %v213
  %v215 = vmul.f32 %v124, %v214
  %vm216 = vcmp.eq.f32.partialorder %v124, inf
  %v217 = vsel %vm216, %v124, %v215
  %vm218 = vcmp.eq.f32.partialorder %v124, 0.0
  %v219 = vand.u32 %v124, 2147483648
  %v220 = vsel %vm218, %v219, %v217
  %v221 = vadd.f32 %v136, 1e-06
  %v222 = vadd.f32 %v148, 1e-06
  %v223 = vadd.f32 %v160, 1e-06
  %v224 = vadd.f32 %v172, 1e-06
  %v225 = vadd.f32 %v184, 1e-06
  %v226 = vadd.f32 %v196, 1e-06
  %v227 = vadd.f32 %v208, 1e-06
  %v228 = vadd.f32 %v220, 1e-06
  %v229 = vrcp.pop %v221
  %v230 = vmul.f32 %v221, %v229
  %v231 = vsub.f32 1.0, %v230
  %v232 = vmul.f32 %v229, %v231
  %v233 = vadd.f32 %v229, %v232
  %vm234 = vweird.f32 %v221
  %vm235 = vweird.f32 %v229
  %vm236 = vmor %vm234, %vm235
  %v237 = vsel %vm236, %v229, %v233
  %v238 = vand.u32 2147483647, %v221
  %vm239 = vcmp.eq.f32.partialorder %v238, 8.507059e+37
  %v240 = vand.u32 %v221, 2147483648
  %v241 = vor.u32 1.1754944e-38, %v240
  %v242 = vsel %vm239, %v241, %v237
  %v243 = vrcp.pop %v222
  %v244 = vmul.f32 %v222, %v243
  %v245 = vsub.f32 1.0, %v244
  %v246 = vmul.f32 %v243, %v245
  %v247 = vadd.f32 %v243, %v246
  %vm248 = vweird.f32 %v222
  %vm249 = vweird.f32 %v243
  %vm250 = vmor %vm248, %vm249
  %v251 = vsel %vm250, %v243, %v247
  %v252 = vand.u32 2147483647, %v222
  %vm253 = vcmp.eq.f32.partialorder %v252, 8.507059e+37
  %v254 = vand.u32 %v222, 2147483648
  %v255 = vor.u32 1.1754944e-38, %v254
  %v256 = vsel %vm253, %v255, %v251
  %v257 = vrcp.pop %v223
  %v258 = vmul.f32 %v223, %v257
  %v259 = vsub.f32 1.0, %v258
  %v260 = vmul.f32 %v257, %v259
  %v261 = vadd.f32 %v257, %v260
  %vm262 = vweird.f32 %v223
  %vm263 = vweird.f32 %v257
  %vm264 = vmor %vm262, %vm263
  %v265 = vsel %vm264, %v257, %v261
  %v266 = vand.u32 2147483647, %v223
  %vm267 = vcmp.eq.f32.partialorder %v266, 8.507059e+37
  %v268 = vand.u32 %v223, 2147483648
  %v269 = vor.u32 1.1754944e-38, %v268
  %v270 = vsel %vm267, %v269, %v265
  %v271 = vrcp.pop %v224
  %v272 = vmul.f32 %v224, %v271
  %v273 = vsub.f32 1.0, %v272
  %v274 = vmul.f32 %v271, %v273
  %v275 = vadd.f32 %v271, %v274
  %vm276 = vweird.f32 %v224
  %vm277 = vweird.f32 %v271
  %vm278 = vmor %vm276, %vm277
  %v279 = vsel %vm278, %v271, %v275
  %v280 = vand.u32 2147483647, %v224
  %vm281 = vcmp.eq.f32.partialorder %v280, 8.507059e+37
  %v282 = vand.u32 %v224, 2147483648
  %v283 = vor.u32 1.1754944e-38, %v282
  %v284 = vsel %vm281, %v283, %v279
  %v285 = vrcp.pop %v225
  %v286 = vmul.f32 %v225, %v285
  %v287 = vsub.f32 1.0, %v286
  %v288 = vmul.f32 %v285, %v287
  %v289 = vadd.f32 %v285, %v288
  %vm290 = vweird.f32 %v225
  %vm291 = vweird.f32 %v285
  %vm292 = vmor %vm290, %vm291
  %v293 = vsel %vm292, %v285, %v289
  %v294 = vand.u32 2147483647, %v225
  %vm295 = vcmp.eq.f32.partialorder %v294, 8.507059e+37
  %v296 = vand.u32 %v225, 2147483648
  %v297 = vor.u32 1.1754944e-38, %v296
  %v298 = vsel %vm295, %v297, %v293
  %v299 = vrcp.pop %v226
  %v300 = vmul.f32 %v226, %v299
  %v301 = vsub.f32 1.0, %v300
  %v302 = vmul.f32 %v299, %v301
  %v303 = vadd.f32 %v299, %v302
  %vm304 = vweird.f32 %v226
  %vm305 = vweird.f32 %v299
  %vm306 = vmor %vm304, %vm305
  %v307 = vsel %vm306, %v299, %v303
  %v308 = vand.u32 2147483647, %v226
  %vm309 = vcmp.eq.f32.partialorder %v308, 8.507059e+37
  %v310 = vand.u32 %v226, 2147483648
  %v311 = vor.u32 1.1754944e-38, %v310
  %v312 = vsel %vm309, %v311, %v307
  %v313 = vrcp.pop %v227
  %v314 = vmul.f32 %v227, %v313
  %v315 = vsub.f32 1.0, %v314
  %v316 = vmul.f32 %v313, %v315
  %v317 = vadd.f32 %v313, %v316
  %vm318 = vweird.f32 %v227
  %vm319 = vweird.f32 %v313
  %vm320 = vmor %vm318, %vm319
  %v321 = vsel %vm320, %v313, %v317
  %v322 = vand.u32 2147483647, %v227
  %vm323 = vcmp.eq.f32.partialorder %v322, 8.507059e+37
  %v324 = vand.u32 %v227, 2147483648
  %v325 = vor.u32 1.1754944e-38, %v324
  %v326 = vsel %vm323, %v325, %v321
  %v327 = vrcp.pop %v228
  %v328 = vmul.f32 %v228, %v327
  %v329 = vsub.f32 1.0, %v328
  %v330 = vmul.f32 %v327, %v329
  %v331 = vadd.f32 %v327, %v330
  %vm332 = vweird.f32 %v228
  %vm333 = vweird.f32 %v327
  %vm334 = vmor %vm332, %vm333
  %v335 = vsel %vm334, %v327, %v331
  %v336 = vand.u32 2147483647, %v228
  %vm337 = vcmp.eq.f32.partialorder %v336, 8.507059e+37
  %v338 = vand.u32 %v228, 2147483648
  %v339 = vor.u32 1.1754944e-38, %v338
  %v340 = vsel %vm337, %v339, %v335
  %v341 = vmul.f32 %v77, %v242
  %v342 = vmul.f32 %v78, %v256
  %v343 = vmul.f32 %v79, %v270
  %v344 = vmul.f32 %v80, %v284
  %v345 = vmul.f32 %v81, %v298
  %v346 = vmul.f32 %v82, %v312
  %v347 = vmul.f32 %v83, %v326
  %v348 = vmul.f32 %v84, %v340
  %v349 = vld [vmem:[%s2] sm:$0xff]
  %v350 = vld [vmem:[%s2 + $0x8] sm:$0xff]
  %v351 = vld [vmem:[%s2 + $0x10] sm:$0xff]
  %v352 = vld [vmem:[%s2 + $0x18] sm:$0xff]
  %v354 = vsel %vm37, %v341, 0
  %v357 = vsel %vm37, %v342, 0
  %v360 = vsel %vm37, %v343, 0
  %v363 = vsel %vm37, %v344, 0
  %v366 = vsel %vm37, %v345, 0
  %v369 = vsel %vm37, %v346, 0
  %v372 = vsel %vm37, %v347, 0
  %v375 = vsel %vm37, %v348, 0
  %377 = vmatpush.msra.mxu0 0.0
  %378 = vmatpush.msra.mxu0 0.0
  %379 = vmatpush.msra.mxu0 0.0
  %380 = vmatpush.msra.mxu0 0.0
  %381 = vmatpush.msra.mxu0 0.0
  %382 = vmatpush.msra.mxu0 0.0
  %383 = vmatpush.msra.mxu0 0.0
  %384 = vmatpush.msra.mxu0 0.0
  %385 = vmatpush.msra.mxu0 0.0
  %386 = vmatpush.msra.mxu0 0.0
  %387 = vmatpush.msra.mxu0 0.0
  %388 = vmatpush.msra.mxu0 0.0
  %389 = vmatpush.msra.mxu0 %v352
  %390 = vmatpush.msra.mxu0 %v351
  %391 = vmatpush.msra.mxu0 %v350
  %392 = vmatpush.msra.mxu0 %v349
  %393 = vmatmul.f32.gmra.mxu0 %v354
  %v394 = vpop.f32.mrf.mxu0
  %v395 = vadd.f32 0.0, %v394
  %396 = vmatmul.f32.gmra.mxu0 %v357
  %v397 = vpop.f32.mrf.mxu0
  %v398 = vadd.f32 0.0, %v397
  %399 = vmatmul.f32.gmra.mxu0 %v360
  %v400 = vpop.f32.mrf.mxu0
  %v401 = vadd.f32 0.0, %v400
  %402 = vmatmul.f32.gmra.mxu0 %v363
  %v403 = vpop.f32.mrf.mxu0
  %v404 = vadd.f32 0.0, %v403
  %405 = vmatmul.f32.gmra.mxu0 %v366
  %v406 = vpop.f32.mrf.mxu0
  %v407 = vadd.f32 0.0, %v406
  %408 = vmatmul.f32.gmra.mxu0 %v369
  %v409 = vpop.f32.mrf.mxu0
  %v410 = vadd.f32 0.0, %v409
  %411 = vmatmul.f32.gmra.mxu0 %v372
  %v412 = vpop.f32.mrf.mxu0
  %v413 = vadd.f32 0.0, %v412
  %414 = vmatmul.f32.gmra.mxu0 %v375
  %v415 = vpop.f32.mrf.mxu0
  %v416 = vadd.f32 0.0, %v415
  %417 = vdwg.mxu0
  %426 = vrot.lane.b32.xlu0 %v395, 120
  %v427 = vpop.permute.xlu0 %426
  %428 = vrot.lane.b32.xlu0 %v398, 120
  %v429 = vpop.permute.xlu0 %428
  %430 = vrot.lane.b32.xlu0 %v401, 120
  %v431 = vpop.permute.xlu0 %430
  %432 = vrot.lane.b32.xlu0 %v404, 120
  %v433 = vpop.permute.xlu0 %432
  %434 = vrot.lane.b32.xlu0 %v407, 120
  %v435 = vpop.permute.xlu0 %434
  %436 = vrot.lane.b32.xlu0 %v410, 120
  %v437 = vpop.permute.xlu0 %436
  %438 = vrot.lane.b32.xlu0 %v413, 120
  %v439 = vpop.permute.xlu0 %438
  %440 = vrot.lane.b32.xlu0 %v416, 120
  %v441 = vpop.permute.xlu0 %440
  %442 = vrot.lane.b32.xlu0 %v395, 112
  %v443 = vpop.permute.xlu0 %442
  %444 = vrot.lane.b32.xlu0 %v398, 112
  %v445 = vpop.permute.xlu0 %444
  %446 = vrot.lane.b32.xlu0 %v401, 112
  %v447 = vpop.permute.xlu0 %446
  %448 = vrot.lane.b32.xlu0 %v404, 112
  %v449 = vpop.permute.xlu0 %448
  %450 = vrot.lane.b32.xlu0 %v407, 112
  %v451 = vpop.permute.xlu0 %450
  %452 = vrot.lane.b32.xlu0 %v410, 112
  %v453 = vpop.permute.xlu0 %452
  %454 = vrot.lane.b32.xlu0 %v413, 112
  %v455 = vpop.permute.xlu0 %454
  %456 = vrot.lane.b32.xlu0 %v416, 112
  %v457 = vpop.permute.xlu0 %456
  %458 = vrot.lane.b32.xlu0 %v395, 104
  %v459 = vpop.permute.xlu0 %458
  %460 = vrot.lane.b32.xlu0 %v398, 104
  %v461 = vpop.permute.xlu0 %460
  %462 = vrot.lane.b32.xlu0 %v401, 104
  %v463 = vpop.permute.xlu0 %462
  %464 = vrot.lane.b32.xlu0 %v404, 104
  %v465 = vpop.permute.xlu0 %464
  %466 = vrot.lane.b32.xlu0 %v407, 104
  %v467 = vpop.permute.xlu0 %466
  %468 = vrot.lane.b32.xlu0 %v410, 104
  %v469 = vpop.permute.xlu0 %468
  %470 = vrot.lane.b32.xlu0 %v413, 104
  %v471 = vpop.permute.xlu0 %470
  %472 = vrot.lane.b32.xlu0 %v416, 104
  %v473 = vpop.permute.xlu0 %472
  %v474 = vld [vmem:[%s1] sm:$0x1]
  %v475 = vld [vmem:[%s1 + $0x1] sm:$0x1]
  %v476 = vld [vmem:[%s1 + $0x2] sm:$0x1]
  %v477 = vld [vmem:[%s1 + $0x3] sm:$0x1]
  %v478 = vld [vmem:[%s1 + $0x4] sm:$0x1]
  %v479 = vld [vmem:[%s1 + $0x5] sm:$0x1]
  %v480 = vld [vmem:[%s1 + $0x6] sm:$0x1]
  %v481 = vld [vmem:[%s1 + $0x7] sm:$0x1]
  %v490 = vperm.slane %v474, 0
  %v491 = vperm.slane %v475, 0
  %v492 = vperm.slane %v476, 0
  %v493 = vperm.slane %v477, 0
  %v494 = vperm.slane %v478, 0
  %v495 = vperm.slane %v479, 0
  %v496 = vperm.slane %v480, 0
  %v497 = vperm.slane %v481, 0
  %506 = vrot.lane.b32.xlu0 %v395, 96
  %v507 = vpop.permute.xlu0 %506
  %vm508 = vcmask 64512
  %v509 = vsel %vm508, %v395, 0
  %v511 = vsel %vm508, %v507, 0
  %513 = vmatpush.xpose.msra.mxu0 0.0
  %514 = vmatpush.xpose.msra.mxu0 0.0
  %515 = vmatpush.xpose.msra.mxu0 0.0
  %516 = vmatpush.xpose.msra.mxu0 0.0
  %517 = vmatpush.xpose.msra.mxu0 0.0
  %518 = vmatpush.xpose.msra.mxu0 0.0
  %519 = vmatpush.xpose.msra.mxu0 0.0
  %520 = vmatpush.xpose.msra.mxu0 0.0
  %521 = vmatpush.xpose.msra.mxu0 0.0
  %522 = vmatpush.xpose.msra.mxu0 0.0
  %523 = vmatpush.xpose.msra.mxu0 0.0
  %524 = vmatpush.xpose.msra.mxu0 0.0
  %525 = vmatpush.xpose.msra.mxu0 0.0
  %526 = vmatpush.xpose.msra.mxu0 0.0
  %527 = vmatpush.xpose.msra.mxu0 0.0
  %528 = vmatpush.xpose.msra.mxu0 %v511
  %529 = vmatmul.f32.gmra.mxu0 %v509
  %v530 = vpop.f32.mrf.mxu0
  %v531 = vadd.f32 %v490, %v530
  %532 = vdwg.mxu0
  %533 = vrot.lane.b32.xlu0 %v398, 96
  %v534 = vpop.permute.xlu0 %533
  %v535 = vsel %vm508, %v398, 0
  %v537 = vsel %vm508, %v534, 0
  %539 = vmatpush.xpose.msra.mxu0 0.0
  %540 = vmatpush.xpose.msra.mxu0 0.0
  %541 = vmatpush.xpose.msra.mxu0 0.0
  %542 = vmatpush.xpose.msra.mxu0 0.0
  %543 = vmatpush.xpose.msra.mxu0 0.0
  %544 = vmatpush.xpose.msra.mxu0 0.0
  %545 = vmatpush.xpose.msra.mxu0 0.0
  %546 = vmatpush.xpose.msra.mxu0 0.0
  %547 = vmatpush.xpose.msra.mxu0 0.0
  %548 = vmatpush.xpose.msra.mxu0 0.0
  %549 = vmatpush.xpose.msra.mxu0 0.0
  %550 = vmatpush.xpose.msra.mxu0 0.0
  %551 = vmatpush.xpose.msra.mxu0 0.0
  %552 = vmatpush.xpose.msra.mxu0 0.0
  %553 = vmatpush.xpose.msra.mxu0 0.0
  %554 = vmatpush.xpose.msra.mxu0 %v537
  %555 = vmatmul.f32.gmra.mxu0 %v535
  %v556 = vpop.f32.mrf.mxu0
  %v557 = vadd.f32 %v491, %v556
  %558 = vdwg.mxu0
  %559 = vrot.lane.b32.xlu0 %v401, 96
  %v560 = vpop.permute.xlu0 %559
  %v561 = vsel %vm508, %v401, 0
  %v563 = vsel %vm508, %v560, 0
  %565 = vmatpush.xpose.msra.mxu0 0.0
  %566 = vmatpush.xpose.msra.mxu0 0.0
  %567 = vmatpush.xpose.msra.mxu0 0.0
  %568 = vmatpush.xpose.msra.mxu0 0.0
  %569 = vmatpush.xpose.msra.mxu0 0.0
  %570 = vmatpush.xpose.msra.mxu0 0.0
  %571 = vmatpush.xpose.msra.mxu0 0.0
  %572 = vmatpush.xpose.msra.mxu0 0.0
  %573 = vmatpush.xpose.msra.mxu0 0.0
  %574 = vmatpush.xpose.msra.mxu0 0.0
  %575 = vmatpush.xpose.msra.mxu0 0.0
  %576 = vmatpush.xpose.msra.mxu0 0.0
  %577 = vmatpush.xpose.msra.mxu0 0.0
  %578 = vmatpush.xpose.msra.mxu0 0.0
  %579 = vmatpush.xpose.msra.mxu0 0.0
  %580 = vmatpush.xpose.msra.mxu0 %v563
  %581 = vmatmul.f32.gmra.mxu0 %v561
  %v582 = vpop.f32.mrf.mxu0
  %v583 = vadd.f32 %v492, %v582
  %584 = vdwg.mxu0
  %585 = vrot.lane.b32.xlu0 %v404, 96
  %v586 = vpop.permute.xlu0 %585
  %v587 = vsel %vm508, %v404, 0
  %v589 = vsel %vm508, %v586, 0
  %591 = vmatpush.xpose.msra.mxu0 0.0
  %592 = vmatpush.xpose.msra.mxu0 0.0
  %593 = vmatpush.xpose.msra.mxu0 0.0
  %594 = vmatpush.xpose.msra.mxu0 0.0
  %595 = vmatpush.xpose.msra.mxu0 0.0
  %596 = vmatpush.xpose.msra.mxu0 0.0
  %597 = vmatpush.xpose.msra.mxu0 0.0
  %598 = vmatpush.xpose.msra.mxu0 0.0
  %599 = vmatpush.xpose.msra.mxu0 0.0
  %600 = vmatpush.xpose.msra.mxu0 0.0
  %601 = vmatpush.xpose.msra.mxu0 0.0
  %602 = vmatpush.xpose.msra.mxu0 0.0
  %603 = vmatpush.xpose.msra.mxu0 0.0
  %604 = vmatpush.xpose.msra.mxu0 0.0
  %605 = vmatpush.xpose.msra.mxu0 0.0
  %606 = vmatpush.xpose.msra.mxu0 %v589
  %607 = vmatmul.f32.gmra.mxu0 %v587
  %v608 = vpop.f32.mrf.mxu0
  %v609 = vadd.f32 %v493, %v608
  %610 = vdwg.mxu0
  %611 = vrot.lane.b32.xlu0 %v407, 96
  %v612 = vpop.permute.xlu0 %611
  %v613 = vsel %vm508, %v407, 0
  %v615 = vsel %vm508, %v612, 0
  %617 = vmatpush.xpose.msra.mxu0 0.0
  %618 = vmatpush.xpose.msra.mxu0 0.0
  %619 = vmatpush.xpose.msra.mxu0 0.0
  %620 = vmatpush.xpose.msra.mxu0 0.0
  %621 = vmatpush.xpose.msra.mxu0 0.0
  %622 = vmatpush.xpose.msra.mxu0 0.0
  %623 = vmatpush.xpose.msra.mxu0 0.0
  %624 = vmatpush.xpose.msra.mxu0 0.0
  %625 = vmatpush.xpose.msra.mxu0 0.0
  %626 = vmatpush.xpose.msra.mxu0 0.0
  %627 = vmatpush.xpose.msra.mxu0 0.0
  %628 = vmatpush.xpose.msra.mxu0 0.0
  %629 = vmatpush.xpose.msra.mxu0 0.0
  %630 = vmatpush.xpose.msra.mxu0 0.0
  %631 = vmatpush.xpose.msra.mxu0 0.0
  %632 = vmatpush.xpose.msra.mxu0 %v615
  %633 = vmatmul.f32.gmra.mxu0 %v613
  %v634 = vpop.f32.mrf.mxu0
  %v635 = vadd.f32 %v494, %v634
  %636 = vdwg.mxu0
  %637 = vrot.lane.b32.xlu0 %v410, 96
  %v638 = vpop.permute.xlu0 %637
  %v639 = vsel %vm508, %v410, 0
  %v641 = vsel %vm508, %v638, 0
  %643 = vmatpush.xpose.msra.mxu0 0.0
  %644 = vmatpush.xpose.msra.mxu0 0.0
  %645 = vmatpush.xpose.msra.mxu0 0.0
  %646 = vmatpush.xpose.msra.mxu0 0.0
  %647 = vmatpush.xpose.msra.mxu0 0.0
  %648 = vmatpush.xpose.msra.mxu0 0.0
  %649 = vmatpush.xpose.msra.mxu0 0.0
  %650 = vmatpush.xpose.msra.mxu0 0.0
  %651 = vmatpush.xpose.msra.mxu0 0.0
  %652 = vmatpush.xpose.msra.mxu0 0.0
  %653 = vmatpush.xpose.msra.mxu0 0.0
  %654 = vmatpush.xpose.msra.mxu0 0.0
  %655 = vmatpush.xpose.msra.mxu0 0.0
  %656 = vmatpush.xpose.msra.mxu0 0.0
  %657 = vmatpush.xpose.msra.mxu0 0.0
  %658 = vmatpush.xpose.msra.mxu0 %v641
  %659 = vmatmul.f32.gmra.mxu0 %v639
  %v660 = vpop.f32.mrf.mxu0
  %v661 = vadd.f32 %v495, %v660
  %662 = vdwg.mxu0
  %663 = vrot.lane.b32.xlu0 %v413, 96
  %v664 = vpop.permute.xlu0 %663
  %v665 = vsel %vm508, %v413, 0
  %v667 = vsel %vm508, %v664, 0
  %669 = vmatpush.xpose.msra.mxu0 0.0
  %670 = vmatpush.xpose.msra.mxu0 0.0
  %671 = vmatpush.xpose.msra.mxu0 0.0
  %672 = vmatpush.xpose.msra.mxu0 0.0
  %673 = vmatpush.xpose.msra.mxu0 0.0
  %674 = vmatpush.xpose.msra.mxu0 0.0
  %675 = vmatpush.xpose.msra.mxu0 0.0
  %676 = vmatpush.xpose.msra.mxu0 0.0
  %677 = vmatpush.xpose.msra.mxu0 0.0
  %678 = vmatpush.xpose.msra.mxu0 0.0
  %679 = vmatpush.xpose.msra.mxu0 0.0
  %680 = vmatpush.xpose.msra.mxu0 0.0
  %681 = vmatpush.xpose.msra.mxu0 0.0
  %682 = vmatpush.xpose.msra.mxu0 0.0
  %683 = vmatpush.xpose.msra.mxu0 0.0
  %684 = vmatpush.xpose.msra.mxu0 %v667
  %685 = vmatmul.f32.gmra.mxu0 %v665
  %v686 = vpop.f32.mrf.mxu0
  %v687 = vadd.f32 %v496, %v686
  %688 = vdwg.mxu0
  %689 = vrot.lane.b32.xlu0 %v416, 96
  %v690 = vpop.permute.xlu0 %689
  %v691 = vsel %vm508, %v416, 0
  %v693 = vsel %vm508, %v690, 0
  %695 = vmatpush.xpose.msra.mxu0 0.0
  %696 = vmatpush.xpose.msra.mxu0 0.0
  %697 = vmatpush.xpose.msra.mxu0 0.0
  %698 = vmatpush.xpose.msra.mxu0 0.0
  %699 = vmatpush.xpose.msra.mxu0 0.0
  %700 = vmatpush.xpose.msra.mxu0 0.0
  %701 = vmatpush.xpose.msra.mxu0 0.0
  %702 = vmatpush.xpose.msra.mxu0 0.0
  %703 = vmatpush.xpose.msra.mxu0 0.0
  %704 = vmatpush.xpose.msra.mxu0 0.0
  %705 = vmatpush.xpose.msra.mxu0 0.0
  %706 = vmatpush.xpose.msra.mxu0 0.0
  %707 = vmatpush.xpose.msra.mxu0 0.0
  %708 = vmatpush.xpose.msra.mxu0 0.0
  %709 = vmatpush.xpose.msra.mxu0 0.0
  %710 = vmatpush.xpose.msra.mxu0 %v693
  %711 = vmatmul.f32.gmra.mxu0 %v691
  %v712 = vpop.f32.mrf.mxu0
  %v713 = vadd.f32 %v497, %v712
  %714 = vdwg.mxu0
  %715 = vrot.lane.b32.xlu0 %v427, 96
  %v716 = vpop.permute.xlu0 %715
  %v717 = vsel %vm508, %v427, 0
  %v719 = vsel %vm508, %v716, 0
  %721 = vmatpush.xpose.msra.mxu0 0.0
  %722 = vmatpush.xpose.msra.mxu0 0.0
  %723 = vmatpush.xpose.msra.mxu0 0.0
  %724 = vmatpush.xpose.msra.mxu0 0.0
  %725 = vmatpush.xpose.msra.mxu0 0.0
  %726 = vmatpush.xpose.msra.mxu0 0.0
  %727 = vmatpush.xpose.msra.mxu0 0.0
  %728 = vmatpush.xpose.msra.mxu0 0.0
  %729 = vmatpush.xpose.msra.mxu0 0.0
  %730 = vmatpush.xpose.msra.mxu0 0.0
  %731 = vmatpush.xpose.msra.mxu0 0.0
  %732 = vmatpush.xpose.msra.mxu0 0.0
  %733 = vmatpush.xpose.msra.mxu0 0.0
  %734 = vmatpush.xpose.msra.mxu0 0.0
  %735 = vmatpush.xpose.msra.mxu0 0.0
  %736 = vmatpush.xpose.msra.mxu0 %v719
  %737 = vmatmul.f32.gmra.mxu0 %v717
  %v738 = vpop.f32.mrf.mxu0
  %v739 = vadd.f32 %v490, %v738
  %740 = vdwg.mxu0
  %741 = vrot.lane.b32.xlu0 %v429, 96
  %v742 = vpop.permute.xlu0 %741
  %v743 = vsel %vm508, %v429, 0
  %v745 = vsel %vm508, %v742, 0
  %747 = vmatpush.xpose.msra.mxu0 0.0
  %748 = vmatpush.xpose.msra.mxu0 0.0
  %749 = vmatpush.xpose.msra.mxu0 0.0
  %750 = vmatpush.xpose.msra.mxu0 0.0
  %751 = vmatpush.xpose.msra.mxu0 0.0
  %752 = vmatpush.xpose.msra.mxu0 0.0
  %753 = vmatpush.xpose.msra.mxu0 0.0
  %754 = vmatpush.xpose.msra.mxu0 0.0
  %755 = vmatpush.xpose.msra.mxu0 0.0
  %756 = vmatpush.xpose.msra.mxu0 0.0
  %757 = vmatpush.xpose.msra.mxu0 0.0
  %758 = vmatpush.xpose.msra.mxu0 0.0
  %759 = vmatpush.xpose.msra.mxu0 0.0
  %760 = vmatpush.xpose.msra.mxu0 0.0
  %761 = vmatpush.xpose.msra.mxu0 0.0
  %762 = vmatpush.xpose.msra.mxu0 %v745
  %763 = vmatmul.f32.gmra.mxu0 %v743
  %v764 = vpop.f32.mrf.mxu0
  %v765 = vadd.f32 %v491, %v764
  %766 = vdwg.mxu0
  %767 = vrot.lane.b32.xlu0 %v431, 96
  %v768 = vpop.permute.xlu0 %767
  %v769 = vsel %vm508, %v431, 0
  %v771 = vsel %vm508, %v768, 0
  %773 = vmatpush.xpose.msra.mxu0 0.0
  %774 = vmatpush.xpose.msra.mxu0 0.0
  %775 = vmatpush.xpose.msra.mxu0 0.0
  %776 = vmatpush.xpose.msra.mxu0 0.0
  %777 = vmatpush.xpose.msra.mxu0 0.0
  %778 = vmatpush.xpose.msra.mxu0 0.0
  %779 = vmatpush.xpose.msra.mxu0 0.0
  %780 = vmatpush.xpose.msra.mxu0 0.0
  %781 = vmatpush.xpose.msra.mxu0 0.0
  %782 = vmatpush.xpose.msra.mxu0 0.0
  %783 = vmatpush.xpose.msra.mxu0 0.0
  %784 = vmatpush.xpose.msra.mxu0 0.0
  %785 = vmatpush.xpose.msra.mxu0 0.0
  %786 = vmatpush.xpose.msra.mxu0 0.0
  %787 = vmatpush.xpose.msra.mxu0 0.0
  %788 = vmatpush.xpose.msra.mxu0 %v771
  %789 = vmatmul.f32.gmra.mxu0 %v769
  %v790 = vpop.f32.mrf.mxu0
  %v791 = vadd.f32 %v492, %v790
  %792 = vdwg.mxu0
  %793 = vrot.lane.b32.xlu0 %v433, 96
  %v794 = vpop.permute.xlu0 %793
  %v795 = vsel %vm508, %v433, 0
  %v797 = vsel %vm508, %v794, 0
  %799 = vmatpush.xpose.msra.mxu0 0.0
  %800 = vmatpush.xpose.msra.mxu0 0.0
  %801 = vmatpush.xpose.msra.mxu0 0.0
  %802 = vmatpush.xpose.msra.mxu0 0.0
  %803 = vmatpush.xpose.msra.mxu0 0.0
  %804 = vmatpush.xpose.msra.mxu0 0.0
  %805 = vmatpush.xpose.msra.mxu0 0.0
  %806 = vmatpush.xpose.msra.mxu0 0.0
  %807 = vmatpush.xpose.msra.mxu0 0.0
  %808 = vmatpush.xpose.msra.mxu0 0.0
  %809 = vmatpush.xpose.msra.mxu0 0.0
  %810 = vmatpush.xpose.msra.mxu0 0.0
  %811 = vmatpush.xpose.msra.mxu0 0.0
  %812 = vmatpush.xpose.msra.mxu0 0.0
  %813 = vmatpush.xpose.msra.mxu0 0.0
  %814 = vmatpush.xpose.msra.mxu0 %v797
  %815 = vmatmul.f32.gmra.mxu0 %v795
  %v816 = vpop.f32.mrf.mxu0
  %v817 = vadd.f32 %v493, %v816
  %818 = vdwg.mxu0
  %819 = vrot.lane.b32.xlu0 %v435, 96
  %v820 = vpop.permute.xlu0 %819
  %v821 = vsel %vm508, %v435, 0
  %v823 = vsel %vm508, %v820, 0
  %825 = vmatpush.xpose.msra.mxu0 0.0
  %826 = vmatpush.xpose.msra.mxu0 0.0
  %827 = vmatpush.xpose.msra.mxu0 0.0
  %828 = vmatpush.xpose.msra.mxu0 0.0
  %829 = vmatpush.xpose.msra.mxu0 0.0
  %830 = vmatpush.xpose.msra.mxu0 0.0
  %831 = vmatpush.xpose.msra.mxu0 0.0
  %832 = vmatpush.xpose.msra.mxu0 0.0
  %833 = vmatpush.xpose.msra.mxu0 0.0
  %834 = vmatpush.xpose.msra.mxu0 0.0
  %835 = vmatpush.xpose.msra.mxu0 0.0
  %836 = vmatpush.xpose.msra.mxu0 0.0
  %837 = vmatpush.xpose.msra.mxu0 0.0
  %838 = vmatpush.xpose.msra.mxu0 0.0
  %839 = vmatpush.xpose.msra.mxu0 0.0
  %840 = vmatpush.xpose.msra.mxu0 %v823
  %841 = vmatmul.f32.gmra.mxu0 %v821
  %v842 = vpop.f32.mrf.mxu0
  %v843 = vadd.f32 %v494, %v842
  %844 = vdwg.mxu0
  %845 = vrot.lane.b32.xlu0 %v437, 96
  %v846 = vpop.permute.xlu0 %845
  %v847 = vsel %vm508, %v437, 0
  %v849 = vsel %vm508, %v846, 0
  %851 = vmatpush.xpose.msra.mxu0 0.0
  %852 = vmatpush.xpose.msra.mxu0 0.0
  %853 = vmatpush.xpose.msra.mxu0 0.0
  %854 = vmatpush.xpose.msra.mxu0 0.0
  %855 = vmatpush.xpose.msra.mxu0 0.0
  %856 = vmatpush.xpose.msra.mxu0 0.0
  %857 = vmatpush.xpose.msra.mxu0 0.0
  %858 = vmatpush.xpose.msra.mxu0 0.0
  %859 = vmatpush.xpose.msra.mxu0 0.0
  %860 = vmatpush.xpose.msra.mxu0 0.0
  %861 = vmatpush.xpose.msra.mxu0 0.0
  %862 = vmatpush.xpose.msra.mxu0 0.0
  %863 = vmatpush.xpose.msra.mxu0 0.0
  %864 = vmatpush.xpose.msra.mxu0 0.0
  %865 = vmatpush.xpose.msra.mxu0 0.0
  %866 = vmatpush.xpose.msra.mxu0 %v849
  %867 = vmatmul.f32.gmra.mxu0 %v847
  %v868 = vpop.f32.mrf.mxu0
  %v869 = vadd.f32 %v495, %v868
  %870 = vdwg.mxu0
  %871 = vrot.lane.b32.xlu0 %v439, 96
  %v872 = vpop.permute.xlu0 %871
  %v873 = vsel %vm508, %v439, 0
  %v875 = vsel %vm508, %v872, 0
  %877 = vmatpush.xpose.msra.mxu0 0.0
  %878 = vmatpush.xpose.msra.mxu0 0.0
  %879 = vmatpush.xpose.msra.mxu0 0.0
  %880 = vmatpush.xpose.msra.mxu0 0.0
  %881 = vmatpush.xpose.msra.mxu0 0.0
  %882 = vmatpush.xpose.msra.mxu0 0.0
  %883 = vmatpush.xpose.msra.mxu0 0.0
  %884 = vmatpush.xpose.msra.mxu0 0.0
  %885 = vmatpush.xpose.msra.mxu0 0.0
  %886 = vmatpush.xpose.msra.mxu0 0.0
  %887 = vmatpush.xpose.msra.mxu0 0.0
  %888 = vmatpush.xpose.msra.mxu0 0.0
  %889 = vmatpush.xpose.msra.mxu0 0.0
  %890 = vmatpush.xpose.msra.mxu0 0.0
  %891 = vmatpush.xpose.msra.mxu0 0.0
  %892 = vmatpush.xpose.msra.mxu0 %v875
  %893 = vmatmul.f32.gmra.mxu0 %v873
  %v894 = vpop.f32.mrf.mxu0
  %v895 = vadd.f32 %v496, %v894
  %896 = vdwg.mxu0
  %897 = vrot.lane.b32.xlu0 %v441, 96
  %v898 = vpop.permute.xlu0 %897
  %v899 = vsel %vm508, %v441, 0
  %v901 = vsel %vm508, %v898, 0
  %903 = vmatpush.xpose.msra.mxu0 0.0
  %904 = vmatpush.xpose.msra.mxu0 0.0
  %905 = vmatpush.xpose.msra.mxu0 0.0
  %906 = vmatpush.xpose.msra.mxu0 0.0
  %907 = vmatpush.xpose.msra.mxu0 0.0
  %908 = vmatpush.xpose.msra.mxu0 0.0
  %909 = vmatpush.xpose.msra.mxu0 0.0
  %910 = vmatpush.xpose.msra.mxu0 0.0
  %911 = vmatpush.xpose.msra.mxu0 0.0
  %912 = vmatpush.xpose.msra.mxu0 0.0
  %913 = vmatpush.xpose.msra.mxu0 0.0
  %914 = vmatpush.xpose.msra.mxu0 0.0
  %915 = vmatpush.xpose.msra.mxu0 0.0
  %916 = vmatpush.xpose.msra.mxu0 0.0
  %917 = vmatpush.xpose.msra.mxu0 0.0
  %918 = vmatpush.xpose.msra.mxu0 %v901
  %919 = vmatmul.f32.gmra.mxu0 %v899
  %v920 = vpop.f32.mrf.mxu0
  %v921 = vadd.f32 %v497, %v920
  %922 = vdwg.mxu0
  %923 = vrot.lane.b32.xlu0 %v443, 96
  %v924 = vpop.permute.xlu0 %923
  %v925 = vsel %vm508, %v443, 0
  %v927 = vsel %vm508, %v924, 0
  %929 = vmatpush.xpose.msra.mxu0 0.0
  %930 = vmatpush.xpose.msra.mxu0 0.0
  %931 = vmatpush.xpose.msra.mxu0 0.0
  %932 = vmatpush.xpose.msra.mxu0 0.0
  %933 = vmatpush.xpose.msra.mxu0 0.0
  %934 = vmatpush.xpose.msra.mxu0 0.0
  %935 = vmatpush.xpose.msra.mxu0 0.0
  %936 = vmatpush.xpose.msra.mxu0 0.0
  %937 = vmatpush.xpose.msra.mxu0 0.0
  %938 = vmatpush.xpose.msra.mxu0 0.0
  %939 = vmatpush.xpose.msra.mxu0 0.0
  %940 = vmatpush.xpose.msra.mxu0 0.0
  %941 = vmatpush.xpose.msra.mxu0 0.0
  %942 = vmatpush.xpose.msra.mxu0 0.0
  %943 = vmatpush.xpose.msra.mxu0 0.0
  %944 = vmatpush.xpose.msra.mxu0 %v927
  %945 = vmatmul.f32.gmra.mxu0 %v925
  %v946 = vpop.f32.mrf.mxu0
  %v947 = vadd.f32 %v490, %v946
  %948 = vdwg.mxu0
  %949 = vrot.lane.b32.xlu0 %v445, 96
  %v950 = vpop.permute.xlu0 %949
  %v951 = vsel %vm508, %v445, 0
  %v953 = vsel %vm508, %v950, 0
  %955 = vmatpush.xpose.msra.mxu0 0.0
  %956 = vmatpush.xpose.msra.mxu0 0.0
  %957 = vmatpush.xpose.msra.mxu0 0.0
  %958 = vmatpush.xpose.msra.mxu0 0.0
  %959 = vmatpush.xpose.msra.mxu0 0.0
  %960 = vmatpush.xpose.msra.mxu0 0.0
  %961 = vmatpush.xpose.msra.mxu0 0.0
  %962 = vmatpush.xpose.msra.mxu0 0.0
  %963 = vmatpush.xpose.msra.mxu0 0.0
  %964 = vmatpush.xpose.msra.mxu0 0.0
  %965 = vmatpush.xpose.msra.mxu0 0.0
  %966 = vmatpush.xpose.msra.mxu0 0.0
  %967 = vmatpush.xpose.msra.mxu0 0.0
  %968 = vmatpush.xpose.msra.mxu0 0.0
  %969 = vmatpush.xpose.msra.mxu0 0.0
  %970 = vmatpush.xpose.msra.mxu0 %v953
  %971 = vmatmul.f32.gmra.mxu0 %v951
  %v972 = vpop.f32.mrf.mxu0
  %v973 = vadd.f32 %v491, %v972
  %974 = vdwg.mxu0
  %975 = vrot.lane.b32.xlu0 %v447, 96
  %v976 = vpop.permute.xlu0 %975
  %v977 = vsel %vm508, %v447, 0
  %v979 = vsel %vm508, %v976, 0
  %981 = vmatpush.xpose.msra.mxu0 0.0
  %982 = vmatpush.xpose.msra.mxu0 0.0
  %983 = vmatpush.xpose.msra.mxu0 0.0
  %984 = vmatpush.xpose.msra.mxu0 0.0
  %985 = vmatpush.xpose.msra.mxu0 0.0
  %986 = vmatpush.xpose.msra.mxu0 0.0
  %987 = vmatpush.xpose.msra.mxu0 0.0
  %988 = vmatpush.xpose.msra.mxu0 0.0
  %989 = vmatpush.xpose.msra.mxu0 0.0
  %990 = vmatpush.xpose.msra.mxu0 0.0
  %991 = vmatpush.xpose.msra.mxu0 0.0
  %992 = vmatpush.xpose.msra.mxu0 0.0
  %993 = vmatpush.xpose.msra.mxu0 0.0
  %994 = vmatpush.xpose.msra.mxu0 0.0
  %995 = vmatpush.xpose.msra.mxu0 0.0
  %996 = vmatpush.xpose.msra.mxu0 %v979
  %997 = vmatmul.f32.gmra.mxu0 %v977
  %v998 = vpop.f32.mrf.mxu0
  %v999 = vadd.f32 %v492, %v998
  %1000 = vdwg.mxu0
  %1001 = vrot.lane.b32.xlu0 %v449, 96
  %v1002 = vpop.permute.xlu0 %1001
  %v1003 = vsel %vm508, %v449, 0
  %v1005 = vsel %vm508, %v1002, 0
  %1007 = vmatpush.xpose.msra.mxu0 0.0
  %1008 = vmatpush.xpose.msra.mxu0 0.0
  %1009 = vmatpush.xpose.msra.mxu0 0.0
  %1010 = vmatpush.xpose.msra.mxu0 0.0
  %1011 = vmatpush.xpose.msra.mxu0 0.0
  %1012 = vmatpush.xpose.msra.mxu0 0.0
  %1013 = vmatpush.xpose.msra.mxu0 0.0
  %1014 = vmatpush.xpose.msra.mxu0 0.0
  %1015 = vmatpush.xpose.msra.mxu0 0.0
  %1016 = vmatpush.xpose.msra.mxu0 0.0
  %1017 = vmatpush.xpose.msra.mxu0 0.0
  %1018 = vmatpush.xpose.msra.mxu0 0.0
  %1019 = vmatpush.xpose.msra.mxu0 0.0
  %1020 = vmatpush.xpose.msra.mxu0 0.0
  %1021 = vmatpush.xpose.msra.mxu0 0.0
  %1022 = vmatpush.xpose.msra.mxu0 %v1005
  %1023 = vmatmul.f32.gmra.mxu0 %v1003
  %v1024 = vpop.f32.mrf.mxu0
  %v1025 = vadd.f32 %v493, %v1024
  %1026 = vdwg.mxu0
  %1027 = vrot.lane.b32.xlu0 %v451, 96
  %v1028 = vpop.permute.xlu0 %1027
  %v1029 = vsel %vm508, %v451, 0
  %v1031 = vsel %vm508, %v1028, 0
  %1033 = vmatpush.xpose.msra.mxu0 0.0
  %1034 = vmatpush.xpose.msra.mxu0 0.0
  %1035 = vmatpush.xpose.msra.mxu0 0.0
  %1036 = vmatpush.xpose.msra.mxu0 0.0
  %1037 = vmatpush.xpose.msra.mxu0 0.0
  %1038 = vmatpush.xpose.msra.mxu0 0.0
  %1039 = vmatpush.xpose.msra.mxu0 0.0
  %1040 = vmatpush.xpose.msra.mxu0 0.0
  %1041 = vmatpush.xpose.msra.mxu0 0.0
  %1042 = vmatpush.xpose.msra.mxu0 0.0
  %1043 = vmatpush.xpose.msra.mxu0 0.0
  %1044 = vmatpush.xpose.msra.mxu0 0.0
  %1045 = vmatpush.xpose.msra.mxu0 0.0
  %1046 = vmatpush.xpose.msra.mxu0 0.0
  %1047 = vmatpush.xpose.msra.mxu0 0.0
  %1048 = vmatpush.xpose.msra.mxu0 %v1031
  %1049 = vmatmul.f32.gmra.mxu0 %v1029
  %v1050 = vpop.f32.mrf.mxu0
  %v1051 = vadd.f32 %v494, %v1050
  %1052 = vdwg.mxu0
  %1053 = vrot.lane.b32.xlu0 %v453, 96
  %v1054 = vpop.permute.xlu0 %1053
  %v1055 = vsel %vm508, %v453, 0
  %v1057 = vsel %vm508, %v1054, 0
  %1059 = vmatpush.xpose.msra.mxu0 0.0
  %1060 = vmatpush.xpose.msra.mxu0 0.0
  %1061 = vmatpush.xpose.msra.mxu0 0.0
  %1062 = vmatpush.xpose.msra.mxu0 0.0
  %1063 = vmatpush.xpose.msra.mxu0 0.0
  %1064 = vmatpush.xpose.msra.mxu0 0.0
  %1065 = vmatpush.xpose.msra.mxu0 0.0
  %1066 = vmatpush.xpose.msra.mxu0 0.0
  %1067 = vmatpush.xpose.msra.mxu0 0.0
  %1068 = vmatpush.xpose.msra.mxu0 0.0
  %1069 = vmatpush.xpose.msra.mxu0 0.0
  %1070 = vmatpush.xpose.msra.mxu0 0.0
  %1071 = vmatpush.xpose.msra.mxu0 0.0
  %1072 = vmatpush.xpose.msra.mxu0 0.0
  %1073 = vmatpush.xpose.msra.mxu0 0.0
  %1074 = vmatpush.xpose.msra.mxu0 %v1057
  %1075 = vmatmul.f32.gmra.mxu0 %v1055
  %v1076 = vpop.f32.mrf.mxu0
  %v1077 = vadd.f32 %v495, %v1076
  %1078 = vdwg.mxu0
  %1079 = vrot.lane.b32.xlu0 %v455, 96
  %v1080 = vpop.permute.xlu0 %1079
  %v1081 = vsel %vm508, %v455, 0
  %v1083 = vsel %vm508, %v1080, 0
  %1085 = vmatpush.xpose.msra.mxu0 0.0
  %1086 = vmatpush.xpose.msra.mxu0 0.0
  %1087 = vmatpush.xpose.msra.mxu0 0.0
  %1088 = vmatpush.xpose.msra.mxu0 0.0
  %1089 = vmatpush.xpose.msra.mxu0 0.0
  %1090 = vmatpush.xpose.msra.mxu0 0.0
  %1091 = vmatpush.xpose.msra.mxu0 0.0
  %1092 = vmatpush.xpose.msra.mxu0 0.0
  %1093 = vmatpush.xpose.msra.mxu0 0.0
  %1094 = vmatpush.xpose.msra.mxu0 0.0
  %1095 = vmatpush.xpose.msra.mxu0 0.0
  %1096 = vmatpush.xpose.msra.mxu0 0.0
  %1097 = vmatpush.xpose.msra.mxu0 0.0
  %1098 = vmatpush.xpose.msra.mxu0 0.0
  %1099 = vmatpush.xpose.msra.mxu0 0.0
  %1100 = vmatpush.xpose.msra.mxu0 %v1083
  %1101 = vmatmul.f32.gmra.mxu0 %v1081
  %v1102 = vpop.f32.mrf.mxu0
  %v1103 = vadd.f32 %v496, %v1102
  %1104 = vdwg.mxu0
  %1105 = vrot.lane.b32.xlu0 %v457, 96
  %v1106 = vpop.permute.xlu0 %1105
  %v1107 = vsel %vm508, %v457, 0
  %v1109 = vsel %vm508, %v1106, 0
  %1111 = vmatpush.xpose.msra.mxu0 0.0
  %1112 = vmatpush.xpose.msra.mxu0 0.0
  %1113 = vmatpush.xpose.msra.mxu0 0.0
  %1114 = vmatpush.xpose.msra.mxu0 0.0
  %1115 = vmatpush.xpose.msra.mxu0 0.0
  %1116 = vmatpush.xpose.msra.mxu0 0.0
  %1117 = vmatpush.xpose.msra.mxu0 0.0
  %1118 = vmatpush.xpose.msra.mxu0 0.0
  %1119 = vmatpush.xpose.msra.mxu0 0.0
  %1120 = vmatpush.xpose.msra.mxu0 0.0
  %1121 = vmatpush.xpose.msra.mxu0 0.0
  %1122 = vmatpush.xpose.msra.mxu0 0.0
  %1123 = vmatpush.xpose.msra.mxu0 0.0
  %1124 = vmatpush.xpose.msra.mxu0 0.0
  %1125 = vmatpush.xpose.msra.mxu0 0.0
  %1126 = vmatpush.xpose.msra.mxu0 %v1109
  %1127 = vmatmul.f32.gmra.mxu0 %v1107
  %v1128 = vpop.f32.mrf.mxu0
  %v1129 = vadd.f32 %v497, %v1128
  %1130 = vdwg.mxu0
  %1131 = vrot.lane.b32.xlu0 %v459, 96
  %v1132 = vpop.permute.xlu0 %1131
  %v1133 = vsel %vm508, %v459, 0
  %v1135 = vsel %vm508, %v1132, 0
  %1137 = vmatpush.xpose.msra.mxu0 0.0
  %1138 = vmatpush.xpose.msra.mxu0 0.0
  %1139 = vmatpush.xpose.msra.mxu0 0.0
  %1140 = vmatpush.xpose.msra.mxu0 0.0
  %1141 = vmatpush.xpose.msra.mxu0 0.0
  %1142 = vmatpush.xpose.msra.mxu0 0.0
  %1143 = vmatpush.xpose.msra.mxu0 0.0
  %1144 = vmatpush.xpose.msra.mxu0 0.0
  %1145 = vmatpush.xpose.msra.mxu0 0.0
  %1146 = vmatpush.xpose.msra.mxu0 0.0
  %1147 = vmatpush.xpose.msra.mxu0 0.0
  %1148 = vmatpush.xpose.msra.mxu0 0.0
  %1149 = vmatpush.xpose.msra.mxu0 0.0
  %1150 = vmatpush.xpose.msra.mxu0 0.0
  %1151 = vmatpush.xpose.msra.mxu0 0.0
  %1152 = vmatpush.xpose.msra.mxu0 %v1135
  %1153 = vmatmul.f32.gmra.mxu0 %v1133
  %v1154 = vpop.f32.mrf.mxu0
  %v1155 = vadd.f32 %v490, %v1154
  %1156 = vdwg.mxu0
  %1157 = vrot.lane.b32.xlu0 %v461, 96
  %v1158 = vpop.permute.xlu0 %1157
  %v1159 = vsel %vm508, %v461, 0
  %v1161 = vsel %vm508, %v1158, 0
  %1163 = vmatpush.xpose.msra.mxu0 0.0
  %1164 = vmatpush.xpose.msra.mxu0 0.0
  %1165 = vmatpush.xpose.msra.mxu0 0.0
  %1166 = vmatpush.xpose.msra.mxu0 0.0
  %1167 = vmatpush.xpose.msra.mxu0 0.0
  %1168 = vmatpush.xpose.msra.mxu0 0.0
  %1169 = vmatpush.xpose.msra.mxu0 0.0
  %1170 = vmatpush.xpose.msra.mxu0 0.0
  %1171 = vmatpush.xpose.msra.mxu0 0.0
  %1172 = vmatpush.xpose.msra.mxu0 0.0
  %1173 = vmatpush.xpose.msra.mxu0 0.0
  %1174 = vmatpush.xpose.msra.mxu0 0.0
  %1175 = vmatpush.xpose.msra.mxu0 0.0
  %1176 = vmatpush.xpose.msra.mxu0 0.0
  %1177 = vmatpush.xpose.msra.mxu0 0.0
  %1178 = vmatpush.xpose.msra.mxu0 %v1161
  %1179 = vmatmul.f32.gmra.mxu0 %v1159
  %v1180 = vpop.f32.mrf.mxu0
  %v1181 = vadd.f32 %v491, %v1180
  %1182 = vdwg.mxu0
  %1183 = vrot.lane.b32.xlu0 %v463, 96
  %v1184 = vpop.permute.xlu0 %1183
  %v1185 = vsel %vm508, %v463, 0
  %v1187 = vsel %vm508, %v1184, 0
  %1189 = vmatpush.xpose.msra.mxu0 0.0
  %1190 = vmatpush.xpose.msra.mxu0 0.0
  %1191 = vmatpush.xpose.msra.mxu0 0.0
  %1192 = vmatpush.xpose.msra.mxu0 0.0
  %1193 = vmatpush.xpose.msra.mxu0 0.0
  %1194 = vmatpush.xpose.msra.mxu0 0.0
  %1195 = vmatpush.xpose.msra.mxu0 0.0
  %1196 = vmatpush.xpose.msra.mxu0 0.0
  %1197 = vmatpush.xpose.msra.mxu0 0.0
  %1198 = vmatpush.xpose.msra.mxu0 0.0
  %1199 = vmatpush.xpose.msra.mxu0 0.0
  %1200 = vmatpush.xpose.msra.mxu0 0.0
  %1201 = vmatpush.xpose.msra.mxu0 0.0
  %1202 = vmatpush.xpose.msra.mxu0 0.0
  %1203 = vmatpush.xpose.msra.mxu0 0.0
  %1204 = vmatpush.xpose.msra.mxu0 %v1187
  %1205 = vmatmul.f32.gmra.mxu0 %v1185
  %v1206 = vpop.f32.mrf.mxu0
  %v1207 = vadd.f32 %v492, %v1206
  %1208 = vdwg.mxu0
  %1209 = vrot.lane.b32.xlu0 %v465, 96
  %v1210 = vpop.permute.xlu0 %1209
  %v1211 = vsel %vm508, %v465, 0
  %v1213 = vsel %vm508, %v1210, 0
  %1215 = vmatpush.xpose.msra.mxu0 0.0
  %1216 = vmatpush.xpose.msra.mxu0 0.0
  %1217 = vmatpush.xpose.msra.mxu0 0.0
  %1218 = vmatpush.xpose.msra.mxu0 0.0
  %1219 = vmatpush.xpose.msra.mxu0 0.0
  %1220 = vmatpush.xpose.msra.mxu0 0.0
  %1221 = vmatpush.xpose.msra.mxu0 0.0
  %1222 = vmatpush.xpose.msra.mxu0 0.0
  %1223 = vmatpush.xpose.msra.mxu0 0.0
  %1224 = vmatpush.xpose.msra.mxu0 0.0
  %1225 = vmatpush.xpose.msra.mxu0 0.0
  %1226 = vmatpush.xpose.msra.mxu0 0.0
  %1227 = vmatpush.xpose.msra.mxu0 0.0
  %1228 = vmatpush.xpose.msra.mxu0 0.0
  %1229 = vmatpush.xpose.msra.mxu0 0.0
  %1230 = vmatpush.xpose.msra.mxu0 %v1213
  %1231 = vmatmul.f32.gmra.mxu0 %v1211
  %v1232 = vpop.f32.mrf.mxu0
  %v1233 = vadd.f32 %v493, %v1232
  %1234 = vdwg.mxu0
  %1235 = vrot.lane.b32.xlu0 %v467, 96
  %v1236 = vpop.permute.xlu0 %1235
  %v1237 = vsel %vm508, %v467, 0
  %v1239 = vsel %vm508, %v1236, 0
  %1241 = vmatpush.xpose.msra.mxu0 0.0
  %1242 = vmatpush.xpose.msra.mxu0 0.0
  %1243 = vmatpush.xpose.msra.mxu0 0.0
  %1244 = vmatpush.xpose.msra.mxu0 0.0
  %1245 = vmatpush.xpose.msra.mxu0 0.0
  %1246 = vmatpush.xpose.msra.mxu0 0.0
  %1247 = vmatpush.xpose.msra.mxu0 0.0
  %1248 = vmatpush.xpose.msra.mxu0 0.0
  %1249 = vmatpush.xpose.msra.mxu0 0.0
  %1250 = vmatpush.xpose.msra.mxu0 0.0
  %1251 = vmatpush.xpose.msra.mxu0 0.0
  %1252 = vmatpush.xpose.msra.mxu0 0.0
  %1253 = vmatpush.xpose.msra.mxu0 0.0
  %1254 = vmatpush.xpose.msra.mxu0 0.0
  %1255 = vmatpush.xpose.msra.mxu0 0.0
  %1256 = vmatpush.xpose.msra.mxu0 %v1239
  %1257 = vmatmul.f32.gmra.mxu0 %v1237
  %v1258 = vpop.f32.mrf.mxu0
  %v1259 = vadd.f32 %v494, %v1258
  %1260 = vdwg.mxu0
  %1261 = vrot.lane.b32.xlu0 %v469, 96
  %v1262 = vpop.permute.xlu0 %1261
  %v1263 = vsel %vm508, %v469, 0
  %v1265 = vsel %vm508, %v1262, 0
  %1267 = vmatpush.xpose.msra.mxu0 0.0
  %1268 = vmatpush.xpose.msra.mxu0 0.0
  %1269 = vmatpush.xpose.msra.mxu0 0.0
  %1270 = vmatpush.xpose.msra.mxu0 0.0
  %1271 = vmatpush.xpose.msra.mxu0 0.0
  %1272 = vmatpush.xpose.msra.mxu0 0.0
  %1273 = vmatpush.xpose.msra.mxu0 0.0
  %1274 = vmatpush.xpose.msra.mxu0 0.0
  %1275 = vmatpush.xpose.msra.mxu0 0.0
  %1276 = vmatpush.xpose.msra.mxu0 0.0
  %1277 = vmatpush.xpose.msra.mxu0 0.0
  %1278 = vmatpush.xpose.msra.mxu0 0.0
  %1279 = vmatpush.xpose.msra.mxu0 0.0
  %1280 = vmatpush.xpose.msra.mxu0 0.0
  %1281 = vmatpush.xpose.msra.mxu0 0.0
  %1282 = vmatpush.xpose.msra.mxu0 %v1265
  %1283 = vmatmul.f32.gmra.mxu0 %v1263
  %v1284 = vpop.f32.mrf.mxu0
  %v1285 = vadd.f32 %v495, %v1284
  %1286 = vdwg.mxu0
  %1287 = vrot.lane.b32.xlu0 %v471, 96
  %v1288 = vpop.permute.xlu0 %1287
  %v1289 = vsel %vm508, %v471, 0
  %v1291 = vsel %vm508, %v1288, 0
  %1293 = vmatpush.xpose.msra.mxu0 0.0
  %1294 = vmatpush.xpose.msra.mxu0 0.0
  %1295 = vmatpush.xpose.msra.mxu0 0.0
  %1296 = vmatpush.xpose.msra.mxu0 0.0
  %1297 = vmatpush.xpose.msra.mxu0 0.0
  %1298 = vmatpush.xpose.msra.mxu0 0.0
  %1299 = vmatpush.xpose.msra.mxu0 0.0
  %1300 = vmatpush.xpose.msra.mxu0 0.0
  %1301 = vmatpush.xpose.msra.mxu0 0.0
  %1302 = vmatpush.xpose.msra.mxu0 0.0
  %1303 = vmatpush.xpose.msra.mxu0 0.0
  %1304 = vmatpush.xpose.msra.mxu0 0.0
  %1305 = vmatpush.xpose.msra.mxu0 0.0
  %1306 = vmatpush.xpose.msra.mxu0 0.0
  %1307 = vmatpush.xpose.msra.mxu0 0.0
  %1308 = vmatpush.xpose.msra.mxu0 %v1291
  %1309 = vmatmul.f32.gmra.mxu0 %v1289
  %v1310 = vpop.f32.mrf.mxu0
  %v1311 = vadd.f32 %v496, %v1310
  %1312 = vdwg.mxu0
  %1313 = vrot.lane.b32.xlu0 %v473, 96
  %v1314 = vpop.permute.xlu0 %1313
  %v1315 = vsel %vm508, %v473, 0
  %v1317 = vsel %vm508, %v1314, 0
  %1319 = vmatpush.xpose.msra.mxu0 0.0
  %1320 = vmatpush.xpose.msra.mxu0 0.0
  %1321 = vmatpush.xpose.msra.mxu0 0.0
  %1322 = vmatpush.xpose.msra.mxu0 0.0
  %1323 = vmatpush.xpose.msra.mxu0 0.0
  %1324 = vmatpush.xpose.msra.mxu0 0.0
  %1325 = vmatpush.xpose.msra.mxu0 0.0
  %1326 = vmatpush.xpose.msra.mxu0 0.0
  %1327 = vmatpush.xpose.msra.mxu0 0.0
  %1328 = vmatpush.xpose.msra.mxu0 0.0
  %1329 = vmatpush.xpose.msra.mxu0 0.0
  %1330 = vmatpush.xpose.msra.mxu0 0.0
  %1331 = vmatpush.xpose.msra.mxu0 0.0
  %1332 = vmatpush.xpose.msra.mxu0 0.0
  %1333 = vmatpush.xpose.msra.mxu0 0.0
  %1334 = vmatpush.xpose.msra.mxu0 %v1317
  %1335 = vmatmul.f32.gmra.mxu0 %v1315
  %v1336 = vpop.f32.mrf.mxu0
  %v1337 = vadd.f32 %v497, %v1336
  %1338 = vdwg.mxu0
  %v1339 = vsel %vm508, %v531, -inf
  %1340 = vmax.xlane.f32.xlu0 %v1339
  %v1341 = vpop.xlane.xlu0 %1340
  %v1342 = vsel %vm508, %v557, -inf
  %1343 = vmax.xlane.f32.xlu0 %v1342
  %v1344 = vpop.xlane.xlu0 %1343
  %v1345 = vsel %vm508, %v583, -inf
  %1346 = vmax.xlane.f32.xlu0 %v1345
  %v1347 = vpop.xlane.xlu0 %1346
  %v1348 = vsel %vm508, %v609, -inf
  %1349 = vmax.xlane.f32.xlu0 %v1348
  %v1350 = vpop.xlane.xlu0 %1349
  %v1351 = vsel %vm508, %v635, -inf
  %1352 = vmax.xlane.f32.xlu0 %v1351
  %v1353 = vpop.xlane.xlu0 %1352
  %v1354 = vsel %vm508, %v661, -inf
  %1355 = vmax.xlane.f32.xlu0 %v1354
  %v1356 = vpop.xlane.xlu0 %1355
  %v1357 = vsel %vm508, %v687, -inf
  %1358 = vmax.xlane.f32.xlu0 %v1357
  %v1359 = vpop.xlane.xlu0 %1358
  %v1360 = vsel %vm508, %v713, -inf
  %1361 = vmax.xlane.f32.xlu0 %v1360
  %v1362 = vpop.xlane.xlu0 %1361
  %v1363 = vsel %vm508, %v739, -inf
  %1364 = vmax.xlane.f32.xlu0 %v1363
  %v1365 = vpop.xlane.xlu0 %1364
  %v1366 = vsel %vm508, %v765, -inf
  %1367 = vmax.xlane.f32.xlu0 %v1366
  %v1368 = vpop.xlane.xlu0 %1367
  %v1369 = vsel %vm508, %v791, -inf
  %1370 = vmax.xlane.f32.xlu0 %v1369
  %v1371 = vpop.xlane.xlu0 %1370
  %v1372 = vsel %vm508, %v817, -inf
  %1373 = vmax.xlane.f32.xlu0 %v1372
  %v1374 = vpop.xlane.xlu0 %1373
  %v1375 = vsel %vm508, %v843, -inf
  %1376 = vmax.xlane.f32.xlu0 %v1375
  %v1377 = vpop.xlane.xlu0 %1376
  %v1378 = vsel %vm508, %v869, -inf
  %1379 = vmax.xlane.f32.xlu0 %v1378
  %v1380 = vpop.xlane.xlu0 %1379
  %v1381 = vsel %vm508, %v895, -inf
  %1382 = vmax.xlane.f32.xlu0 %v1381
  %v1383 = vpop.xlane.xlu0 %1382
  %v1384 = vsel %vm508, %v921, -inf
  %1385 = vmax.xlane.f32.xlu0 %v1384
  %v1386 = vpop.xlane.xlu0 %1385
  %v1387 = vsel %vm508, %v947, -inf
  %1388 = vmax.xlane.f32.xlu0 %v1387
  %v1389 = vpop.xlane.xlu0 %1388
  %v1390 = vsel %vm508, %v973, -inf
  %1391 = vmax.xlane.f32.xlu0 %v1390
  %v1392 = vpop.xlane.xlu0 %1391
  %v1393 = vsel %vm508, %v999, -inf
  %1394 = vmax.xlane.f32.xlu0 %v1393
  %v1395 = vpop.xlane.xlu0 %1394
  %v1396 = vsel %vm508, %v1025, -inf
  %1397 = vmax.xlane.f32.xlu0 %v1396
  %v1398 = vpop.xlane.xlu0 %1397
  %v1399 = vsel %vm508, %v1051, -inf
  %1400 = vmax.xlane.f32.xlu0 %v1399
  %v1401 = vpop.xlane.xlu0 %1400
  %v1402 = vsel %vm508, %v1077, -inf
  %1403 = vmax.xlane.f32.xlu0 %v1402
  %v1404 = vpop.xlane.xlu0 %1403
  %v1405 = vsel %vm508, %v1103, -inf
  %1406 = vmax.xlane.f32.xlu0 %v1405
  %v1407 = vpop.xlane.xlu0 %1406
  %v1408 = vsel %vm508, %v1129, -inf
  %1409 = vmax.xlane.f32.xlu0 %v1408
  %v1410 = vpop.xlane.xlu0 %1409
  %v1411 = vsel %vm508, %v1155, -inf
  %1412 = vmax.xlane.f32.xlu0 %v1411
  %v1413 = vpop.xlane.xlu0 %1412
  %v1414 = vsel %vm508, %v1181, -inf
  %1415 = vmax.xlane.f32.xlu0 %v1414
  %v1416 = vpop.xlane.xlu0 %1415
  %v1417 = vsel %vm508, %v1207, -inf
  %1418 = vmax.xlane.f32.xlu0 %v1417
  %v1419 = vpop.xlane.xlu0 %1418
  %v1420 = vsel %vm508, %v1233, -inf
  %1421 = vmax.xlane.f32.xlu0 %v1420
  %v1422 = vpop.xlane.xlu0 %1421
  %v1423 = vsel %vm508, %v1259, -inf
  %1424 = vmax.xlane.f32.xlu0 %v1423
  %v1425 = vpop.xlane.xlu0 %1424
  %v1426 = vsel %vm508, %v1285, -inf
  %1427 = vmax.xlane.f32.xlu0 %v1426
  %v1428 = vpop.xlane.xlu0 %1427
  %v1429 = vsel %vm508, %v1311, -inf
  %1430 = vmax.xlane.f32.xlu0 %v1429
  %v1431 = vpop.xlane.xlu0 %1430
  %v1432 = vsel %vm508, %v1337, -inf
  %1433 = vmax.xlane.f32.xlu0 %v1432
  %v1434 = vpop.xlane.xlu0 %1433
  %v1435 = vsub.f32 %v531, %v1341
  %v1436 = vsub.f32 %v557, %v1344
  %v1437 = vsub.f32 %v583, %v1347
  %v1438 = vsub.f32 %v609, %v1350
  %v1439 = vsub.f32 %v635, %v1353
  %v1440 = vsub.f32 %v661, %v1356
  %v1441 = vsub.f32 %v687, %v1359
  %v1442 = vsub.f32 %v713, %v1362
  %v1443 = vsub.f32 %v739, %v1365
  %v1444 = vsub.f32 %v765, %v1368
  %v1445 = vsub.f32 %v791, %v1371
  %v1446 = vsub.f32 %v817, %v1374
  %v1447 = vsub.f32 %v843, %v1377
  %v1448 = vsub.f32 %v869, %v1380
  %v1449 = vsub.f32 %v895, %v1383
  %v1450 = vsub.f32 %v921, %v1386
  %v1451 = vsub.f32 %v947, %v1389
  %v1452 = vsub.f32 %v973, %v1392
  %v1453 = vsub.f32 %v999, %v1395
  %v1454 = vsub.f32 %v1025, %v1398
  %v1455 = vsub.f32 %v1051, %v1401
  %v1456 = vsub.f32 %v1077, %v1404
  %v1457 = vsub.f32 %v1103, %v1407
  %v1458 = vsub.f32 %v1129, %v1410
  %v1459 = vsub.f32 %v1155, %v1413
  %v1460 = vsub.f32 %v1181, %v1416
  %v1461 = vsub.f32 %v1207, %v1419
  %v1462 = vsub.f32 %v1233, %v1422
  %v1463 = vsub.f32 %v1259, %v1425
  %v1464 = vsub.f32 %v1285, %v1428
  %v1465 = vsub.f32 %v1311, %v1431
  %v1466 = vsub.f32 %v1337, %v1434
  %v1467 = vmul.f32 %v1435, 1.442695
  %v1468 = vpow.pop %v1467
  %v1469 = vmul.f32 %v1436, 1.442695
  %v1470 = vpow.pop %v1469
  %v1471 = vmul.f32 %v1437, 1.442695
  %v1472 = vpow.pop %v1471
  %v1473 = vmul.f32 %v1438, 1.442695
  %v1474 = vpow.pop %v1473
  %v1475 = vmul.f32 %v1439, 1.442695
  %v1476 = vpow.pop %v1475
  %v1477 = vmul.f32 %v1440, 1.442695
  %v1478 = vpow.pop %v1477
  %v1479 = vmul.f32 %v1441, 1.442695
  %v1480 = vpow.pop %v1479
  %v1481 = vmul.f32 %v1442, 1.442695
  %v1482 = vpow.pop %v1481
  %v1483 = vmul.f32 %v1443, 1.442695
  %v1484 = vpow.pop %v1483
  %v1485 = vmul.f32 %v1444, 1.442695
  %v1486 = vpow.pop %v1485
  %v1487 = vmul.f32 %v1445, 1.442695
  %v1488 = vpow.pop %v1487
  %v1489 = vmul.f32 %v1446, 1.442695
  %v1490 = vpow.pop %v1489
  %v1491 = vmul.f32 %v1447, 1.442695
  %v1492 = vpow.pop %v1491
  %v1493 = vmul.f32 %v1448, 1.442695
  %v1494 = vpow.pop %v1493
  %v1495 = vmul.f32 %v1449, 1.442695
  %v1496 = vpow.pop %v1495
  %v1497 = vmul.f32 %v1450, 1.442695
  %v1498 = vpow.pop %v1497
  %v1499 = vmul.f32 %v1451, 1.442695
  %v1500 = vpow.pop %v1499
  %v1501 = vmul.f32 %v1452, 1.442695
  %v1502 = vpow.pop %v1501
  %v1503 = vmul.f32 %v1453, 1.442695
  %v1504 = vpow.pop %v1503
  %v1505 = vmul.f32 %v1454, 1.442695
  %v1506 = vpow.pop %v1505
  %v1507 = vmul.f32 %v1455, 1.442695
  %v1508 = vpow.pop %v1507
  %v1509 = vmul.f32 %v1456, 1.442695
  %v1510 = vpow.pop %v1509
  %v1511 = vmul.f32 %v1457, 1.442695
  %v1512 = vpow.pop %v1511
  %v1513 = vmul.f32 %v1458, 1.442695
  %v1514 = vpow.pop %v1513
  %v1515 = vmul.f32 %v1459, 1.442695
  %v1516 = vpow.pop %v1515
  %v1517 = vmul.f32 %v1460, 1.442695
  %v1518 = vpow.pop %v1517
  %v1519 = vmul.f32 %v1461, 1.442695
  %v1520 = vpow.pop %v1519
  %v1521 = vmul.f32 %v1462, 1.442695
  %v1522 = vpow.pop %v1521
  %v1523 = vmul.f32 %v1463, 1.442695
  %v1524 = vpow.pop %v1523
  %v1525 = vmul.f32 %v1464, 1.442695
  %v1526 = vpow.pop %v1525
  %v1527 = vmul.f32 %v1465, 1.442695
  %v1528 = vpow.pop %v1527
  %v1529 = vmul.f32 %v1466, 1.442695
  %v1530 = vpow.pop %v1529
  %v1531 = vsel %vm508, %v1468, 0.0
  %1532 = vadd.xlane.f32.xlu0 %v1531
  %v1533 = vpop.xlane.xlu0 %1532
  %v1534 = vsel %vm508, %v1470, 0.0
  %1535 = vadd.xlane.f32.xlu0 %v1534
  %v1536 = vpop.xlane.xlu0 %1535
  %v1537 = vsel %vm508, %v1472, 0.0
  %1538 = vadd.xlane.f32.xlu0 %v1537
  %v1539 = vpop.xlane.xlu0 %1538
  %v1540 = vsel %vm508, %v1474, 0.0
  %1541 = vadd.xlane.f32.xlu0 %v1540
  %v1542 = vpop.xlane.xlu0 %1541
  %v1543 = vsel %vm508, %v1476, 0.0
  %1544 = vadd.xlane.f32.xlu0 %v1543
  %v1545 = vpop.xlane.xlu0 %1544
  %v1546 = vsel %vm508, %v1478, 0.0
  %1547 = vadd.xlane.f32.xlu0 %v1546
  %v1548 = vpop.xlane.xlu0 %1547
  %v1549 = vsel %vm508, %v1480, 0.0
  %1550 = vadd.xlane.f32.xlu0 %v1549
  %v1551 = vpop.xlane.xlu0 %1550
  %v1552 = vsel %vm508, %v1482, 0.0
  %1553 = vadd.xlane.f32.xlu0 %v1552
  %v1554 = vpop.xlane.xlu0 %1553
  %v1555 = vsel %vm508, %v1484, 0.0
  %1556 = vadd.xlane.f32.xlu0 %v1555
  %v1557 = vpop.xlane.xlu0 %1556
  %v1558 = vsel %vm508, %v1486, 0.0
  %1559 = vadd.xlane.f32.xlu0 %v1558
  %v1560 = vpop.xlane.xlu0 %1559
  %v1561 = vsel %vm508, %v1488, 0.0
  %1562 = vadd.xlane.f32.xlu0 %v1561
  %v1563 = vpop.xlane.xlu0 %1562
  %v1564 = vsel %vm508, %v1490, 0.0
  %1565 = vadd.xlane.f32.xlu0 %v1564
  %v1566 = vpop.xlane.xlu0 %1565
  %v1567 = vsel %vm508, %v1492, 0.0
  %1568 = vadd.xlane.f32.xlu0 %v1567
  %v1569 = vpop.xlane.xlu0 %1568
  %v1570 = vsel %vm508, %v1494, 0.0
  %1571 = vadd.xlane.f32.xlu0 %v1570
  %v1572 = vpop.xlane.xlu0 %1571
  %v1573 = vsel %vm508, %v1496, 0.0
  %1574 = vadd.xlane.f32.xlu0 %v1573
  %v1575 = vpop.xlane.xlu0 %1574
  %v1576 = vsel %vm508, %v1498, 0.0
  %1577 = vadd.xlane.f32.xlu0 %v1576
  %v1578 = vpop.xlane.xlu0 %1577
  %v1579 = vsel %vm508, %v1500, 0.0
  %1580 = vadd.xlane.f32.xlu0 %v1579
  %v1581 = vpop.xlane.xlu0 %1580
  %v1582 = vsel %vm508, %v1502, 0.0
  %1583 = vadd.xlane.f32.xlu0 %v1582
  %v1584 = vpop.xlane.xlu0 %1583
  %v1585 = vsel %vm508, %v1504, 0.0
  %1586 = vadd.xlane.f32.xlu0 %v1585
  %v1587 = vpop.xlane.xlu0 %1586
  %v1588 = vsel %vm508, %v1506, 0.0
  %1589 = vadd.xlane.f32.xlu0 %v1588
  %v1590 = vpop.xlane.xlu0 %1589
  %v1591 = vsel %vm508, %v1508, 0.0
  %1592 = vadd.xlane.f32.xlu0 %v1591
  %v1593 = vpop.xlane.xlu0 %1592
  %v1594 = vsel %vm508, %v1510, 0.0
  %1595 = vadd.xlane.f32.xlu0 %v1594
  %v1596 = vpop.xlane.xlu0 %1595
  %v1597 = vsel %vm508, %v1512, 0.0
  %1598 = vadd.xlane.f32.xlu0 %v1597
  %v1599 = vpop.xlane.xlu0 %1598
  %v1600 = vsel %vm508, %v1514, 0.0
  %1601 = vadd.xlane.f32.xlu0 %v1600
  %v1602 = vpop.xlane.xlu0 %1601
  %v1603 = vsel %vm508, %v1516, 0.0
  %1604 = vadd.xlane.f32.xlu0 %v1603
  %v1605 = vpop.xlane.xlu0 %1604
  %v1606 = vsel %vm508, %v1518, 0.0
  %1607 = vadd.xlane.f32.xlu0 %v1606
  %v1608 = vpop.xlane.xlu0 %1607
  %v1609 = vsel %vm508, %v1520, 0.0
  %1610 = vadd.xlane.f32.xlu0 %v1609
  %v1611 = vpop.xlane.xlu0 %1610
  %v1612 = vsel %vm508, %v1522, 0.0
  %1613 = vadd.xlane.f32.xlu0 %v1612
  %v1614 = vpop.xlane.xlu0 %1613
  %v1615 = vsel %vm508, %v1524, 0.0
  %1616 = vadd.xlane.f32.xlu0 %v1615
  %v1617 = vpop.xlane.xlu0 %1616
  %v1618 = vsel %vm508, %v1526, 0.0
  %1619 = vadd.xlane.f32.xlu0 %v1618
  %v1620 = vpop.xlane.xlu0 %1619
  %v1621 = vsel %vm508, %v1528, 0.0
  %1622 = vadd.xlane.f32.xlu0 %v1621
  %v1623 = vpop.xlane.xlu0 %1622
  %v1624 = vsel %vm508, %v1530, 0.0
  %1625 = vadd.xlane.f32.xlu0 %v1624
  %v1626 = vpop.xlane.xlu0 %1625
  %v1627 = vrcp.pop %v1533
  %v1628 = vmul.f32 %v1533, %v1627
  %v1629 = vsub.f32 1.0, %v1628
  %v1630 = vmul.f32 %v1627, %v1629
  %v1631 = vadd.f32 %v1627, %v1630
  %vm1632 = vweird.f32 %v1533
  %vm1633 = vweird.f32 %v1627
  %vm1634 = vmor %vm1632, %vm1633
  %v1635 = vsel %vm1634, %v1627, %v1631
  %v1636 = vand.u32 2147483647, %v1533
  %vm1637 = vcmp.eq.f32.partialorder %v1636, 8.507059e+37
  %v1638 = vand.u32 %v1533, 2147483648
  %v1639 = vor.u32 1.1754944e-38, %v1638
  %v1640 = vsel %vm1637, %v1639, %v1635
  %v1641 = vrcp.pop %v1536
  %v1642 = vmul.f32 %v1536, %v1641
  %v1643 = vsub.f32 1.0, %v1642
  %v1644 = vmul.f32 %v1641, %v1643
  %v1645 = vadd.f32 %v1641, %v1644
  %vm1646 = vweird.f32 %v1536
  %vm1647 = vweird.f32 %v1641
  %vm1648 = vmor %vm1646, %vm1647
  %v1649 = vsel %vm1648, %v1641, %v1645
  %v1650 = vand.u32 2147483647, %v1536
  %vm1651 = vcmp.eq.f32.partialorder %v1650, 8.507059e+37
  %v1652 = vand.u32 %v1536, 2147483648
  %v1653 = vor.u32 1.1754944e-38, %v1652
  %v1654 = vsel %vm1651, %v1653, %v1649
  %v1655 = vrcp.pop %v1539
  %v1656 = vmul.f32 %v1539, %v1655
  %v1657 = vsub.f32 1.0, %v1656
  %v1658 = vmul.f32 %v1655, %v1657
  %v1659 = vadd.f32 %v1655, %v1658
  %vm1660 = vweird.f32 %v1539
  %vm1661 = vweird.f32 %v1655
  %vm1662 = vmor %vm1660, %vm1661
  %v1663 = vsel %vm1662, %v1655, %v1659
  %v1664 = vand.u32 2147483647, %v1539
  %vm1665 = vcmp.eq.f32.partialorder %v1664, 8.507059e+37
  %v1666 = vand.u32 %v1539, 2147483648
  %v1667 = vor.u32 1.1754944e-38, %v1666
  %v1668 = vsel %vm1665, %v1667, %v1663
  %v1669 = vrcp.pop %v1542
  %v1670 = vmul.f32 %v1542, %v1669
  %v1671 = vsub.f32 1.0, %v1670
  %v1672 = vmul.f32 %v1669, %v1671
  %v1673 = vadd.f32 %v1669, %v1672
  %vm1674 = vweird.f32 %v1542
  %vm1675 = vweird.f32 %v1669
  %vm1676 = vmor %vm1674, %vm1675
  %v1677 = vsel %vm1676, %v1669, %v1673
  %v1678 = vand.u32 2147483647, %v1542
  %vm1679 = vcmp.eq.f32.partialorder %v1678, 8.507059e+37
  %v1680 = vand.u32 %v1542, 2147483648
  %v1681 = vor.u32 1.1754944e-38, %v1680
  %v1682 = vsel %vm1679, %v1681, %v1677
  %v1683 = vrcp.pop %v1545
  %v1684 = vmul.f32 %v1545, %v1683
  %v1685 = vsub.f32 1.0, %v1684
  %v1686 = vmul.f32 %v1683, %v1685
  %v1687 = vadd.f32 %v1683, %v1686
  %vm1688 = vweird.f32 %v1545
  %vm1689 = vweird.f32 %v1683
  %vm1690 = vmor %vm1688, %vm1689
  %v1691 = vsel %vm1690, %v1683, %v1687
  %v1692 = vand.u32 2147483647, %v1545
  %vm1693 = vcmp.eq.f32.partialorder %v1692, 8.507059e+37
  %v1694 = vand.u32 %v1545, 2147483648
  %v1695 = vor.u32 1.1754944e-38, %v1694
  %v1696 = vsel %vm1693, %v1695, %v1691
  %v1697 = vrcp.pop %v1548
  %v1698 = vmul.f32 %v1548, %v1697
  %v1699 = vsub.f32 1.0, %v1698
  %v1700 = vmul.f32 %v1697, %v1699
  %v1701 = vadd.f32 %v1697, %v1700
  %vm1702 = vweird.f32 %v1548
  %vm1703 = vweird.f32 %v1697
  %vm1704 = vmor %vm1702, %vm1703
  %v1705 = vsel %vm1704, %v1697, %v1701
  %v1706 = vand.u32 2147483647, %v1548
  %vm1707 = vcmp.eq.f32.partialorder %v1706, 8.507059e+37
  %v1708 = vand.u32 %v1548, 2147483648
  %v1709 = vor.u32 1.1754944e-38, %v1708
  %v1710 = vsel %vm1707, %v1709, %v1705
  %v1711 = vrcp.pop %v1551
  %v1712 = vmul.f32 %v1551, %v1711
  %v1713 = vsub.f32 1.0, %v1712
  %v1714 = vmul.f32 %v1711, %v1713
  %v1715 = vadd.f32 %v1711, %v1714
  %vm1716 = vweird.f32 %v1551
  %vm1717 = vweird.f32 %v1711
  %vm1718 = vmor %vm1716, %vm1717
  %v1719 = vsel %vm1718, %v1711, %v1715
  %v1720 = vand.u32 2147483647, %v1551
  %vm1721 = vcmp.eq.f32.partialorder %v1720, 8.507059e+37
  %v1722 = vand.u32 %v1551, 2147483648
  %v1723 = vor.u32 1.1754944e-38, %v1722
  %v1724 = vsel %vm1721, %v1723, %v1719
  %v1725 = vrcp.pop %v1554
  %v1726 = vmul.f32 %v1554, %v1725
  %v1727 = vsub.f32 1.0, %v1726
  %v1728 = vmul.f32 %v1725, %v1727
  %v1729 = vadd.f32 %v1725, %v1728
  %vm1730 = vweird.f32 %v1554
  %vm1731 = vweird.f32 %v1725
  %vm1732 = vmor %vm1730, %vm1731
  %v1733 = vsel %vm1732, %v1725, %v1729
  %v1734 = vand.u32 2147483647, %v1554
  %vm1735 = vcmp.eq.f32.partialorder %v1734, 8.507059e+37
  %v1736 = vand.u32 %v1554, 2147483648
  %v1737 = vor.u32 1.1754944e-38, %v1736
  %v1738 = vsel %vm1735, %v1737, %v1733
  %v1739 = vrcp.pop %v1557
  %v1740 = vmul.f32 %v1557, %v1739
  %v1741 = vsub.f32 1.0, %v1740
  %v1742 = vmul.f32 %v1739, %v1741
  %v1743 = vadd.f32 %v1739, %v1742
  %vm1744 = vweird.f32 %v1557
  %vm1745 = vweird.f32 %v1739
  %vm1746 = vmor %vm1744, %vm1745
  %v1747 = vsel %vm1746, %v1739, %v1743
  %v1748 = vand.u32 2147483647, %v1557
  %vm1749 = vcmp.eq.f32.partialorder %v1748, 8.507059e+37
  %v1750 = vand.u32 %v1557, 2147483648
  %v1751 = vor.u32 1.1754944e-38, %v1750
  %v1752 = vsel %vm1749, %v1751, %v1747
  %v1753 = vrcp.pop %v1560
  %v1754 = vmul.f32 %v1560, %v1753
  %v1755 = vsub.f32 1.0, %v1754
  %v1756 = vmul.f32 %v1753, %v1755
  %v1757 = vadd.f32 %v1753, %v1756
  %vm1758 = vweird.f32 %v1560
  %vm1759 = vweird.f32 %v1753
  %vm1760 = vmor %vm1758, %vm1759
  %v1761 = vsel %vm1760, %v1753, %v1757
  %v1762 = vand.u32 2147483647, %v1560
  %vm1763 = vcmp.eq.f32.partialorder %v1762, 8.507059e+37
  %v1764 = vand.u32 %v1560, 2147483648
  %v1765 = vor.u32 1.1754944e-38, %v1764
  %v1766 = vsel %vm1763, %v1765, %v1761
  %v1767 = vrcp.pop %v1563
  %v1768 = vmul.f32 %v1563, %v1767
  %v1769 = vsub.f32 1.0, %v1768
  %v1770 = vmul.f32 %v1767, %v1769
  %v1771 = vadd.f32 %v1767, %v1770
  %vm1772 = vweird.f32 %v1563
  %vm1773 = vweird.f32 %v1767
  %vm1774 = vmor %vm1772, %vm1773
  %v1775 = vsel %vm1774, %v1767, %v1771
  %v1776 = vand.u32 2147483647, %v1563
  %vm1777 = vcmp.eq.f32.partialorder %v1776, 8.507059e+37
  %v1778 = vand.u32 %v1563, 2147483648
  %v1779 = vor.u32 1.1754944e-38, %v1778
  %v1780 = vsel %vm1777, %v1779, %v1775
  %v1781 = vrcp.pop %v1566
  %v1782 = vmul.f32 %v1566, %v1781
  %v1783 = vsub.f32 1.0, %v1782
  %v1784 = vmul.f32 %v1781, %v1783
  %v1785 = vadd.f32 %v1781, %v1784
  %vm1786 = vweird.f32 %v1566
  %vm1787 = vweird.f32 %v1781
  %vm1788 = vmor %vm1786, %vm1787
  %v1789 = vsel %vm1788, %v1781, %v1785
  %v1790 = vand.u32 2147483647, %v1566
  %vm1791 = vcmp.eq.f32.partialorder %v1790, 8.507059e+37
  %v1792 = vand.u32 %v1566, 2147483648
  %v1793 = vor.u32 1.1754944e-38, %v1792
  %v1794 = vsel %vm1791, %v1793, %v1789
  %v1795 = vrcp.pop %v1569
  %v1796 = vmul.f32 %v1569, %v1795
  %v1797 = vsub.f32 1.0, %v1796
  %v1798 = vmul.f32 %v1795, %v1797
  %v1799 = vadd.f32 %v1795, %v1798
  %vm1800 = vweird.f32 %v1569
  %vm1801 = vweird.f32 %v1795
  %vm1802 = vmor %vm1800, %vm1801
  %v1803 = vsel %vm1802, %v1795, %v1799
  %v1804 = vand.u32 2147483647, %v1569
  %vm1805 = vcmp.eq.f32.partialorder %v1804, 8.507059e+37
  %v1806 = vand.u32 %v1569, 2147483648
  %v1807 = vor.u32 1.1754944e-38, %v1806
  %v1808 = vsel %vm1805, %v1807, %v1803
  %v1809 = vrcp.pop %v1572
  %v1810 = vmul.f32 %v1572, %v1809
  %v1811 = vsub.f32 1.0, %v1810
  %v1812 = vmul.f32 %v1809, %v1811
  %v1813 = vadd.f32 %v1809, %v1812
  %vm1814 = vweird.f32 %v1572
  %vm1815 = vweird.f32 %v1809
  %vm1816 = vmor %vm1814, %vm1815
  %v1817 = vsel %vm1816, %v1809, %v1813
  %v1818 = vand.u32 2147483647, %v1572
  %vm1819 = vcmp.eq.f32.partialorder %v1818, 8.507059e+37
  %v1820 = vand.u32 %v1572, 2147483648
  %v1821 = vor.u32 1.1754944e-38, %v1820
  %v1822 = vsel %vm1819, %v1821, %v1817
  %v1823 = vrcp.pop %v1575
  %v1824 = vmul.f32 %v1575, %v1823
  %v1825 = vsub.f32 1.0, %v1824
  %v1826 = vmul.f32 %v1823, %v1825
  %v1827 = vadd.f32 %v1823, %v1826
  %vm1828 = vweird.f32 %v1575
  %vm1829 = vweird.f32 %v1823
  %vm1830 = vmor %vm1828, %vm1829
  %v1831 = vsel %vm1830, %v1823, %v1827
  %v1832 = vand.u32 2147483647, %v1575
  %vm1833 = vcmp.eq.f32.partialorder %v1832, 8.507059e+37
  %v1834 = vand.u32 %v1575, 2147483648
  %v1835 = vor.u32 1.1754944e-38, %v1834
  %v1836 = vsel %vm1833, %v1835, %v1831
  %v1837 = vrcp.pop %v1578
  %v1838 = vmul.f32 %v1578, %v1837
  %v1839 = vsub.f32 1.0, %v1838
  %v1840 = vmul.f32 %v1837, %v1839
  %v1841 = vadd.f32 %v1837, %v1840
  %vm1842 = vweird.f32 %v1578
  %vm1843 = vweird.f32 %v1837
  %vm1844 = vmor %vm1842, %vm1843
  %v1845 = vsel %vm1844, %v1837, %v1841
  %v1846 = vand.u32 2147483647, %v1578
  %vm1847 = vcmp.eq.f32.partialorder %v1846, 8.507059e+37
  %v1848 = vand.u32 %v1578, 2147483648
  %v1849 = vor.u32 1.1754944e-38, %v1848
  %v1850 = vsel %vm1847, %v1849, %v1845
  %v1851 = vrcp.pop %v1581
  %v1852 = vmul.f32 %v1581, %v1851
  %v1853 = vsub.f32 1.0, %v1852
  %v1854 = vmul.f32 %v1851, %v1853
  %v1855 = vadd.f32 %v1851, %v1854
  %vm1856 = vweird.f32 %v1581
  %vm1857 = vweird.f32 %v1851
  %vm1858 = vmor %vm1856, %vm1857
  %v1859 = vsel %vm1858, %v1851, %v1855
  %v1860 = vand.u32 2147483647, %v1581
  %vm1861 = vcmp.eq.f32.partialorder %v1860, 8.507059e+37
  %v1862 = vand.u32 %v1581, 2147483648
  %v1863 = vor.u32 1.1754944e-38, %v1862
  %v1864 = vsel %vm1861, %v1863, %v1859
  %v1865 = vrcp.pop %v1584
  %v1866 = vmul.f32 %v1584, %v1865
  %v1867 = vsub.f32 1.0, %v1866
  %v1868 = vmul.f32 %v1865, %v1867
  %v1869 = vadd.f32 %v1865, %v1868
  %vm1870 = vweird.f32 %v1584
  %vm1871 = vweird.f32 %v1865
  %vm1872 = vmor %vm1870, %vm1871
  %v1873 = vsel %vm1872, %v1865, %v1869
  %v1874 = vand.u32 2147483647, %v1584
  %vm1875 = vcmp.eq.f32.partialorder %v1874, 8.507059e+37
  %v1876 = vand.u32 %v1584, 2147483648
  %v1877 = vor.u32 1.1754944e-38, %v1876
  %v1878 = vsel %vm1875, %v1877, %v1873
  %v1879 = vrcp.pop %v1587
  %v1880 = vmul.f32 %v1587, %v1879
  %v1881 = vsub.f32 1.0, %v1880
  %v1882 = vmul.f32 %v1879, %v1881
  %v1883 = vadd.f32 %v1879, %v1882
  %vm1884 = vweird.f32 %v1587
  %vm1885 = vweird.f32 %v1879
  %vm1886 = vmor %vm1884, %vm1885
  %v1887 = vsel %vm1886, %v1879, %v1883
  %v1888 = vand.u32 2147483647, %v1587
  %vm1889 = vcmp.eq.f32.partialorder %v1888, 8.507059e+37
  %v1890 = vand.u32 %v1587, 2147483648
  %v1891 = vor.u32 1.1754944e-38, %v1890
  %v1892 = vsel %vm1889, %v1891, %v1887
  %v1893 = vrcp.pop %v1590
  %v1894 = vmul.f32 %v1590, %v1893
  %v1895 = vsub.f32 1.0, %v1894
  %v1896 = vmul.f32 %v1893, %v1895
  %v1897 = vadd.f32 %v1893, %v1896
  %vm1898 = vweird.f32 %v1590
  %vm1899 = vweird.f32 %v1893
  %vm1900 = vmor %vm1898, %vm1899
  %v1901 = vsel %vm1900, %v1893, %v1897
  %v1902 = vand.u32 2147483647, %v1590
  %vm1903 = vcmp.eq.f32.partialorder %v1902, 8.507059e+37
  %v1904 = vand.u32 %v1590, 2147483648
  %v1905 = vor.u32 1.1754944e-38, %v1904
  %v1906 = vsel %vm1903, %v1905, %v1901
  %v1907 = vrcp.pop %v1593
  %v1908 = vmul.f32 %v1593, %v1907
  %v1909 = vsub.f32 1.0, %v1908
  %v1910 = vmul.f32 %v1907, %v1909
  %v1911 = vadd.f32 %v1907, %v1910
  %vm1912 = vweird.f32 %v1593
  %vm1913 = vweird.f32 %v1907
  %vm1914 = vmor %vm1912, %vm1913
  %v1915 = vsel %vm1914, %v1907, %v1911
  %v1916 = vand.u32 2147483647, %v1593
  %vm1917 = vcmp.eq.f32.partialorder %v1916, 8.507059e+37
  %v1918 = vand.u32 %v1593, 2147483648
  %v1919 = vor.u32 1.1754944e-38, %v1918
  %v1920 = vsel %vm1917, %v1919, %v1915
  %v1921 = vrcp.pop %v1596
  %v1922 = vmul.f32 %v1596, %v1921
  %v1923 = vsub.f32 1.0, %v1922
  %v1924 = vmul.f32 %v1921, %v1923
  %v1925 = vadd.f32 %v1921, %v1924
  %vm1926 = vweird.f32 %v1596
  %vm1927 = vweird.f32 %v1921
  %vm1928 = vmor %vm1926, %vm1927
  %v1929 = vsel %vm1928, %v1921, %v1925
  %v1930 = vand.u32 2147483647, %v1596
  %vm1931 = vcmp.eq.f32.partialorder %v1930, 8.507059e+37
  %v1932 = vand.u32 %v1596, 2147483648
  %v1933 = vor.u32 1.1754944e-38, %v1932
  %v1934 = vsel %vm1931, %v1933, %v1929
  %v1935 = vrcp.pop %v1599
  %v1936 = vmul.f32 %v1599, %v1935
  %v1937 = vsub.f32 1.0, %v1936
  %v1938 = vmul.f32 %v1935, %v1937
  %v1939 = vadd.f32 %v1935, %v1938
  %vm1940 = vweird.f32 %v1599
  %vm1941 = vweird.f32 %v1935
  %vm1942 = vmor %vm1940, %vm1941
  %v1943 = vsel %vm1942, %v1935, %v1939
  %v1944 = vand.u32 2147483647, %v1599
  %vm1945 = vcmp.eq.f32.partialorder %v1944, 8.507059e+37
  %v1946 = vand.u32 %v1599, 2147483648
  %v1947 = vor.u32 1.1754944e-38, %v1946
  %v1948 = vsel %vm1945, %v1947, %v1943
  %v1949 = vrcp.pop %v1602
  %v1950 = vmul.f32 %v1602, %v1949
  %v1951 = vsub.f32 1.0, %v1950
  %v1952 = vmul.f32 %v1949, %v1951
  %v1953 = vadd.f32 %v1949, %v1952
  %vm1954 = vweird.f32 %v1602
  %vm1955 = vweird.f32 %v1949
  %vm1956 = vmor %vm1954, %vm1955
  %v1957 = vsel %vm1956, %v1949, %v1953
  %v1958 = vand.u32 2147483647, %v1602
  %vm1959 = vcmp.eq.f32.partialorder %v1958, 8.507059e+37
  %v1960 = vand.u32 %v1602, 2147483648
  %v1961 = vor.u32 1.1754944e-38, %v1960
  %v1962 = vsel %vm1959, %v1961, %v1957
  %v1963 = vrcp.pop %v1605
  %v1964 = vmul.f32 %v1605, %v1963
  %v1965 = vsub.f32 1.0, %v1964
  %v1966 = vmul.f32 %v1963, %v1965
  %v1967 = vadd.f32 %v1963, %v1966
  %vm1968 = vweird.f32 %v1605
  %vm1969 = vweird.f32 %v1963
  %vm1970 = vmor %vm1968, %vm1969
  %v1971 = vsel %vm1970, %v1963, %v1967
  %v1972 = vand.u32 2147483647, %v1605
  %vm1973 = vcmp.eq.f32.partialorder %v1972, 8.507059e+37
  %v1974 = vand.u32 %v1605, 2147483648
  %v1975 = vor.u32 1.1754944e-38, %v1974
  %v1976 = vsel %vm1973, %v1975, %v1971
  %v1977 = vrcp.pop %v1608
  %v1978 = vmul.f32 %v1608, %v1977
  %v1979 = vsub.f32 1.0, %v1978
  %v1980 = vmul.f32 %v1977, %v1979
  %v1981 = vadd.f32 %v1977, %v1980
  %vm1982 = vweird.f32 %v1608
  %vm1983 = vweird.f32 %v1977
  %vm1984 = vmor %vm1982, %vm1983
  %v1985 = vsel %vm1984, %v1977, %v1981
  %v1986 = vand.u32 2147483647, %v1608
  %vm1987 = vcmp.eq.f32.partialorder %v1986, 8.507059e+37
  %v1988 = vand.u32 %v1608, 2147483648
  %v1989 = vor.u32 1.1754944e-38, %v1988
  %v1990 = vsel %vm1987, %v1989, %v1985
  %v1991 = vrcp.pop %v1611
  %v1992 = vmul.f32 %v1611, %v1991
  %v1993 = vsub.f32 1.0, %v1992
  %v1994 = vmul.f32 %v1991, %v1993
  %v1995 = vadd.f32 %v1991, %v1994
  %vm1996 = vweird.f32 %v1611
  %vm1997 = vweird.f32 %v1991
  %vm1998 = vmor %vm1996, %vm1997
  %v1999 = vsel %vm1998, %v1991, %v1995
  %v2000 = vand.u32 2147483647, %v1611
  %vm2001 = vcmp.eq.f32.partialorder %v2000, 8.507059e+37
  %v2002 = vand.u32 %v1611, 2147483648
  %v2003 = vor.u32 1.1754944e-38, %v2002
  %v2004 = vsel %vm2001, %v2003, %v1999
  %v2005 = vrcp.pop %v1614
  %v2006 = vmul.f32 %v1614, %v2005
  %v2007 = vsub.f32 1.0, %v2006
  %v2008 = vmul.f32 %v2005, %v2007
  %v2009 = vadd.f32 %v2005, %v2008
  %vm2010 = vweird.f32 %v1614
  %vm2011 = vweird.f32 %v2005
  %vm2012 = vmor %vm2010, %vm2011
  %v2013 = vsel %vm2012, %v2005, %v2009
  %v2014 = vand.u32 2147483647, %v1614
  %vm2015 = vcmp.eq.f32.partialorder %v2014, 8.507059e+37
  %v2016 = vand.u32 %v1614, 2147483648
  %v2017 = vor.u32 1.1754944e-38, %v2016
  %v2018 = vsel %vm2015, %v2017, %v2013
  %v2019 = vrcp.pop %v1617
  %v2020 = vmul.f32 %v1617, %v2019
  %v2021 = vsub.f32 1.0, %v2020
  %v2022 = vmul.f32 %v2019, %v2021
  %v2023 = vadd.f32 %v2019, %v2022
  %vm2024 = vweird.f32 %v1617
  %vm2025 = vweird.f32 %v2019
  %vm2026 = vmor %vm2024, %vm2025
  %v2027 = vsel %vm2026, %v2019, %v2023
  %v2028 = vand.u32 2147483647, %v1617
  %vm2029 = vcmp.eq.f32.partialorder %v2028, 8.507059e+37
  %v2030 = vand.u32 %v1617, 2147483648
  %v2031 = vor.u32 1.1754944e-38, %v2030
  %v2032 = vsel %vm2029, %v2031, %v2027
  %v2033 = vrcp.pop %v1620
  %v2034 = vmul.f32 %v1620, %v2033
  %v2035 = vsub.f32 1.0, %v2034
  %v2036 = vmul.f32 %v2033, %v2035
  %v2037 = vadd.f32 %v2033, %v2036
  %vm2038 = vweird.f32 %v1620
  %vm2039 = vweird.f32 %v2033
  %vm2040 = vmor %vm2038, %vm2039
  %v2041 = vsel %vm2040, %v2033, %v2037
  %v2042 = vand.u32 2147483647, %v1620
  %vm2043 = vcmp.eq.f32.partialorder %v2042, 8.507059e+37
  %v2044 = vand.u32 %v1620, 2147483648
  %v2045 = vor.u32 1.1754944e-38, %v2044
  %v2046 = vsel %vm2043, %v2045, %v2041
  %v2047 = vrcp.pop %v1623
  %v2048 = vmul.f32 %v1623, %v2047
  %v2049 = vsub.f32 1.0, %v2048
  %v2050 = vmul.f32 %v2047, %v2049
  %v2051 = vadd.f32 %v2047, %v2050
  %vm2052 = vweird.f32 %v1623
  %vm2053 = vweird.f32 %v2047
  %vm2054 = vmor %vm2052, %vm2053
  %v2055 = vsel %vm2054, %v2047, %v2051
  %v2056 = vand.u32 2147483647, %v1623
  %vm2057 = vcmp.eq.f32.partialorder %v2056, 8.507059e+37
  %v2058 = vand.u32 %v1623, 2147483648
  %v2059 = vor.u32 1.1754944e-38, %v2058
  %v2060 = vsel %vm2057, %v2059, %v2055
  %v2061 = vrcp.pop %v1626
  %v2062 = vmul.f32 %v1626, %v2061
  %v2063 = vsub.f32 1.0, %v2062
  %v2064 = vmul.f32 %v2061, %v2063
  %v2065 = vadd.f32 %v2061, %v2064
  %vm2066 = vweird.f32 %v1626
  %vm2067 = vweird.f32 %v2061
  %vm2068 = vmor %vm2066, %vm2067
  %v2069 = vsel %vm2068, %v2061, %v2065
  %v2070 = vand.u32 2147483647, %v1626
  %vm2071 = vcmp.eq.f32.partialorder %v2070, 8.507059e+37
  %v2072 = vand.u32 %v1626, 2147483648
  %v2073 = vor.u32 1.1754944e-38, %v2072
  %v2074 = vsel %vm2071, %v2073, %v2069
  %v2075 = vmul.f32 %v1468, %v1640
  %v2076 = vmul.f32 %v1470, %v1654
  %v2077 = vmul.f32 %v1472, %v1668
  %v2078 = vmul.f32 %v1474, %v1682
  %v2079 = vmul.f32 %v1476, %v1696
  %v2080 = vmul.f32 %v1478, %v1710
  %v2081 = vmul.f32 %v1480, %v1724
  %v2082 = vmul.f32 %v1482, %v1738
  %v2083 = vmul.f32 %v1484, %v1752
  %v2084 = vmul.f32 %v1486, %v1766
  %v2085 = vmul.f32 %v1488, %v1780
  %v2086 = vmul.f32 %v1490, %v1794
  %v2087 = vmul.f32 %v1492, %v1808
  %v2088 = vmul.f32 %v1494, %v1822
  %v2089 = vmul.f32 %v1496, %v1836
  %v2090 = vmul.f32 %v1498, %v1850
  %v2091 = vmul.f32 %v1500, %v1864
  %v2092 = vmul.f32 %v1502, %v1878
  %v2093 = vmul.f32 %v1504, %v1892
  %v2094 = vmul.f32 %v1506, %v1906
  %v2095 = vmul.f32 %v1508, %v1920
  %v2096 = vmul.f32 %v1510, %v1934
  %v2097 = vmul.f32 %v1512, %v1948
  %v2098 = vmul.f32 %v1514, %v1962
  %v2099 = vmul.f32 %v1516, %v1976
  %v2100 = vmul.f32 %v1518, %v1990
  %v2101 = vmul.f32 %v1520, %v2004
  %v2102 = vmul.f32 %v1522, %v2018
  %v2103 = vmul.f32 %v1524, %v2032
  %v2104 = vmul.f32 %v1526, %v2046
  %v2105 = vmul.f32 %v1528, %v2060
  %v2106 = vmul.f32 %v1530, %v2074
  %2107 = vrot.lane.b32.xlu0 %v395, 64
  %v2108 = vpop.permute.xlu0 %2107
  %v2111 = vsel %vm508, %v2075, 0
  %2113 = vmatpush.msra.mxu0 0.0
  %2114 = vmatpush.msra.mxu0 0.0
  %2115 = vmatpush.msra.mxu0 0.0
  %2116 = vmatpush.msra.mxu0 0.0
  %2117 = vmatpush.msra.mxu0 0.0
  %2118 = vmatpush.msra.mxu0 0.0
  %2119 = vmatpush.msra.mxu0 0.0
  %2120 = vmatpush.msra.mxu0 0.0
  %2121 = vmatpush.msra.mxu0 0.0
  %2122 = vmatpush.msra.mxu0 0.0
  %2123 = vmatpush.msra.mxu0 0.0
  %2124 = vmatpush.msra.mxu0 0.0
  %2125 = vmatpush.msra.mxu0 0.0
  %2126 = vmatpush.msra.mxu0 0.0
  %2127 = vmatpush.msra.mxu0 0.0
  %2128 = vmatpush.msra.mxu0 %v2108
  %2129 = vmatmul.f32.gmra.mxu0 %v2111
  %v2130 = vpop.f32.mrf.mxu0
  %v2131 = vadd.f32 0.0, %v2130
  %2132 = vdwg.mxu0
  %2133 = vrot.lane.b32.xlu0 %v398, 64
  %v2134 = vpop.permute.xlu0 %2133
  %v2137 = vsel %vm508, %v2076, 0
  %2139 = vmatpush.msra.mxu0 0.0
  %2140 = vmatpush.msra.mxu0 0.0
  %2141 = vmatpush.msra.mxu0 0.0
  %2142 = vmatpush.msra.mxu0 0.0
  %2143 = vmatpush.msra.mxu0 0.0
  %2144 = vmatpush.msra.mxu0 0.0
  %2145 = vmatpush.msra.mxu0 0.0
  %2146 = vmatpush.msra.mxu0 0.0
  %2147 = vmatpush.msra.mxu0 0.0
  %2148 = vmatpush.msra.mxu0 0.0
  %2149 = vmatpush.msra.mxu0 0.0
  %2150 = vmatpush.msra.mxu0 0.0
  %2151 = vmatpush.msra.mxu0 0.0
  %2152 = vmatpush.msra.mxu0 0.0
  %2153 = vmatpush.msra.mxu0 0.0
  %2154 = vmatpush.msra.mxu0 %v2134
  %2155 = vmatmul.f32.gmra.mxu0 %v2137
  %v2156 = vpop.f32.mrf.mxu0
  %v2157 = vadd.f32 0.0, %v2156
  %2158 = vdwg.mxu0
  %2159 = vrot.lane.b32.xlu0 %v401, 64
  %v2160 = vpop.permute.xlu0 %2159
  %v2163 = vsel %vm508, %v2077, 0
  %2165 = vmatpush.msra.mxu0 0.0
  %2166 = vmatpush.msra.mxu0 0.0
  %2167 = vmatpush.msra.mxu0 0.0
  %2168 = vmatpush.msra.mxu0 0.0
  %2169 = vmatpush.msra.mxu0 0.0
  %2170 = vmatpush.msra.mxu0 0.0
  %2171 = vmatpush.msra.mxu0 0.0
  %2172 = vmatpush.msra.mxu0 0.0
  %2173 = vmatpush.msra.mxu0 0.0
  %2174 = vmatpush.msra.mxu0 0.0
  %2175 = vmatpush.msra.mxu0 0.0
  %2176 = vmatpush.msra.mxu0 0.0
  %2177 = vmatpush.msra.mxu0 0.0
  %2178 = vmatpush.msra.mxu0 0.0
  %2179 = vmatpush.msra.mxu0 0.0
  %2180 = vmatpush.msra.mxu0 %v2160
  %2181 = vmatmul.f32.gmra.mxu0 %v2163
  %v2182 = vpop.f32.mrf.mxu0
  %v2183 = vadd.f32 0.0, %v2182
  %2184 = vdwg.mxu0
  %2185 = vrot.lane.b32.xlu0 %v404, 64
  %v2186 = vpop.permute.xlu0 %2185
  %v2189 = vsel %vm508, %v2078, 0
  %2191 = vmatpush.msra.mxu0 0.0
  %2192 = vmatpush.msra.mxu0 0.0
  %2193 = vmatpush.msra.mxu0 0.0
  %2194 = vmatpush.msra.mxu0 0.0
  %2195 = vmatpush.msra.mxu0 0.0
  %2196 = vmatpush.msra.mxu0 0.0
  %2197 = vmatpush.msra.mxu0 0.0
  %2198 = vmatpush.msra.mxu0 0.0
  %2199 = vmatpush.msra.mxu0 0.0
  %2200 = vmatpush.msra.mxu0 0.0
  %2201 = vmatpush.msra.mxu0 0.0
  %2202 = vmatpush.msra.mxu0 0.0
  %2203 = vmatpush.msra.mxu0 0.0
  %2204 = vmatpush.msra.mxu0 0.0
  %2205 = vmatpush.msra.mxu0 0.0
  %2206 = vmatpush.msra.mxu0 %v2186
  %2207 = vmatmul.f32.gmra.mxu0 %v2189
  %v2208 = vpop.f32.mrf.mxu0
  %v2209 = vadd.f32 0.0, %v2208
  %2210 = vdwg.mxu0
  %2211 = vrot.lane.b32.xlu0 %v407, 64
  %v2212 = vpop.permute.xlu0 %2211
  %v2215 = vsel %vm508, %v2079, 0
  %2217 = vmatpush.msra.mxu0 0.0
  %2218 = vmatpush.msra.mxu0 0.0
  %2219 = vmatpush.msra.mxu0 0.0
  %2220 = vmatpush.msra.mxu0 0.0
  %2221 = vmatpush.msra.mxu0 0.0
  %2222 = vmatpush.msra.mxu0 0.0
  %2223 = vmatpush.msra.mxu0 0.0
  %2224 = vmatpush.msra.mxu0 0.0
  %2225 = vmatpush.msra.mxu0 0.0
  %2226 = vmatpush.msra.mxu0 0.0
  %2227 = vmatpush.msra.mxu0 0.0
  %2228 = vmatpush.msra.mxu0 0.0
  %2229 = vmatpush.msra.mxu0 0.0
  %2230 = vmatpush.msra.mxu0 0.0
  %2231 = vmatpush.msra.mxu0 0.0
  %2232 = vmatpush.msra.mxu0 %v2212
  %2233 = vmatmul.f32.gmra.mxu0 %v2215
  %v2234 = vpop.f32.mrf.mxu0
  %v2235 = vadd.f32 0.0, %v2234
  %2236 = vdwg.mxu0
  %2237 = vrot.lane.b32.xlu0 %v410, 64
  %v2238 = vpop.permute.xlu0 %2237
  %v2241 = vsel %vm508, %v2080, 0
  %2243 = vmatpush.msra.mxu0 0.0
  %2244 = vmatpush.msra.mxu0 0.0
  %2245 = vmatpush.msra.mxu0 0.0
  %2246 = vmatpush.msra.mxu0 0.0
  %2247 = vmatpush.msra.mxu0 0.0
  %2248 = vmatpush.msra.mxu0 0.0
  %2249 = vmatpush.msra.mxu0 0.0
  %2250 = vmatpush.msra.mxu0 0.0
  %2251 = vmatpush.msra.mxu0 0.0
  %2252 = vmatpush.msra.mxu0 0.0
  %2253 = vmatpush.msra.mxu0 0.0
  %2254 = vmatpush.msra.mxu0 0.0
  %2255 = vmatpush.msra.mxu0 0.0
  %2256 = vmatpush.msra.mxu0 0.0
  %2257 = vmatpush.msra.mxu0 0.0
  %2258 = vmatpush.msra.mxu0 %v2238
  %2259 = vmatmul.f32.gmra.mxu0 %v2241
  %v2260 = vpop.f32.mrf.mxu0
  %v2261 = vadd.f32 0.0, %v2260
  %2262 = vdwg.mxu0
  %2263 = vrot.lane.b32.xlu0 %v413, 64
  %v2264 = vpop.permute.xlu0 %2263
  %v2267 = vsel %vm508, %v2081, 0
  %2269 = vmatpush.msra.mxu0 0.0
  %2270 = vmatpush.msra.mxu0 0.0
  %2271 = vmatpush.msra.mxu0 0.0
  %2272 = vmatpush.msra.mxu0 0.0
  %2273 = vmatpush.msra.mxu0 0.0
  %2274 = vmatpush.msra.mxu0 0.0
  %2275 = vmatpush.msra.mxu0 0.0
  %2276 = vmatpush.msra.mxu0 0.0
  %2277 = vmatpush.msra.mxu0 0.0
  %2278 = vmatpush.msra.mxu0 0.0
  %2279 = vmatpush.msra.mxu0 0.0
  %2280 = vmatpush.msra.mxu0 0.0
  %2281 = vmatpush.msra.mxu0 0.0
  %2282 = vmatpush.msra.mxu0 0.0
  %2283 = vmatpush.msra.mxu0 0.0
  %2284 = vmatpush.msra.mxu0 %v2264
  %2285 = vmatmul.f32.gmra.mxu0 %v2267
  %v2286 = vpop.f32.mrf.mxu0
  %v2287 = vadd.f32 0.0, %v2286
  %2288 = vdwg.mxu0
  %2289 = vrot.lane.b32.xlu0 %v416, 64
  %v2290 = vpop.permute.xlu0 %2289
  %v2293 = vsel %vm508, %v2082, 0
  %2295 = vmatpush.msra.mxu0 0.0
  %2296 = vmatpush.msra.mxu0 0.0
  %2297 = vmatpush.msra.mxu0 0.0
  %2298 = vmatpush.msra.mxu0 0.0
  %2299 = vmatpush.msra.mxu0 0.0
  %2300 = vmatpush.msra.mxu0 0.0
  %2301 = vmatpush.msra.mxu0 0.0
  %2302 = vmatpush.msra.mxu0 0.0
  %2303 = vmatpush.msra.mxu0 0.0
  %2304 = vmatpush.msra.mxu0 0.0
  %2305 = vmatpush.msra.mxu0 0.0
  %2306 = vmatpush.msra.mxu0 0.0
  %2307 = vmatpush.msra.mxu0 0.0
  %2308 = vmatpush.msra.mxu0 0.0
  %2309 = vmatpush.msra.mxu0 0.0
  %2310 = vmatpush.msra.mxu0 %v2290
  %2311 = vmatmul.f32.gmra.mxu0 %v2293
  %v2312 = vpop.f32.mrf.mxu0
  %v2313 = vadd.f32 0.0, %v2312
  %2314 = vdwg.mxu0
  %2315 = vrot.lane.b32.xlu0 %v427, 64
  %v2316 = vpop.permute.xlu0 %2315
  %v2319 = vsel %vm508, %v2083, 0
  %2321 = vmatpush.msra.mxu0 0.0
  %2322 = vmatpush.msra.mxu0 0.0
  %2323 = vmatpush.msra.mxu0 0.0
  %2324 = vmatpush.msra.mxu0 0.0
  %2325 = vmatpush.msra.mxu0 0.0
  %2326 = vmatpush.msra.mxu0 0.0
  %2327 = vmatpush.msra.mxu0 0.0
  %2328 = vmatpush.msra.mxu0 0.0
  %2329 = vmatpush.msra.mxu0 0.0
  %2330 = vmatpush.msra.mxu0 0.0
  %2331 = vmatpush.msra.mxu0 0.0
  %2332 = vmatpush.msra.mxu0 0.0
  %2333 = vmatpush.msra.mxu0 0.0
  %2334 = vmatpush.msra.mxu0 0.0
  %2335 = vmatpush.msra.mxu0 0.0
  %2336 = vmatpush.msra.mxu0 %v2316
  %2337 = vmatmul.f32.gmra.mxu0 %v2319
  %v2338 = vpop.f32.mrf.mxu0
  %v2339 = vadd.f32 0.0, %v2338
  %2340 = vdwg.mxu0
  %2341 = vrot.lane.b32.xlu0 %v429, 64
  %v2342 = vpop.permute.xlu0 %2341
  %v2345 = vsel %vm508, %v2084, 0
  %2347 = vmatpush.msra.mxu0 0.0
  %2348 = vmatpush.msra.mxu0 0.0
  %2349 = vmatpush.msra.mxu0 0.0
  %2350 = vmatpush.msra.mxu0 0.0
  %2351 = vmatpush.msra.mxu0 0.0
  %2352 = vmatpush.msra.mxu0 0.0
  %2353 = vmatpush.msra.mxu0 0.0
  %2354 = vmatpush.msra.mxu0 0.0
  %2355 = vmatpush.msra.mxu0 0.0
  %2356 = vmatpush.msra.mxu0 0.0
  %2357 = vmatpush.msra.mxu0 0.0
  %2358 = vmatpush.msra.mxu0 0.0
  %2359 = vmatpush.msra.mxu0 0.0
  %2360 = vmatpush.msra.mxu0 0.0
  %2361 = vmatpush.msra.mxu0 0.0
  %2362 = vmatpush.msra.mxu0 %v2342
  %2363 = vmatmul.f32.gmra.mxu0 %v2345
  %v2364 = vpop.f32.mrf.mxu0
  %v2365 = vadd.f32 0.0, %v2364
  %2366 = vdwg.mxu0
  %2367 = vrot.lane.b32.xlu0 %v431, 64
  %v2368 = vpop.permute.xlu0 %2367
  %v2371 = vsel %vm508, %v2085, 0
  %2373 = vmatpush.msra.mxu0 0.0
  %2374 = vmatpush.msra.mxu0 0.0
  %2375 = vmatpush.msra.mxu0 0.0
  %2376 = vmatpush.msra.mxu0 0.0
  %2377 = vmatpush.msra.mxu0 0.0
  %2378 = vmatpush.msra.mxu0 0.0
  %2379 = vmatpush.msra.mxu0 0.0
  %2380 = vmatpush.msra.mxu0 0.0
  %2381 = vmatpush.msra.mxu0 0.0
  %2382 = vmatpush.msra.mxu0 0.0
  %2383 = vmatpush.msra.mxu0 0.0
  %2384 = vmatpush.msra.mxu0 0.0
  %2385 = vmatpush.msra.mxu0 0.0
  %2386 = vmatpush.msra.mxu0 0.0
  %2387 = vmatpush.msra.mxu0 0.0
  %2388 = vmatpush.msra.mxu0 %v2368
  %2389 = vmatmul.f32.gmra.mxu0 %v2371
  %v2390 = vpop.f32.mrf.mxu0
  %v2391 = vadd.f32 0.0, %v2390
  %2392 = vdwg.mxu0
  %2393 = vrot.lane.b32.xlu0 %v433, 64
  %v2394 = vpop.permute.xlu0 %2393
  %v2397 = vsel %vm508, %v2086, 0
  %2399 = vmatpush.msra.mxu0 0.0
  %2400 = vmatpush.msra.mxu0 0.0
  %2401 = vmatpush.msra.mxu0 0.0
  %2402 = vmatpush.msra.mxu0 0.0
  %2403 = vmatpush.msra.mxu0 0.0
  %2404 = vmatpush.msra.mxu0 0.0
  %2405 = vmatpush.msra.mxu0 0.0
  %2406 = vmatpush.msra.mxu0 0.0
  %2407 = vmatpush.msra.mxu0 0.0
  %2408 = vmatpush.msra.mxu0 0.0
  %2409 = vmatpush.msra.mxu0 0.0
  %2410 = vmatpush.msra.mxu0 0.0
  %2411 = vmatpush.msra.mxu0 0.0
  %2412 = vmatpush.msra.mxu0 0.0
  %2413 = vmatpush.msra.mxu0 0.0
  %2414 = vmatpush.msra.mxu0 %v2394
  %2415 = vmatmul.f32.gmra.mxu0 %v2397
  %v2416 = vpop.f32.mrf.mxu0
  %v2417 = vadd.f32 0.0, %v2416
  %2418 = vdwg.mxu0
  %2419 = vrot.lane.b32.xlu0 %v435, 64
  %v2420 = vpop.permute.xlu0 %2419
  %v2423 = vsel %vm508, %v2087, 0
  %2425 = vmatpush.msra.mxu0 0.0
  %2426 = vmatpush.msra.mxu0 0.0
  %2427 = vmatpush.msra.mxu0 0.0
  %2428 = vmatpush.msra.mxu0 0.0
  %2429 = vmatpush.msra.mxu0 0.0
  %2430 = vmatpush.msra.mxu0 0.0
  %2431 = vmatpush.msra.mxu0 0.0
  %2432 = vmatpush.msra.mxu0 0.0
  %2433 = vmatpush.msra.mxu0 0.0
  %2434 = vmatpush.msra.mxu0 0.0
  %2435 = vmatpush.msra.mxu0 0.0
  %2436 = vmatpush.msra.mxu0 0.0
  %2437 = vmatpush.msra.mxu0 0.0
  %2438 = vmatpush.msra.mxu0 0.0
  %2439 = vmatpush.msra.mxu0 0.0
  %2440 = vmatpush.msra.mxu0 %v2420
  %2441 = vmatmul.f32.gmra.mxu0 %v2423
  %v2442 = vpop.f32.mrf.mxu0
  %v2443 = vadd.f32 0.0, %v2442
  %2444 = vdwg.mxu0
  %2445 = vrot.lane.b32.xlu0 %v437, 64
  %v2446 = vpop.permute.xlu0 %2445
  %v2449 = vsel %vm508, %v2088, 0
  %2451 = vmatpush.msra.mxu0 0.0
  %2452 = vmatpush.msra.mxu0 0.0
  %2453 = vmatpush.msra.mxu0 0.0
  %2454 = vmatpush.msra.mxu0 0.0
  %2455 = vmatpush.msra.mxu0 0.0
  %2456 = vmatpush.msra.mxu0 0.0
  %2457 = vmatpush.msra.mxu0 0.0
  %2458 = vmatpush.msra.mxu0 0.0
  %2459 = vmatpush.msra.mxu0 0.0
  %2460 = vmatpush.msra.mxu0 0.0
  %2461 = vmatpush.msra.mxu0 0.0
  %2462 = vmatpush.msra.mxu0 0.0
  %2463 = vmatpush.msra.mxu0 0.0
  %2464 = vmatpush.msra.mxu0 0.0
  %2465 = vmatpush.msra.mxu0 0.0
  %2466 = vmatpush.msra.mxu0 %v2446
  %2467 = vmatmul.f32.gmra.mxu0 %v2449
  %v2468 = vpop.f32.mrf.mxu0
  %v2469 = vadd.f32 0.0, %v2468
  %2470 = vdwg.mxu0
  %2471 = vrot.lane.b32.xlu0 %v439, 64
  %v2472 = vpop.permute.xlu0 %2471
  %v2475 = vsel %vm508, %v2089, 0
  %2477 = vmatpush.msra.mxu0 0.0
  %2478 = vmatpush.msra.mxu0 0.0
  %2479 = vmatpush.msra.mxu0 0.0
  %2480 = vmatpush.msra.mxu0 0.0
  %2481 = vmatpush.msra.mxu0 0.0
  %2482 = vmatpush.msra.mxu0 0.0
  %2483 = vmatpush.msra.mxu0 0.0
  %2484 = vmatpush.msra.mxu0 0.0
  %2485 = vmatpush.msra.mxu0 0.0
  %2486 = vmatpush.msra.mxu0 0.0
  %2487 = vmatpush.msra.mxu0 0.0
  %2488 = vmatpush.msra.mxu0 0.0
  %2489 = vmatpush.msra.mxu0 0.0
  %2490 = vmatpush.msra.mxu0 0.0
  %2491 = vmatpush.msra.mxu0 0.0
  %2492 = vmatpush.msra.mxu0 %v2472
  %2493 = vmatmul.f32.gmra.mxu0 %v2475
  %v2494 = vpop.f32.mrf.mxu0
  %v2495 = vadd.f32 0.0, %v2494
  %2496 = vdwg.mxu0
  %2497 = vrot.lane.b32.xlu0 %v441, 64
  %v2498 = vpop.permute.xlu0 %2497
  %v2501 = vsel %vm508, %v2090, 0
  %2503 = vmatpush.msra.mxu0 0.0
  %2504 = vmatpush.msra.mxu0 0.0
  %2505 = vmatpush.msra.mxu0 0.0
  %2506 = vmatpush.msra.mxu0 0.0
  %2507 = vmatpush.msra.mxu0 0.0
  %2508 = vmatpush.msra.mxu0 0.0
  %2509 = vmatpush.msra.mxu0 0.0
  %2510 = vmatpush.msra.mxu0 0.0
  %2511 = vmatpush.msra.mxu0 0.0
  %2512 = vmatpush.msra.mxu0 0.0
  %2513 = vmatpush.msra.mxu0 0.0
  %2514 = vmatpush.msra.mxu0 0.0
  %2515 = vmatpush.msra.mxu0 0.0
  %2516 = vmatpush.msra.mxu0 0.0
  %2517 = vmatpush.msra.mxu0 0.0
  %2518 = vmatpush.msra.mxu0 %v2498
  %2519 = vmatmul.f32.gmra.mxu0 %v2501
  %v2520 = vpop.f32.mrf.mxu0
  %v2521 = vadd.f32 0.0, %v2520
  %2522 = vdwg.mxu0
  %2523 = vrot.lane.b32.xlu0 %v443, 64
  %v2524 = vpop.permute.xlu0 %2523
  %v2527 = vsel %vm508, %v2091, 0
  %2529 = vmatpush.msra.mxu0 0.0
  %2530 = vmatpush.msra.mxu0 0.0
  %2531 = vmatpush.msra.mxu0 0.0
  %2532 = vmatpush.msra.mxu0 0.0
  %2533 = vmatpush.msra.mxu0 0.0
  %2534 = vmatpush.msra.mxu0 0.0
  %2535 = vmatpush.msra.mxu0 0.0
  %2536 = vmatpush.msra.mxu0 0.0
  %2537 = vmatpush.msra.mxu0 0.0
  %2538 = vmatpush.msra.mxu0 0.0
  %2539 = vmatpush.msra.mxu0 0.0
  %2540 = vmatpush.msra.mxu0 0.0
  %2541 = vmatpush.msra.mxu0 0.0
  %2542 = vmatpush.msra.mxu0 0.0
  %2543 = vmatpush.msra.mxu0 0.0
  %2544 = vmatpush.msra.mxu0 %v2524
  %2545 = vmatmul.f32.gmra.mxu0 %v2527
  %v2546 = vpop.f32.mrf.mxu0
  %v2547 = vadd.f32 0.0, %v2546
  %2548 = vdwg.mxu0
  %2549 = vrot.lane.b32.xlu0 %v445, 64
  %v2550 = vpop.permute.xlu0 %2549
  %v2553 = vsel %vm508, %v2092, 0
  %2555 = vmatpush.msra.mxu0 0.0
  %2556 = vmatpush.msra.mxu0 0.0
  %2557 = vmatpush.msra.mxu0 0.0
  %2558 = vmatpush.msra.mxu0 0.0
  %2559 = vmatpush.msra.mxu0 0.0
  %2560 = vmatpush.msra.mxu0 0.0
  %2561 = vmatpush.msra.mxu0 0.0
  %2562 = vmatpush.msra.mxu0 0.0
  %2563 = vmatpush.msra.mxu0 0.0
  %2564 = vmatpush.msra.mxu0 0.0
  %2565 = vmatpush.msra.mxu0 0.0
  %2566 = vmatpush.msra.mxu0 0.0
  %2567 = vmatpush.msra.mxu0 0.0
  %2568 = vmatpush.msra.mxu0 0.0
  %2569 = vmatpush.msra.mxu0 0.0
  %2570 = vmatpush.msra.mxu0 %v2550
  %2571 = vmatmul.f32.gmra.mxu0 %v2553
  %v2572 = vpop.f32.mrf.mxu0
  %v2573 = vadd.f32 0.0, %v2572
  %2574 = vdwg.mxu0
  %2575 = vrot.lane.b32.xlu0 %v447, 64
  %v2576 = vpop.permute.xlu0 %2575
  %v2579 = vsel %vm508, %v2093, 0
  %2581 = vmatpush.msra.mxu0 0.0
  %2582 = vmatpush.msra.mxu0 0.0
  %2583 = vmatpush.msra.mxu0 0.0
  %2584 = vmatpush.msra.mxu0 0.0
  %2585 = vmatpush.msra.mxu0 0.0
  %2586 = vmatpush.msra.mxu0 0.0
  %2587 = vmatpush.msra.mxu0 0.0
  %2588 = vmatpush.msra.mxu0 0.0
  %2589 = vmatpush.msra.mxu0 0.0
  %2590 = vmatpush.msra.mxu0 0.0
  %2591 = vmatpush.msra.mxu0 0.0
  %2592 = vmatpush.msra.mxu0 0.0
  %2593 = vmatpush.msra.mxu0 0.0
  %2594 = vmatpush.msra.mxu0 0.0
  %2595 = vmatpush.msra.mxu0 0.0
  %2596 = vmatpush.msra.mxu0 %v2576
  %2597 = vmatmul.f32.gmra.mxu0 %v2579
  %v2598 = vpop.f32.mrf.mxu0
  %v2599 = vadd.f32 0.0, %v2598
  %2600 = vdwg.mxu0
  %2601 = vrot.lane.b32.xlu0 %v449, 64
  %v2602 = vpop.permute.xlu0 %2601
  %v2605 = vsel %vm508, %v2094, 0
  %2607 = vmatpush.msra.mxu0 0.0
  %2608 = vmatpush.msra.mxu0 0.0
  %2609 = vmatpush.msra.mxu0 0.0
  %2610 = vmatpush.msra.mxu0 0.0
  %2611 = vmatpush.msra.mxu0 0.0
  %2612 = vmatpush.msra.mxu0 0.0
  %2613 = vmatpush.msra.mxu0 0.0
  %2614 = vmatpush.msra.mxu0 0.0
  %2615 = vmatpush.msra.mxu0 0.0
  %2616 = vmatpush.msra.mxu0 0.0
  %2617 = vmatpush.msra.mxu0 0.0
  %2618 = vmatpush.msra.mxu0 0.0
  %2619 = vmatpush.msra.mxu0 0.0
  %2620 = vmatpush.msra.mxu0 0.0
  %2621 = vmatpush.msra.mxu0 0.0
  %2622 = vmatpush.msra.mxu0 %v2602
  %2623 = vmatmul.f32.gmra.mxu0 %v2605
  %v2624 = vpop.f32.mrf.mxu0
  %v2625 = vadd.f32 0.0, %v2624
  %2626 = vdwg.mxu0
  %2627 = vrot.lane.b32.xlu0 %v451, 64
  %v2628 = vpop.permute.xlu0 %2627
  %v2631 = vsel %vm508, %v2095, 0
  %2633 = vmatpush.msra.mxu0 0.0
  %2634 = vmatpush.msra.mxu0 0.0
  %2635 = vmatpush.msra.mxu0 0.0
  %2636 = vmatpush.msra.mxu0 0.0
  %2637 = vmatpush.msra.mxu0 0.0
  %2638 = vmatpush.msra.mxu0 0.0
  %2639 = vmatpush.msra.mxu0 0.0
  %2640 = vmatpush.msra.mxu0 0.0
  %2641 = vmatpush.msra.mxu0 0.0
  %2642 = vmatpush.msra.mxu0 0.0
  %2643 = vmatpush.msra.mxu0 0.0
  %2644 = vmatpush.msra.mxu0 0.0
  %2645 = vmatpush.msra.mxu0 0.0
  %2646 = vmatpush.msra.mxu0 0.0
  %2647 = vmatpush.msra.mxu0 0.0
  %2648 = vmatpush.msra.mxu0 %v2628
  %2649 = vmatmul.f32.gmra.mxu0 %v2631
  %v2650 = vpop.f32.mrf.mxu0
  %v2651 = vadd.f32 0.0, %v2650
  %2652 = vdwg.mxu0
  %2653 = vrot.lane.b32.xlu0 %v453, 64
  %v2654 = vpop.permute.xlu0 %2653
  %v2657 = vsel %vm508, %v2096, 0
  %2659 = vmatpush.msra.mxu0 0.0
  %2660 = vmatpush.msra.mxu0 0.0
  %2661 = vmatpush.msra.mxu0 0.0
  %2662 = vmatpush.msra.mxu0 0.0
  %2663 = vmatpush.msra.mxu0 0.0
  %2664 = vmatpush.msra.mxu0 0.0
  %2665 = vmatpush.msra.mxu0 0.0
  %2666 = vmatpush.msra.mxu0 0.0
  %2667 = vmatpush.msra.mxu0 0.0
  %2668 = vmatpush.msra.mxu0 0.0
  %2669 = vmatpush.msra.mxu0 0.0
  %2670 = vmatpush.msra.mxu0 0.0
  %2671 = vmatpush.msra.mxu0 0.0
  %2672 = vmatpush.msra.mxu0 0.0
  %2673 = vmatpush.msra.mxu0 0.0
  %2674 = vmatpush.msra.mxu0 %v2654
  %2675 = vmatmul.f32.gmra.mxu0 %v2657
  %v2676 = vpop.f32.mrf.mxu0
  %v2677 = vadd.f32 0.0, %v2676
  %2678 = vdwg.mxu0
  %2679 = vrot.lane.b32.xlu0 %v455, 64
  %v2680 = vpop.permute.xlu0 %2679
  %v2683 = vsel %vm508, %v2097, 0
  %2685 = vmatpush.msra.mxu0 0.0
  %2686 = vmatpush.msra.mxu0 0.0
  %2687 = vmatpush.msra.mxu0 0.0
  %2688 = vmatpush.msra.mxu0 0.0
  %2689 = vmatpush.msra.mxu0 0.0
  %2690 = vmatpush.msra.mxu0 0.0
  %2691 = vmatpush.msra.mxu0 0.0
  %2692 = vmatpush.msra.mxu0 0.0
  %2693 = vmatpush.msra.mxu0 0.0
  %2694 = vmatpush.msra.mxu0 0.0
  %2695 = vmatpush.msra.mxu0 0.0
  %2696 = vmatpush.msra.mxu0 0.0
  %2697 = vmatpush.msra.mxu0 0.0
  %2698 = vmatpush.msra.mxu0 0.0
  %2699 = vmatpush.msra.mxu0 0.0
  %2700 = vmatpush.msra.mxu0 %v2680
  %2701 = vmatmul.f32.gmra.mxu0 %v2683
  %v2702 = vpop.f32.mrf.mxu0
  %v2703 = vadd.f32 0.0, %v2702
  %2704 = vdwg.mxu0
  %2705 = vrot.lane.b32.xlu0 %v457, 64
  %v2706 = vpop.permute.xlu0 %2705
  %v2709 = vsel %vm508, %v2098, 0
  %2711 = vmatpush.msra.mxu0 0.0
  %2712 = vmatpush.msra.mxu0 0.0
  %2713 = vmatpush.msra.mxu0 0.0
  %2714 = vmatpush.msra.mxu0 0.0
  %2715 = vmatpush.msra.mxu0 0.0
  %2716 = vmatpush.msra.mxu0 0.0
  %2717 = vmatpush.msra.mxu0 0.0
  %2718 = vmatpush.msra.mxu0 0.0
  %2719 = vmatpush.msra.mxu0 0.0
  %2720 = vmatpush.msra.mxu0 0.0
  %2721 = vmatpush.msra.mxu0 0.0
  %2722 = vmatpush.msra.mxu0 0.0
  %2723 = vmatpush.msra.mxu0 0.0
  %2724 = vmatpush.msra.mxu0 0.0
  %2725 = vmatpush.msra.mxu0 0.0
  %2726 = vmatpush.msra.mxu0 %v2706
  %2727 = vmatmul.f32.gmra.mxu0 %v2709
  %v2728 = vpop.f32.mrf.mxu0
  %v2729 = vadd.f32 0.0, %v2728
  %2730 = vdwg.mxu0
  %2731 = vrot.lane.b32.xlu0 %v459, 64
  %v2732 = vpop.permute.xlu0 %2731
  %v2735 = vsel %vm508, %v2099, 0
  %2737 = vmatpush.msra.mxu0 0.0
  %2738 = vmatpush.msra.mxu0 0.0
  %2739 = vmatpush.msra.mxu0 0.0
  %2740 = vmatpush.msra.mxu0 0.0
  %2741 = vmatpush.msra.mxu0 0.0
  %2742 = vmatpush.msra.mxu0 0.0
  %2743 = vmatpush.msra.mxu0 0.0
  %2744 = vmatpush.msra.mxu0 0.0
  %2745 = vmatpush.msra.mxu0 0.0
  %2746 = vmatpush.msra.mxu0 0.0
  %2747 = vmatpush.msra.mxu0 0.0
  %2748 = vmatpush.msra.mxu0 0.0
  %2749 = vmatpush.msra.mxu0 0.0
  %2750 = vmatpush.msra.mxu0 0.0
  %2751 = vmatpush.msra.mxu0 0.0
  %2752 = vmatpush.msra.mxu0 %v2732
  %2753 = vmatmul.f32.gmra.mxu0 %v2735
  %v2754 = vpop.f32.mrf.mxu0
  %v2755 = vadd.f32 0.0, %v2754
  %2756 = vdwg.mxu0
  %2757 = vrot.lane.b32.xlu0 %v461, 64
  %v2758 = vpop.permute.xlu0 %2757
  %v2761 = vsel %vm508, %v2100, 0
  %2763 = vmatpush.msra.mxu0 0.0
  %2764 = vmatpush.msra.mxu0 0.0
  %2765 = vmatpush.msra.mxu0 0.0
  %2766 = vmatpush.msra.mxu0 0.0
  %2767 = vmatpush.msra.mxu0 0.0
  %2768 = vmatpush.msra.mxu0 0.0
  %2769 = vmatpush.msra.mxu0 0.0
  %2770 = vmatpush.msra.mxu0 0.0
  %2771 = vmatpush.msra.mxu0 0.0
  %2772 = vmatpush.msra.mxu0 0.0
  %2773 = vmatpush.msra.mxu0 0.0
  %2774 = vmatpush.msra.mxu0 0.0
  %2775 = vmatpush.msra.mxu0 0.0
  %2776 = vmatpush.msra.mxu0 0.0
  %2777 = vmatpush.msra.mxu0 0.0
  %2778 = vmatpush.msra.mxu0 %v2758
  %2779 = vmatmul.f32.gmra.mxu0 %v2761
  %v2780 = vpop.f32.mrf.mxu0
  %v2781 = vadd.f32 0.0, %v2780
  %2782 = vdwg.mxu0
  %2783 = vrot.lane.b32.xlu0 %v463, 64
  %v2784 = vpop.permute.xlu0 %2783
  %v2787 = vsel %vm508, %v2101, 0
  %2789 = vmatpush.msra.mxu0 0.0
  %2790 = vmatpush.msra.mxu0 0.0
  %2791 = vmatpush.msra.mxu0 0.0
  %2792 = vmatpush.msra.mxu0 0.0
  %2793 = vmatpush.msra.mxu0 0.0
  %2794 = vmatpush.msra.mxu0 0.0
  %2795 = vmatpush.msra.mxu0 0.0
  %2796 = vmatpush.msra.mxu0 0.0
  %2797 = vmatpush.msra.mxu0 0.0
  %2798 = vmatpush.msra.mxu0 0.0
  %2799 = vmatpush.msra.mxu0 0.0
  %2800 = vmatpush.msra.mxu0 0.0
  %2801 = vmatpush.msra.mxu0 0.0
  %2802 = vmatpush.msra.mxu0 0.0
  %2803 = vmatpush.msra.mxu0 0.0
  %2804 = vmatpush.msra.mxu0 %v2784
  %2805 = vmatmul.f32.gmra.mxu0 %v2787
  %v2806 = vpop.f32.mrf.mxu0
  %v2807 = vadd.f32 0.0, %v2806
  %2808 = vdwg.mxu0
  %2809 = vrot.lane.b32.xlu0 %v465, 64
  %v2810 = vpop.permute.xlu0 %2809
  %v2813 = vsel %vm508, %v2102, 0
  %2815 = vmatpush.msra.mxu0 0.0
  %2816 = vmatpush.msra.mxu0 0.0
  %2817 = vmatpush.msra.mxu0 0.0
  %2818 = vmatpush.msra.mxu0 0.0
  %2819 = vmatpush.msra.mxu0 0.0
  %2820 = vmatpush.msra.mxu0 0.0
  %2821 = vmatpush.msra.mxu0 0.0
  %2822 = vmatpush.msra.mxu0 0.0
  %2823 = vmatpush.msra.mxu0 0.0
  %2824 = vmatpush.msra.mxu0 0.0
  %2825 = vmatpush.msra.mxu0 0.0
  %2826 = vmatpush.msra.mxu0 0.0
  %2827 = vmatpush.msra.mxu0 0.0
  %2828 = vmatpush.msra.mxu0 0.0
  %2829 = vmatpush.msra.mxu0 0.0
  %2830 = vmatpush.msra.mxu0 %v2810
  %2831 = vmatmul.f32.gmra.mxu0 %v2813
  %v2832 = vpop.f32.mrf.mxu0
  %v2833 = vadd.f32 0.0, %v2832
  %2834 = vdwg.mxu0
  %2835 = vrot.lane.b32.xlu0 %v467, 64
  %v2836 = vpop.permute.xlu0 %2835
  %v2839 = vsel %vm508, %v2103, 0
  %2841 = vmatpush.msra.mxu0 0.0
  %2842 = vmatpush.msra.mxu0 0.0
  %2843 = vmatpush.msra.mxu0 0.0
  %2844 = vmatpush.msra.mxu0 0.0
  %2845 = vmatpush.msra.mxu0 0.0
  %2846 = vmatpush.msra.mxu0 0.0
  %2847 = vmatpush.msra.mxu0 0.0
  %2848 = vmatpush.msra.mxu0 0.0
  %2849 = vmatpush.msra.mxu0 0.0
  %2850 = vmatpush.msra.mxu0 0.0
  %2851 = vmatpush.msra.mxu0 0.0
  %2852 = vmatpush.msra.mxu0 0.0
  %2853 = vmatpush.msra.mxu0 0.0
  %2854 = vmatpush.msra.mxu0 0.0
  %2855 = vmatpush.msra.mxu0 0.0
  %2856 = vmatpush.msra.mxu0 %v2836
  %2857 = vmatmul.f32.gmra.mxu0 %v2839
  %v2858 = vpop.f32.mrf.mxu0
  %v2859 = vadd.f32 0.0, %v2858
  %2860 = vdwg.mxu0
  %2861 = vrot.lane.b32.xlu0 %v469, 64
  %v2862 = vpop.permute.xlu0 %2861
  %v2865 = vsel %vm508, %v2104, 0
  %2867 = vmatpush.msra.mxu0 0.0
  %2868 = vmatpush.msra.mxu0 0.0
  %2869 = vmatpush.msra.mxu0 0.0
  %2870 = vmatpush.msra.mxu0 0.0
  %2871 = vmatpush.msra.mxu0 0.0
  %2872 = vmatpush.msra.mxu0 0.0
  %2873 = vmatpush.msra.mxu0 0.0
  %2874 = vmatpush.msra.mxu0 0.0
  %2875 = vmatpush.msra.mxu0 0.0
  %2876 = vmatpush.msra.mxu0 0.0
  %2877 = vmatpush.msra.mxu0 0.0
  %2878 = vmatpush.msra.mxu0 0.0
  %2879 = vmatpush.msra.mxu0 0.0
  %2880 = vmatpush.msra.mxu0 0.0
  %2881 = vmatpush.msra.mxu0 0.0
  %2882 = vmatpush.msra.mxu0 %v2862
  %2883 = vmatmul.f32.gmra.mxu0 %v2865
  %v2884 = vpop.f32.mrf.mxu0
  %v2885 = vadd.f32 0.0, %v2884
  %2886 = vdwg.mxu0
  %2887 = vrot.lane.b32.xlu0 %v471, 64
  %v2888 = vpop.permute.xlu0 %2887
  %v2891 = vsel %vm508, %v2105, 0
  %2893 = vmatpush.msra.mxu0 0.0
  %2894 = vmatpush.msra.mxu0 0.0
  %2895 = vmatpush.msra.mxu0 0.0
  %2896 = vmatpush.msra.mxu0 0.0
  %2897 = vmatpush.msra.mxu0 0.0
  %2898 = vmatpush.msra.mxu0 0.0
  %2899 = vmatpush.msra.mxu0 0.0
  %2900 = vmatpush.msra.mxu0 0.0
  %2901 = vmatpush.msra.mxu0 0.0
  %2902 = vmatpush.msra.mxu0 0.0
  %2903 = vmatpush.msra.mxu0 0.0
  %2904 = vmatpush.msra.mxu0 0.0
  %2905 = vmatpush.msra.mxu0 0.0
  %2906 = vmatpush.msra.mxu0 0.0
  %2907 = vmatpush.msra.mxu0 0.0
  %2908 = vmatpush.msra.mxu0 %v2888
  %2909 = vmatmul.f32.gmra.mxu0 %v2891
  %v2910 = vpop.f32.mrf.mxu0
  %v2911 = vadd.f32 0.0, %v2910
  %2912 = vdwg.mxu0
  %2913 = vrot.lane.b32.xlu0 %v473, 64
  %v2914 = vpop.permute.xlu0 %2913
  %v2917 = vsel %vm508, %v2106, 0
  %2919 = vmatpush.msra.mxu0 0.0
  %2920 = vmatpush.msra.mxu0 0.0
  %2921 = vmatpush.msra.mxu0 0.0
  %2922 = vmatpush.msra.mxu0 0.0
  %2923 = vmatpush.msra.mxu0 0.0
  %2924 = vmatpush.msra.mxu0 0.0
  %2925 = vmatpush.msra.mxu0 0.0
  %2926 = vmatpush.msra.mxu0 0.0
  %2927 = vmatpush.msra.mxu0 0.0
  %2928 = vmatpush.msra.mxu0 0.0
  %2929 = vmatpush.msra.mxu0 0.0
  %2930 = vmatpush.msra.mxu0 0.0
  %2931 = vmatpush.msra.mxu0 0.0
  %2932 = vmatpush.msra.mxu0 0.0
  %2933 = vmatpush.msra.mxu0 0.0
  %2934 = vmatpush.msra.mxu0 %v2914
  %2935 = vmatmul.f32.gmra.mxu0 %v2917
  %v2936 = vpop.f32.mrf.mxu0
  %v2937 = vadd.f32 0.0, %v2936
  %2938 = vdwg.mxu0
  %2947 = vrot.lane.b32.xlu0 %v2339, 8
  %v2948 = vpop.permute.xlu0 %2947
  %2949 = vrot.lane.b32.xlu0 %v2365, 8
  %v2950 = vpop.permute.xlu0 %2949
  %2951 = vrot.lane.b32.xlu0 %v2391, 8
  %v2952 = vpop.permute.xlu0 %2951
  %2953 = vrot.lane.b32.xlu0 %v2417, 8
  %v2954 = vpop.permute.xlu0 %2953
  %2955 = vrot.lane.b32.xlu0 %v2443, 8
  %v2956 = vpop.permute.xlu0 %2955
  %2957 = vrot.lane.b32.xlu0 %v2469, 8
  %v2958 = vpop.permute.xlu0 %2957
  %2959 = vrot.lane.b32.xlu0 %v2495, 8
  %v2960 = vpop.permute.xlu0 %2959
  %2961 = vrot.lane.b32.xlu0 %v2521, 8
  %v2962 = vpop.permute.xlu0 %2961
  %2979 = vrot.lane.b32.xlu0 %v2547, 16
  %v2980 = vpop.permute.xlu0 %2979
  %2981 = vrot.lane.b32.xlu0 %v2573, 16
  %v2982 = vpop.permute.xlu0 %2981
  %2983 = vrot.lane.b32.xlu0 %v2599, 16
  %v2984 = vpop.permute.xlu0 %2983
  %2985 = vrot.lane.b32.xlu0 %v2625, 16
  %v2986 = vpop.permute.xlu0 %2985
  %2987 = vrot.lane.b32.xlu0 %v2651, 16
  %v2988 = vpop.permute.xlu0 %2987
  %2989 = vrot.lane.b32.xlu0 %v2677, 16
  %v2990 = vpop.permute.xlu0 %2989
  %2991 = vrot.lane.b32.xlu0 %v2703, 16
  %v2992 = vpop.permute.xlu0 %2991
  %2993 = vrot.lane.b32.xlu0 %v2729, 16
  %v2994 = vpop.permute.xlu0 %2993
  %3011 = vrot.lane.b32.xlu0 %v2755, 24
  %v3012 = vpop.permute.xlu0 %3011
  %3013 = vrot.lane.b32.xlu0 %v2781, 24
  %v3014 = vpop.permute.xlu0 %3013
  %3015 = vrot.lane.b32.xlu0 %v2807, 24
  %v3016 = vpop.permute.xlu0 %3015
  %3017 = vrot.lane.b32.xlu0 %v2833, 24
  %v3018 = vpop.permute.xlu0 %3017
  %3019 = vrot.lane.b32.xlu0 %v2859, 24
  %v3020 = vpop.permute.xlu0 %3019
  %3021 = vrot.lane.b32.xlu0 %v2885, 24
  %v3022 = vpop.permute.xlu0 %3021
  %3023 = vrot.lane.b32.xlu0 %v2911, 24
  %v3024 = vpop.permute.xlu0 %3023
  %3025 = vrot.lane.b32.xlu0 %v2937, 24
  %v3026 = vpop.permute.xlu0 %3025
  %v3035 = vsel %vm508, %v2131, %v2948
  %v3036 = vsel %vm508, %v2157, %v2950
  %v3037 = vsel %vm508, %v2183, %v2952
  %v3038 = vsel %vm508, %v2209, %v2954
  %v3039 = vsel %vm508, %v2235, %v2956
  %v3040 = vsel %vm508, %v2261, %v2958
  %v3041 = vsel %vm508, %v2287, %v2960
  %v3042 = vsel %vm508, %v2313, %v2962
  %vm3043 = vcmask 130048
  %v3044 = vsel %vm3043, %v3035, %v2980
  %v3045 = vsel %vm3043, %v3036, %v2982
  %v3046 = vsel %vm3043, %v3037, %v2984
  %v3047 = vsel %vm3043, %v3038, %v2986
  %v3048 = vsel %vm3043, %v3039, %v2988
  %v3049 = vsel %vm3043, %v3040, %v2990
  %v3050 = vsel %vm3043, %v3041, %v2992
  %v3051 = vsel %vm3043, %v3042, %v2994
  %vm3052 = vcmask 195584
  %v3053 = vsel %vm3052, %v3044, %v3012
  %v3054 = vsel %vm3052, %v3045, %v3014
  %v3055 = vsel %vm3052, %v3046, %v3016
  %v3056 = vsel %vm3052, %v3047, %v3018
  %v3057 = vsel %vm3052, %v3048, %v3020
  %v3058 = vsel %vm3052, %v3049, %v3022
  %v3059 = vsel %vm3052, %v3050, %v3024
  %v3060 = vsel %vm3052, %v3051, %v3026
  %v3061 = vld [vmem:[%s3] sm:$0xff]
  %v3062 = vld [vmem:[%s3 + $0x8] sm:$0xff]
  %v3063 = vld [vmem:[%s3 + $0x10] sm:$0xff]
  %v3064 = vld [vmem:[%s3 + $0x18] sm:$0xff]
  %v3066 = vsel %vm37, %v3053, 0
  %v3069 = vsel %vm37, %v3054, 0
  %v3072 = vsel %vm37, %v3055, 0
  %v3075 = vsel %vm37, %v3056, 0
  %v3078 = vsel %vm37, %v3057, 0
  %v3081 = vsel %vm37, %v3058, 0
  %v3084 = vsel %vm37, %v3059, 0
  %v3087 = vsel %vm37, %v3060, 0
  %3089 = vmatpush.msra.mxu0 0.0
  %3090 = vmatpush.msra.mxu0 0.0
  %3091 = vmatpush.msra.mxu0 0.0
  %3092 = vmatpush.msra.mxu0 0.0
  %3093 = vmatpush.msra.mxu0 0.0
  %3094 = vmatpush.msra.mxu0 0.0
  %3095 = vmatpush.msra.mxu0 0.0
  %3096 = vmatpush.msra.mxu0 0.0
  %3097 = vmatpush.msra.mxu0 0.0
  %3098 = vmatpush.msra.mxu0 0.0
  %3099 = vmatpush.msra.mxu0 0.0
  %3100 = vmatpush.msra.mxu0 0.0
  %3101 = vmatpush.msra.mxu0 %v3064
  %3102 = vmatpush.msra.mxu0 %v3063
  %3103 = vmatpush.msra.mxu0 %v3062
  %3104 = vmatpush.msra.mxu0 %v3061
  %3105 = vmatmul.f32.gmra.mxu0 %v3066
  %v3106 = vpop.f32.mrf.mxu0
  %v3107 = vadd.f32 0.0, %v3106
  %3108 = vmatmul.f32.gmra.mxu0 %v3069
  %v3109 = vpop.f32.mrf.mxu0
  %v3110 = vadd.f32 0.0, %v3109
  %3111 = vmatmul.f32.gmra.mxu0 %v3072
  %v3112 = vpop.f32.mrf.mxu0
  %v3113 = vadd.f32 0.0, %v3112
  %3114 = vmatmul.f32.gmra.mxu0 %v3075
  %v3115 = vpop.f32.mrf.mxu0
  %v3116 = vadd.f32 0.0, %v3115
  %3117 = vmatmul.f32.gmra.mxu0 %v3078
  %v3118 = vpop.f32.mrf.mxu0
  %v3119 = vadd.f32 0.0, %v3118
  %3120 = vmatmul.f32.gmra.mxu0 %v3081
  %v3121 = vpop.f32.mrf.mxu0
  %v3122 = vadd.f32 0.0, %v3121
  %3123 = vmatmul.f32.gmra.mxu0 %v3084
  %v3124 = vpop.f32.mrf.mxu0
  %v3125 = vadd.f32 0.0, %v3124
  %3126 = vmatmul.f32.gmra.mxu0 %v3087
  %v3127 = vpop.f32.mrf.mxu0
  %v3128 = vadd.f32 0.0, %v3127
  %3129 = vdwg.mxu0
  %v3130 = vadd.f32 %v29, %v3107
  %v3131 = vadd.f32 %v30, %v3110
  %v3132 = vadd.f32 %v31, %v3113
  %v3133 = vadd.f32 %v32, %v3116
  %v3134 = vadd.f32 %v33, %v3119
  %v3135 = vadd.f32 %v34, %v3122
  %v3136 = vadd.f32 %v35, %v3125
  %v3137 = vadd.f32 %v36, %v3128
  %v3138 = vsel %vm37, %v3130, 0.0
  %3139 = vadd.xlane.f32.xlu0 %v3138
  %v3140 = vpop.xlane.xlu0 %3139
  %v3141 = vsel %vm37, %v3131, 0.0
  %3142 = vadd.xlane.f32.xlu0 %v3141
  %v3143 = vpop.xlane.xlu0 %3142
  %v3144 = vsel %vm37, %v3132, 0.0
  %3145 = vadd.xlane.f32.xlu0 %v3144
  %v3146 = vpop.xlane.xlu0 %3145
  %v3147 = vsel %vm37, %v3133, 0.0
  %3148 = vadd.xlane.f32.xlu0 %v3147
  %v3149 = vpop.xlane.xlu0 %3148
  %v3150 = vsel %vm37, %v3134, 0.0
  %3151 = vadd.xlane.f32.xlu0 %v3150
  %v3152 = vpop.xlane.xlu0 %3151
  %v3153 = vsel %vm37, %v3135, 0.0
  %3154 = vadd.xlane.f32.xlu0 %v3153
  %v3155 = vpop.xlane.xlu0 %3154
  %v3156 = vsel %vm37, %v3136, 0.0
  %3157 = vadd.xlane.f32.xlu0 %v3156
  %v3158 = vpop.xlane.xlu0 %3157
  %v3159 = vsel %vm37, %v3137, 0.0
  %3160 = vadd.xlane.f32.xlu0 %v3159
  %v3161 = vpop.xlane.xlu0 %3160
  %v3162 = vmul.f32 %v3140, %v68
  %v3163 = vmul.f32 %v3143, %v68
  %v3164 = vmul.f32 %v3146, %v68
  %v3165 = vmul.f32 %v3149, %v68
  %v3166 = vmul.f32 %v3152, %v68
  %v3167 = vmul.f32 %v3155, %v68
  %v3168 = vmul.f32 %v3158, %v68
  %v3169 = vmul.f32 %v3161, %v68
  %v3170 = vsub.f32 %v3130, %v3162
  %v3171 = vsub.f32 %v3131, %v3163
  %v3172 = vsub.f32 %v3132, %v3164
  %v3173 = vsub.f32 %v3133, %v3165
  %v3174 = vsub.f32 %v3134, %v3166
  %v3175 = vsub.f32 %v3135, %v3167
  %v3176 = vsub.f32 %v3136, %v3168
  %v3177 = vsub.f32 %v3137, %v3169
  %v3178 = vmul.f32 %v3170, %v3170
  %v3179 = vmul.f32 %v3171, %v3171
  %v3180 = vmul.f32 %v3172, %v3172
  %v3181 = vmul.f32 %v3173, %v3173
  %v3182 = vmul.f32 %v3174, %v3174
  %v3183 = vmul.f32 %v3175, %v3175
  %v3184 = vmul.f32 %v3176, %v3176
  %v3185 = vmul.f32 %v3177, %v3177
  %v3186 = vsel %vm37, %v3178, 0.0
  %3187 = vadd.xlane.f32.xlu0 %v3186
  %v3188 = vpop.xlane.xlu0 %3187
  %v3189 = vsel %vm37, %v3179, 0.0
  %3190 = vadd.xlane.f32.xlu0 %v3189
  %v3191 = vpop.xlane.xlu0 %3190
  %v3192 = vsel %vm37, %v3180, 0.0
  %3193 = vadd.xlane.f32.xlu0 %v3192
  %v3194 = vpop.xlane.xlu0 %3193
  %v3195 = vsel %vm37, %v3181, 0.0
  %3196 = vadd.xlane.f32.xlu0 %v3195
  %v3197 = vpop.xlane.xlu0 %3196
  %v3198 = vsel %vm37, %v3182, 0.0
  %3199 = vadd.xlane.f32.xlu0 %v3198
  %v3200 = vpop.xlane.xlu0 %3199
  %v3201 = vsel %vm37, %v3183, 0.0
  %3202 = vadd.xlane.f32.xlu0 %v3201
  %v3203 = vpop.xlane.xlu0 %3202
  %v3204 = vsel %vm37, %v3184, 0.0
  %3205 = vadd.xlane.f32.xlu0 %v3204
  %v3206 = vpop.xlane.xlu0 %3205
  %v3207 = vsel %vm37, %v3185, 0.0
  %3208 = vadd.xlane.f32.xlu0 %v3207
  %v3209 = vpop.xlane.xlu0 %3208
  %v3210 = vmul.f32 %v3188, 0.032258064
  %v3211 = vmul.f32 %v3191, 0.032258064
  %v3212 = vmul.f32 %v3194, 0.032258064
  %v3213 = vmul.f32 %v3197, 0.032258064
  %v3214 = vmul.f32 %v3200, 0.032258064
  %v3215 = vmul.f32 %v3203, 0.032258064
  %v3216 = vmul.f32 %v3206, 0.032258064
  %v3217 = vmul.f32 %v3209, 0.032258064
  %v3218 = vrsqrt.pop %v3210
  %v3219 = vmul.f32 %v3218, %v3210
  %v3220 = vmul.f32 %v3219, %v3218
  %v3221 = vmul.f32 0.5, %v3220
  %v3222 = vsub.f32 1.5, %v3221
  %v3223 = vmul.f32 %v3218, %v3222
  %v3224 = vmul.f32 %v3210, %v3223
  %vm3225 = vcmp.eq.f32.partialorder %v3210, inf
  %v3226 = vsel %vm3225, %v3210, %v3224
  %vm3227 = vcmp.eq.f32.partialorder %v3210, 0.0
  %v3228 = vand.u32 %v3210, 2147483648
  %v3229 = vsel %vm3227, %v3228, %v3226
  %v3230 = vrsqrt.pop %v3211
  %v3231 = vmul.f32 %v3230, %v3211
  %v3232 = vmul.f32 %v3231, %v3230
  %v3233 = vmul.f32 0.5, %v3232
  %v3234 = vsub.f32 1.5, %v3233
  %v3235 = vmul.f32 %v3230, %v3234
  %v3236 = vmul.f32 %v3211, %v3235
  %vm3237 = vcmp.eq.f32.partialorder %v3211, inf
  %v3238 = vsel %vm3237, %v3211, %v3236
  %vm3239 = vcmp.eq.f32.partialorder %v3211, 0.0
  %v3240 = vand.u32 %v3211, 2147483648
  %v3241 = vsel %vm3239, %v3240, %v3238
  %v3242 = vrsqrt.pop %v3212
  %v3243 = vmul.f32 %v3242, %v3212
  %v3244 = vmul.f32 %v3243, %v3242
  %v3245 = vmul.f32 0.5, %v3244
  %v3246 = vsub.f32 1.5, %v3245
  %v3247 = vmul.f32 %v3242, %v3246
  %v3248 = vmul.f32 %v3212, %v3247
  %vm3249 = vcmp.eq.f32.partialorder %v3212, inf
  %v3250 = vsel %vm3249, %v3212, %v3248
  %vm3251 = vcmp.eq.f32.partialorder %v3212, 0.0
  %v3252 = vand.u32 %v3212, 2147483648
  %v3253 = vsel %vm3251, %v3252, %v3250
  %v3254 = vrsqrt.pop %v3213
  %v3255 = vmul.f32 %v3254, %v3213
  %v3256 = vmul.f32 %v3255, %v3254
  %v3257 = vmul.f32 0.5, %v3256
  %v3258 = vsub.f32 1.5, %v3257
  %v3259 = vmul.f32 %v3254, %v3258
  %v3260 = vmul.f32 %v3213, %v3259
  %vm3261 = vcmp.eq.f32.partialorder %v3213, inf
  %v3262 = vsel %vm3261, %v3213, %v3260
  %vm3263 = vcmp.eq.f32.partialorder %v3213, 0.0
  %v3264 = vand.u32 %v3213, 2147483648
  %v3265 = vsel %vm3263, %v3264, %v3262
  %v3266 = vrsqrt.pop %v3214
  %v3267 = vmul.f32 %v3266, %v3214
  %v3268 = vmul.f32 %v3267, %v3266
  %v3269 = vmul.f32 0.5, %v3268
  %v3270 = vsub.f32 1.5, %v3269
  %v3271 = vmul.f32 %v3266, %v3270
  %v3272 = vmul.f32 %v3214, %v3271
  %vm3273 = vcmp.eq.f32.partialorder %v3214, inf
  %v3274 = vsel %vm3273, %v3214, %v3272
  %vm3275 = vcmp.eq.f32.partialorder %v3214, 0.0
  %v3276 = vand.u32 %v3214, 2147483648
  %v3277 = vsel %vm3275, %v3276, %v3274
  %v3278 = vrsqrt.pop %v3215
  %v3279 = vmul.f32 %v3278, %v3215
  %v3280 = vmul.f32 %v3279, %v3278
  %v3281 = vmul.f32 0.5, %v3280
  %v3282 = vsub.f32 1.5, %v3281
  %v3283 = vmul.f32 %v3278, %v3282
  %v3284 = vmul.f32 %v3215, %v3283
  %vm3285 = vcmp.eq.f32.partialorder %v3215, inf
  %v3286 = vsel %vm3285, %v3215, %v3284
  %vm3287 = vcmp.eq.f32.partialorder %v3215, 0.0
  %v3288 = vand.u32 %v3215, 2147483648
  %v3289 = vsel %vm3287, %v3288, %v3286
  %v3290 = vrsqrt.pop %v3216
  %v3291 = vmul.f32 %v3290, %v3216
  %v3292 = vmul.f32 %v3291, %v3290
  %v3293 = vmul.f32 0.5, %v3292
  %v3294 = vsub.f32 1.5, %v3293
  %v3295 = vmul.f32 %v3290, %v3294
  %v3296 = vmul.f32 %v3216, %v3295
  %vm3297 = vcmp.eq.f32.partialorder %v3216, inf
  %v3298 = vsel %vm3297, %v3216, %v3296
  %vm3299 = vcmp.eq.f32.partialorder %v3216, 0.0
  %v3300 = vand.u32 %v3216, 2147483648
  %v3301 = vsel %vm3299, %v3300, %v3298
  %v3302 = vrsqrt.pop %v3217
  %v3303 = vmul.f32 %v3302, %v3217
  %v3304 = vmul.f32 %v3303, %v3302
  %v3305 = vmul.f32 0.5, %v3304
  %v3306 = vsub.f32 1.5, %v3305
  %v3307 = vmul.f32 %v3302, %v3306
  %v3308 = vmul.f32 %v3217, %v3307
  %vm3309 = vcmp.eq.f32.partialorder %v3217, inf
  %v3310 = vsel %vm3309, %v3217, %v3308
  %vm3311 = vcmp.eq.f32.partialorder %v3217, 0.0
  %v3312 = vand.u32 %v3217, 2147483648
  %v3313 = vsel %vm3311, %v3312, %v3310
  %v3314 = vadd.f32 %v3229, 1e-06
  %v3315 = vadd.f32 %v3241, 1e-06
  %v3316 = vadd.f32 %v3253, 1e-06
  %v3317 = vadd.f32 %v3265, 1e-06
  %v3318 = vadd.f32 %v3277, 1e-06
  %v3319 = vadd.f32 %v3289, 1e-06
  %v3320 = vadd.f32 %v3301, 1e-06
  %v3321 = vadd.f32 %v3313, 1e-06
  %v3322 = vrcp.pop %v3314
  %v3323 = vmul.f32 %v3314, %v3322
  %v3324 = vsub.f32 1.0, %v3323
  %v3325 = vmul.f32 %v3322, %v3324
  %v3326 = vadd.f32 %v3322, %v3325
  %vm3327 = vweird.f32 %v3314
  %vm3328 = vweird.f32 %v3322
  %vm3329 = vmor %vm3327, %vm3328
  %v3330 = vsel %vm3329, %v3322, %v3326
  %v3331 = vand.u32 2147483647, %v3314
  %vm3332 = vcmp.eq.f32.partialorder %v3331, 8.507059e+37
  %v3333 = vand.u32 %v3314, 2147483648
  %v3334 = vor.u32 1.1754944e-38, %v3333
  %v3335 = vsel %vm3332, %v3334, %v3330
  %v3336 = vrcp.pop %v3315
  %v3337 = vmul.f32 %v3315, %v3336
  %v3338 = vsub.f32 1.0, %v3337
  %v3339 = vmul.f32 %v3336, %v3338
  %v3340 = vadd.f32 %v3336, %v3339
  %vm3341 = vweird.f32 %v3315
  %vm3342 = vweird.f32 %v3336
  %vm3343 = vmor %vm3341, %vm3342
  %v3344 = vsel %vm3343, %v3336, %v3340
  %v3345 = vand.u32 2147483647, %v3315
  %vm3346 = vcmp.eq.f32.partialorder %v3345, 8.507059e+37
  %v3347 = vand.u32 %v3315, 2147483648
  %v3348 = vor.u32 1.1754944e-38, %v3347
  %v3349 = vsel %vm3346, %v3348, %v3344
  %v3350 = vrcp.pop %v3316
  %v3351 = vmul.f32 %v3316, %v3350
  %v3352 = vsub.f32 1.0, %v3351
  %v3353 = vmul.f32 %v3350, %v3352
  %v3354 = vadd.f32 %v3350, %v3353
  %vm3355 = vweird.f32 %v3316
  %vm3356 = vweird.f32 %v3350
  %vm3357 = vmor %vm3355, %vm3356
  %v3358 = vsel %vm3357, %v3350, %v3354
  %v3359 = vand.u32 2147483647, %v3316
  %vm3360 = vcmp.eq.f32.partialorder %v3359, 8.507059e+37
  %v3361 = vand.u32 %v3316, 2147483648
  %v3362 = vor.u32 1.1754944e-38, %v3361
  %v3363 = vsel %vm3360, %v3362, %v3358
  %v3364 = vrcp.pop %v3317
  %v3365 = vmul.f32 %v3317, %v3364
  %v3366 = vsub.f32 1.0, %v3365
  %v3367 = vmul.f32 %v3364, %v3366
  %v3368 = vadd.f32 %v3364, %v3367
  %vm3369 = vweird.f32 %v3317
  %vm3370 = vweird.f32 %v3364
  %vm3371 = vmor %vm3369, %vm3370
  %v3372 = vsel %vm3371, %v3364, %v3368
  %v3373 = vand.u32 2147483647, %v3317
  %vm3374 = vcmp.eq.f32.partialorder %v3373, 8.507059e+37
  %v3375 = vand.u32 %v3317, 2147483648
  %v3376 = vor.u32 1.1754944e-38, %v3375
  %v3377 = vsel %vm3374, %v3376, %v3372
  %v3378 = vrcp.pop %v3318
  %v3379 = vmul.f32 %v3318, %v3378
  %v3380 = vsub.f32 1.0, %v3379
  %v3381 = vmul.f32 %v3378, %v3380
  %v3382 = vadd.f32 %v3378, %v3381
  %vm3383 = vweird.f32 %v3318
  %vm3384 = vweird.f32 %v3378
  %vm3385 = vmor %vm3383, %vm3384
  %v3386 = vsel %vm3385, %v3378, %v3382
  %v3387 = vand.u32 2147483647, %v3318
  %vm3388 = vcmp.eq.f32.partialorder %v3387, 8.507059e+37
  %v3389 = vand.u32 %v3318, 2147483648
  %v3390 = vor.u32 1.1754944e-38, %v3389
  %v3391 = vsel %vm3388, %v3390, %v3386
  %v3392 = vrcp.pop %v3319
  %v3393 = vmul.f32 %v3319, %v3392
  %v3394 = vsub.f32 1.0, %v3393
  %v3395 = vmul.f32 %v3392, %v3394
  %v3396 = vadd.f32 %v3392, %v3395
  %vm3397 = vweird.f32 %v3319
  %vm3398 = vweird.f32 %v3392
  %vm3399 = vmor %vm3397, %vm3398
  %v3400 = vsel %vm3399, %v3392, %v3396
  %v3401 = vand.u32 2147483647, %v3319
  %vm3402 = vcmp.eq.f32.partialorder %v3401, 8.507059e+37
  %v3403 = vand.u32 %v3319, 2147483648
  %v3404 = vor.u32 1.1754944e-38, %v3403
  %v3405 = vsel %vm3402, %v3404, %v3400
  %v3406 = vrcp.pop %v3320
  %v3407 = vmul.f32 %v3320, %v3406
  %v3408 = vsub.f32 1.0, %v3407
  %v3409 = vmul.f32 %v3406, %v3408
  %v3410 = vadd.f32 %v3406, %v3409
  %vm3411 = vweird.f32 %v3320
  %vm3412 = vweird.f32 %v3406
  %vm3413 = vmor %vm3411, %vm3412
  %v3414 = vsel %vm3413, %v3406, %v3410
  %v3415 = vand.u32 2147483647, %v3320
  %vm3416 = vcmp.eq.f32.partialorder %v3415, 8.507059e+37
  %v3417 = vand.u32 %v3320, 2147483648
  %v3418 = vor.u32 1.1754944e-38, %v3417
  %v3419 = vsel %vm3416, %v3418, %v3414
  %v3420 = vrcp.pop %v3321
  %v3421 = vmul.f32 %v3321, %v3420
  %v3422 = vsub.f32 1.0, %v3421
  %v3423 = vmul.f32 %v3420, %v3422
  %v3424 = vadd.f32 %v3420, %v3423
  %vm3425 = vweird.f32 %v3321
  %vm3426 = vweird.f32 %v3420
  %vm3427 = vmor %vm3425, %vm3426
  %v3428 = vsel %vm3427, %v3420, %v3424
  %v3429 = vand.u32 2147483647, %v3321
  %vm3430 = vcmp.eq.f32.partialorder %v3429, 8.507059e+37
  %v3431 = vand.u32 %v3321, 2147483648
  %v3432 = vor.u32 1.1754944e-38, %v3431
  %v3433 = vsel %vm3430, %v3432, %v3428
  %v3434 = vmul.f32 %v3170, %v3335
  %v3435 = vmul.f32 %v3171, %v3349
  %v3436 = vmul.f32 %v3172, %v3363
  %v3437 = vmul.f32 %v3173, %v3377
  %v3438 = vmul.f32 %v3174, %v3391
  %v3439 = vmul.f32 %v3175, %v3405
  %v3440 = vmul.f32 %v3176, %v3419
  %v3441 = vmul.f32 %v3177, %v3433
  %v3442 = vld [vmem:[%s4] sm:$0xff]
  %v3443 = vld [vmem:[%s4 + $0x8] sm:$0xff]
  %v3444 = vld [vmem:[%s4 + $0x10] sm:$0xff]
  %v3445 = vld [vmem:[%s4 + $0x18] sm:$0xff]
  %v3446 = vld [vmem:[%s5] sm:$0x1]
  %v3448 = vperm.slane %v3446, 0
  %v3451 = vsel %vm37, %v3434, 0
  %v3454 = vsel %vm37, %v3435, 0
  %v3457 = vsel %vm37, %v3436, 0
  %v3460 = vsel %vm37, %v3437, 0
  %v3463 = vsel %vm37, %v3438, 0
  %v3466 = vsel %vm37, %v3439, 0
  %v3469 = vsel %vm37, %v3440, 0
  %v3472 = vsel %vm37, %v3441, 0
  %3474 = vmatpush.msra.mxu0 0.0
  %3475 = vmatpush.msra.mxu0 0.0
  %3476 = vmatpush.msra.mxu0 0.0
  %3477 = vmatpush.msra.mxu0 0.0
  %3478 = vmatpush.msra.mxu0 0.0
  %3479 = vmatpush.msra.mxu0 0.0
  %3480 = vmatpush.msra.mxu0 0.0
  %3481 = vmatpush.msra.mxu0 0.0
  %3482 = vmatpush.msra.mxu0 0.0
  %3483 = vmatpush.msra.mxu0 0.0
  %3484 = vmatpush.msra.mxu0 0.0
  %3485 = vmatpush.msra.mxu0 0.0
  %3486 = vmatpush.msra.mxu0 %v3445
  %3487 = vmatpush.msra.mxu0 %v3444
  %3488 = vmatpush.msra.mxu0 %v3443
  %3489 = vmatpush.msra.mxu0 %v3442
  %3490 = vmatmul.f32.gmra.mxu0 %v3451
  %v3491 = vpop.f32.mrf.mxu0
  %v3492 = vadd.f32 %v3448, %v3491
  %3493 = vmatmul.f32.gmra.mxu0 %v3454
  %v3494 = vpop.f32.mrf.mxu0
  %v3495 = vadd.f32 %v3448, %v3494
  %3496 = vmatmul.f32.gmra.mxu0 %v3457
  %v3497 = vpop.f32.mrf.mxu0
  %v3498 = vadd.f32 %v3448, %v3497
  %3499 = vmatmul.f32.gmra.mxu0 %v3460
  %v3500 = vpop.f32.mrf.mxu0
  %v3501 = vadd.f32 %v3448, %v3500
  %3502 = vmatmul.f32.gmra.mxu0 %v3463
  %v3503 = vpop.f32.mrf.mxu0
  %v3504 = vadd.f32 %v3448, %v3503
  %3505 = vmatmul.f32.gmra.mxu0 %v3466
  %v3506 = vpop.f32.mrf.mxu0
  %v3507 = vadd.f32 %v3448, %v3506
  %3508 = vmatmul.f32.gmra.mxu0 %v3469
  %v3509 = vpop.f32.mrf.mxu0
  %v3510 = vadd.f32 %v3448, %v3509
  %3511 = vmatmul.f32.gmra.mxu0 %v3472
  %v3512 = vpop.f32.mrf.mxu0
  %v3513 = vadd.f32 %v3448, %v3512
  %3514 = vdwg.mxu0
  %v3515 = vmax.f32 %v3492, 0.0
  %v3516 = vmax.f32 %v3495, 0.0
  %v3517 = vmax.f32 %v3498, 0.0
  %v3518 = vmax.f32 %v3501, 0.0
  %v3519 = vmax.f32 %v3504, 0.0
  %v3520 = vmax.f32 %v3507, 0.0
  %v3521 = vmax.f32 %v3510, 0.0
  %v3522 = vmax.f32 %v3513, 0.0
  %v3523 = vld [vmem:[%s6] sm:$0xff]
  %v3524 = vld [vmem:[%s6 + $0x8] sm:$0xff]
  %v3525 = vld [vmem:[%s6 + $0x10] sm:$0xff]
  %v3526 = vld [vmem:[%s6 + $0x18] sm:$0xff]
  %v3527 = vld [vmem:[%s6 + $0x20] sm:$0xff]
  %v3528 = vld [vmem:[%s6 + $0x28] sm:$0xff]
  %v3529 = vld [vmem:[%s6 + $0x30] sm:$0xff]
  %v3530 = vld [vmem:[%s6 + $0x38] sm:$0xff]
  %v3531 = vld [vmem:[%s7] sm:$0x1]
  %v3533 = vperm.slane %v3531, 0
  %vm3535 = vcmask 523264
  %v3537 = vsel %vm3535, %v3515, 0
  %v3540 = vsel %vm3535, %v3516, 0
  %v3543 = vsel %vm3535, %v3517, 0
  %v3546 = vsel %vm3535, %v3518, 0
  %v3549 = vsel %vm3535, %v3519, 0
  %v3552 = vsel %vm3535, %v3520, 0
  %v3555 = vsel %vm3535, %v3521, 0
  %v3558 = vsel %vm3535, %v3522, 0
  %3560 = vmatpush.msra.mxu0 0.0
  %3561 = vmatpush.msra.mxu0 0.0
  %3562 = vmatpush.msra.mxu0 0.0
  %3563 = vmatpush.msra.mxu0 0.0
  %3564 = vmatpush.msra.mxu0 0.0
  %3565 = vmatpush.msra.mxu0 0.0
  %3566 = vmatpush.msra.mxu0 0.0
  %3567 = vmatpush.msra.mxu0 0.0
  %3568 = vmatpush.msra.mxu0 %v3530
  %3569 = vmatpush.msra.mxu0 %v3529
  %3570 = vmatpush.msra.mxu0 %v3528
  %3571 = vmatpush.msra.mxu0 %v3527
  %3572 = vmatpush.msra.mxu0 %v3526
  %3573 = vmatpush.msra.mxu0 %v3525
  %3574 = vmatpush.msra.mxu0 %v3524
  %3575 = vmatpush.msra.mxu0 %v3523
  %3576 = vmatmul.f32.gmra.mxu0 %v3537
  %v3577 = vpop.f32.mrf.mxu0
  %v3578 = vadd.f32 %v3533, %v3577
  %3579 = vmatmul.f32.gmra.mxu0 %v3540
  %v3580 = vpop.f32.mrf.mxu0
  %v3581 = vadd.f32 %v3533, %v3580
  %3582 = vmatmul.f32.gmra.mxu0 %v3543
  %v3583 = vpop.f32.mrf.mxu0
  %v3584 = vadd.f32 %v3533, %v3583
  %3585 = vmatmul.f32.gmra.mxu0 %v3546
  %v3586 = vpop.f32.mrf.mxu0
  %v3587 = vadd.f32 %v3533, %v3586
  %3588 = vmatmul.f32.gmra.mxu0 %v3549
  %v3589 = vpop.f32.mrf.mxu0
  %v3590 = vadd.f32 %v3533, %v3589
  %3591 = vmatmul.f32.gmra.mxu0 %v3552
  %v3592 = vpop.f32.mrf.mxu0
  %v3593 = vadd.f32 %v3533, %v3592
  %3594 = vmatmul.f32.gmra.mxu0 %v3555
  %v3595 = vpop.f32.mrf.mxu0
  %v3596 = vadd.f32 %v3533, %v3595
  %3597 = vmatmul.f32.gmra.mxu0 %v3558
  %v3598 = vpop.f32.mrf.mxu0
  %v3599 = vadd.f32 %v3533, %v3598
  %3600 = vdwg.mxu0
  %v3601 = vadd.f32 %v3130, %v3578
  %v3602 = vadd.f32 %v3131, %v3581
  %v3603 = vadd.f32 %v3132, %v3584
  %v3604 = vadd.f32 %v3133, %v3587
  %v3605 = vadd.f32 %v3134, %v3590
  %v3606 = vadd.f32 %v3135, %v3593
  %v3607 = vadd.f32 %v3136, %v3596
  %v3608 = vadd.f32 %v3137, %v3599
  %3609 = vst.msk [vmem:[%s8] sm:$0xff] %vm37, %v3601
  %3610 = vst.msk [vmem:[%s8 + $0x8] sm:$0xff] %vm37, %v3602
  %3611 = vst.msk [vmem:[%s8 + $0x10] sm:$0xff] %vm37, %v3603
  %3612 = vst.msk [vmem:[%s8 + $0x18] sm:$0xff] %vm37, %v3604
  %3613 = vst.msk [vmem:[%s8 + $0x20] sm:$0xff] %vm37, %v3605
  %3614 = vst.msk [vmem:[%s8 + $0x28] sm:$0xff] %vm37, %v3606
  %3615 = vst.msk [vmem:[%s8 + $0x30] sm:$0xff] %vm37, %v3607
  %3616 = vst.msk [vmem:[%s8 + $0x38] sm:$0xff] %vm37, %v3608
  // Predicated region
  $region34: #{tpu_custom_call.1} parent=0 // pred_check
    _
  $region35: #{tpu_custom_call.1} parent=0 // pred_check_branch
    %3618 = sbr.rel (0) target = $region37
  $region36: #{tpu_custom_call.1} parent=0 // pred_region
    _
  $region37: #{tpu_custom_call.1} parent=0 // pred_fallthru
    _
  // Predicated region
  $region38: #{tpu_custom_call.1} parent=0 // pred_check
    _
  $region39: #{tpu_custom_call.1} parent=0 // pred_check_branch
    %3620 = sbr.rel (0) target = $region41
  $region40: #{tpu_custom_call.1} parent=0 // pred_region
    _
  $region41: #{tpu_custom_call.1} parent=0 // pred_fallthru
    _

</llo_original>
